<compile_context>
chip_gen: v7x
topology: tpu7x:2x2x1
jax: 0.10.0
libtpu: 0.0.40
codegen_flags: <defaults>
</compile_context>

<pallas_src>
import functools

import jax
import jax.numpy as jnp
import numpy as np
from jax import lax
from jax.experimental import pallas as pl
from jax.experimental.pallas import tpu as pltpu

HEAD_PAD = 128  # lane-dense width for the (tiny) final head output


def _full_spec(shape):
    nd = len(shape)
    return pl.BlockSpec(shape, lambda i, nd=nd: (0,) * nd)


# ----------------------------------------------------------------------------
# Fused forward kernel
# ----------------------------------------------------------------------------
def voxelnet_kernel(xT_ref, w1_ref, b1_ref, w2_ref, b2_ref,          # VFE
                    m1r_ref, b1e_ref,                                 # conv1 (as matrix)
                    w2e_ref, b2e_ref,                                 # conv2 (as matrix)
                    l1w_ref, l1b_ref, l2w_ref, l2b_ref,               # linear head
                    o_ref, *, n_points, n_batch, n_rvox, n_feat):
    f32 = jnp.float32
    n_cols = n_batch * n_rvox

    # ---- VFE stage, transposed layout: [features, points] -------------------
    # VFE1: Linear + ReLU on every point, then max over the point (N) axis.
    h1 = jnp.dot(w1_ref[...], xT_ref[...], preferred_element_type=f32) + b1_ref[...]
    h1 = jnp.maximum(h1, 0.0)                               # [cw, n_points*n_cols]
    agg = h1[:, 0:n_cols]
    for n in range(1, n_points):                            # max over point axis
        agg = jnp.maximum(agg, h1[:, n * n_cols:(n + 1) * n_cols])
    # VFE2: Linear + ReLU (the remaining dim-0 maxes act on singleton axes).
    h2 = jnp.dot(w2_ref[...], agg, preferred_element_type=f32) + b2_ref[...]
    h2 = jnp.maximum(h2, 0.0)                               # [cw, B*R] = VFE output^T

    # ---- Conv3d #1 as a dense operator ---------------------------------------
    # y1[b, o] = b1e[o] + sum_{w, r} h2[w, b*R + r] * m1r[w, r, o]
    # The (B*R) -> (B, R) regrouping runs on the VPU with hoisted one-hot row
    # masks, so the 1-MiB operator m1r does NOT need to be batch-tiled.
    row_ids = lax.broadcasted_iota(jnp.int32, (n_batch, n_rvox), 0)
    masks = [(row_ids == b).astype(f32) for b in range(n_batch)]   # hoisted
    acc = jnp.zeros((n_batch, b1e_ref.shape[1]), f32)
    for w in range(n_feat):
        hw = masks[0] * h2[w:w + 1, 0:n_rvox]               # [B, R]
        for b in range(1, n_batch):
            hw = hw + masks[b] * h2[w:w + 1, b * n_rvox:(b + 1) * n_rvox]
        acc = acc + jnp.dot(hw, m1r_ref[w], preferred_element_type=f32)
    a1 = jnp.maximum(acc + b1e_ref[...], 0.0)               # [B, 128*Do*Ho*Wo]

    # ---- Conv3d #2 as a dense operator (output spatial collapses to 1x1x1) ---
    a2 = jnp.dot(a1, w2e_ref[...], preferred_element_type=f32) + b2e_ref[...]
    a2 = jnp.maximum(a2, 0.0)                               # [B, 256]

    # ---- Linear head ----------------------------------------------------------
    l1 = jnp.maximum(
        jnp.dot(a2, l1w_ref[...], preferred_element_type=f32) + l1b_ref[...], 0.0)
    o_ref[...] = (jnp.dot(l1, l2w_ref[...], preferred_element_type=f32)
                  + l2b_ref[...])                           # [B, HEAD_PAD] lane-dense


# ----------------------------------------------------------------------------
# One-time (init) lowering of the module parameters to kernel operands
# ----------------------------------------------------------------------------
def conv3d_as_matrix(w, spatial, *, stride=2, pad=1):
    """Lower Conv3d weight [Cout, Cin, k, k, k] acting on a fixed NCDHW input of
    spatial size `spatial` into a dense matrix M of shape
    [Cin*D*H*W, Cout*Do*Ho*Wo] so that, per batch row, flat_out = flat_in @ M
    (row-major NCDHW flattens).  Returns (M, (Do, Ho, Wo))."""
    w = np.asarray(w, np.float32)
    cout, cin, k = w.shape[0], w.shape[1], w.shape[2]
    D, H, W = spatial
    Do, Ho, Wo = [(s + 2 * pad - k) // stride + 1 for s in spatial]
    m = np.zeros((cin, D, H, W, cout, Do, Ho, Wo), np.float32)
    for do in range(Do):
        for ho in range(Ho):
            for wo in range(Wo):
                for kd in range(k):
                    z = stride * do + kd - pad
                    if not 0 <= z < D:
                        continue
                    for kh in range(k):
                        y = stride * ho + kh - pad
                        if not 0 <= y < H:
                            continue
                        for kw in range(k):
                            xx = stride * wo + kw - pad
                            if not 0 <= xx < W:
                                continue
                            m[:, z, y, xx, :, do, ho, wo] += w[:, :, kd, kh, kw].T
    return m.reshape(cin * D * H * W, cout * Do * Ho * Wo), (Do, Ho, Wo)


def prepare_fused_params(p, x_shape):
    """Done ONCE at init: conv->dense-operator lowering, weight transposes,
    bias reshapes and lane-dense padding of the final head."""
    n_points, d1, d2, d3, d4, cin = x_shape
    del n_points, cin
    cw = int(p["vfe_w1"].shape[1])            # VFE out_channels == conv W-spatial dim
    B, R = d1, d2 * d3 * d4

    assert d2 == p["conv1_w"].shape[1], "conv1 in-channels must match d2"
    # conv1 sees NCDHW = [d1, d2, d3, d4, cw]
    m1, sp1 = conv3d_as_matrix(p["conv1_w"], (d3, d4, cw))
    # conv2 sees NCDHW = [d1, 128, *sp1]
    m2, sp2 = conv3d_as_matrix(p["conv2_w"], sp1)
    assert sp2 == (1, 1, 1), "flatten -> Linear(256) needs conv2 output 1x1x1"
    assert m2.shape[1] == p["lin1_w"].shape[0]

    # conv1 operator regrouped by the W-index (== VFE feature index):
    #   m1r[w, r, :] = m1[r*cw + w, :],  r = flattened (d2, d3, d4).
    # UNTILED over the batch (the kernel regroups activations with masks).
    m1r = np.stack([m1[w::cw, :] for w in range(cw)])                 # [cw, R, n1]
    assert m1r.shape[1] == R
    b1e = np.repeat(np.asarray(p["conv1_b"], np.float32), int(np.prod(sp1)))[None, :]
    b2e = np.asarray(p["conv2_b"], np.float32)[None, :]

    # Lane-dense padded head (zeros beyond out_channels; sliced in the wrapper).
    ocs = int(p["lin2_w"].shape[1])
    assert ocs <= HEAD_PAD
    l2w = np.zeros((int(p["lin2_w"].shape[0]), HEAD_PAD), np.float32)
    l2w[:, :ocs] = np.asarray(p["lin2_w"], np.float32)
    l2b = np.zeros((1, HEAD_PAD), np.float32)
    l2b[0, :ocs] = np.asarray(p["lin2_b"], np.float32)

    return {
        "w1_vfe": jnp.asarray(np.asarray(p["vfe_w1"], np.float32).T),     # [cw, cin]
        "b1_vfe": jnp.asarray(np.asarray(p["vfe_b1"], np.float32)[:, None]),
        "w2_vfe": jnp.asarray(np.asarray(p["vfe_w2"], np.float32).T),
        "b2_vfe": jnp.asarray(np.asarray(p["vfe_b2"], np.float32)[:, None]),
        "m1r": jnp.asarray(m1r),
        "b1e": jnp.asarray(b1e),
        "w2e": jnp.asarray(m2),
        "b2e": jnp.asarray(b2e),
        "l1w": jnp.asarray(p["lin1_w"], jnp.float32),
        "l1b": jnp.asarray(np.asarray(p["lin1_b"], np.float32)[None, :]),
        "l2w": jnp.asarray(l2w),
        "l2b": jnp.asarray(l2b),
    }


# ----------------------------------------------------------------------------
# Full VoxelNet forward (single pallas_call)
# ----------------------------------------------------------------------------
@functools.partial(jax.jit, static_argnames=("out_channels",))
def voxelnet_forward(x, fp, *, out_channels):
    n_points, B = x.shape[0], x.shape[1]
    R = int(np.prod(x.shape[2:5]))
    cin = x.shape[5]
    cw = fp["w1_vfe"].shape[0]

    # Single tiny layout op: [N, d1, d2, d3, d4, Cin] -> [Cin, N * d1*d2*d3*d4].
    xT = jnp.transpose(x, (5, 0, 1, 2, 3, 4)).reshape(cin, n_points * B * R)

    args = (xT, fp["w1_vfe"], fp["b1_vfe"], fp["w2_vfe"], fp["b2_vfe"],
            fp["m1r"], fp["b1e"], fp["w2e"], fp["b2e"],
            fp["l1w"], fp["l1b"], fp["l2w"], fp["l2b"])

    out = pl.pallas_call(
        functools.partial(voxelnet_kernel, n_points=n_points,
                          n_batch=B, n_rvox=R, n_feat=cw),
        out_shape=jax.ShapeDtypeStruct((B, HEAD_PAD), jnp.float32),
        grid=(1,),
        in_specs=[_full_spec(a.shape) for a in args],
        out_specs=_full_spec((B, HEAD_PAD)),
        compiler_params=pltpu.CompilerParams(dimension_semantics=("arbitrary",)),
    )(*args)
    return out[:, :out_channels]


# ----------------------------------------------------------------------------
# Deterministic parameter init (raw PyTorch-style layout; conv as OIDHW)
# ----------------------------------------------------------------------------
def init_params(key, in_channels, out_channels):
    ks = jax.random.split(key, 12)

    def w(k, shape, scale=0.1):
        return scale * jax.random.normal(k, shape, dtype=jnp.float32)

    return {
        "vfe_w1": w(ks[0], (in_channels, out_channels)),
        "vfe_b1": w(ks[1], (out_channels,), 0.01),
        "vfe_w2": w(ks[2], (out_channels, out_channels)),
        "vfe_b2": w(ks[3], (out_channels,), 0.01),
        "conv1_w": w(ks[4], (128, out_channels, 3, 3, 3)),
        "conv1_b": w(ks[5], (128,), 0.01),
        "conv2_w": w(ks[6], (256, 128, 3, 3, 3)),
        "conv2_b": w(ks[7], (256,), 0.01),
        "lin1_w": w(ks[8], (256, 128)),
        "lin1_b": w(ks[9], (128,), 0.01),
        "lin2_w": w(ks[10], (128, out_channels)),
        "lin2_b": w(ks[11], (out_channels,), 0.01),
    }


# ----------------------------------------------------------------------------
# Pure-JAX reference (for correctness check)
# ----------------------------------------------------------------------------
def ref_forward(x, p):
    hp = lax.Precision.HIGHEST
    h = jax.nn.relu(jnp.einsum("...c,co->...o", x, p["vfe_w1"], precision=hp) + p["vfe_b1"])
    h = jnp.max(h, axis=0)[None]
    h = jax.nn.relu(jnp.einsum("...c,co->...o", h, p["vfe_w2"], precision=hp) + p["vfe_b2"])
    h = jnp.max(h, axis=0)[None]
    v = jnp.max(h, axis=0)

    def conv(z, wgt, b):
        y = lax.conv_general_dilated(
            z, wgt, (2, 2, 2), [(1, 1)] * 3,
            dimension_numbers=("NCDHW", "OIDHW", "NCDHW"), precision=hp)
        return jax.nn.relu(y + b[None, :, None, None, None])

    c = conv(v, p["conv1_w"], p["conv1_b"])
    c = conv(c, p["conv2_w"], p["conv2_b"])
    f = c.reshape(c.shape[0], -1)
    f = jax.nn.relu(jnp.matmul(f, p["lin1_w"], precision=hp) + p["lin1_b"])
    f = jnp.matmul(f, p["lin2_w"], precision=hp) + p["lin2_b"]
    return f


if __name__ == "__main__":
    max_points = 2      # N: voxel/point axis reduced by the VFE max
    in_channels = 6     # (x, y, z) + ancillary info
    out_channels = 4    # small so the two stride-2 convs collapse (d3,d4,C) -> 1x1x1

    key = jax.random.PRNGKey(0)
    kx, kp = jax.random.split(key)
    # x: [N, d1, d2(=out_channels), d3, d4, in_channels]
    x = jax.random.normal(
        kx, (max_points, 2, out_channels, 4, 4, in_channels), dtype=jnp.float32)
    params = init_params(kp, in_channels, out_channels)
    fused = prepare_fused_params(params, x.shape)

    out = jax.block_until_ready(voxelnet_forward(x, fused, out_channels=out_channels))
    ref = jax.block_until_ready(ref_forward(x, params))

    assert out.shape == (2, out_channels), out.shape
    np.testing.assert_allclose(np.asarray(out), np.asarray(ref), rtol=1e-3, atol=1e-3)
    print("KERNEL_OK")
</pallas_src>

<mosaic_0001>
module attributes {stable_mosaic.version = 11 : i64} {
  func.func @voxelnet_kernel(%arg0: i32, %arg1: memref<6x256xf32, #tpu.memory_space<vmem>>, %arg2: memref<4x6xf32, #tpu.memory_space<vmem>>, %arg3: memref<4x1xf32, #tpu.memory_space<vmem>>, %arg4: memref<4x4xf32, #tpu.memory_space<vmem>>, %arg5: memref<4x1xf32, #tpu.memory_space<vmem>>, %arg6: memref<4x64x1024xf32, #tpu.memory_space<vmem>>, %arg7: memref<1x1024xf32, #tpu.memory_space<vmem>>, %arg8: memref<1024x256xf32, #tpu.memory_space<vmem>>, %arg9: memref<1x256xf32, #tpu.memory_space<vmem>>, %arg10: memref<256x128xf32, #tpu.memory_space<vmem>>, %arg11: memref<1x128xf32, #tpu.memory_space<vmem>>, %arg12: memref<128x128xf32, #tpu.memory_space<vmem>>, %arg13: memref<1x128xf32, #tpu.memory_space<vmem>>, %arg14: memref<2x128xf32, #tpu.memory_space<vmem>>) attributes {dimension_semantics = [#tpu.dimension_semantics<arbitrary>], iteration_bounds = array<i64: 1>, scalar_prefetch = 0 : i64, scratch_operands = 0 : i64, tpu.core_type = #tpu.core_type<tc>, window_params = [{pipeline_mode = #tpu.pipeline_mode<synchronous>, transform_indices = @transform_0, window_bounds = array<i64: 6, 256>}, {pipeline_mode = #tpu.pipeline_mode<synchronous>, transform_indices = @transform_1, window_bounds = array<i64: 4, 6>}, {pipeline_mode = #tpu.pipeline_mode<synchronous>, transform_indices = @transform_2, window_bounds = array<i64: 4, 1>}, {pipeline_mode = #tpu.pipeline_mode<synchronous>, transform_indices = @transform_3, window_bounds = array<i64: 4, 4>}, {pipeline_mode = #tpu.pipeline_mode<synchronous>, transform_indices = @transform_4, window_bounds = array<i64: 4, 1>}, {pipeline_mode = #tpu.pipeline_mode<synchronous>, transform_indices = @transform_5, window_bounds = array<i64: 4, 64, 1024>}, {pipeline_mode = #tpu.pipeline_mode<synchronous>, transform_indices = @transform_6, window_bounds = array<i64: 1, 1024>}, {pipeline_mode = #tpu.pipeline_mode<synchronous>, transform_indices = @transform_7, window_bounds = array<i64: 1024, 256>}, {pipeline_mode = #tpu.pipeline_mode<synchronous>, transform_indices = @transform_8, window_bounds = array<i64: 1, 256>}, {pipeline_mode = #tpu.pipeline_mode<synchronous>, transform_indices = @transform_9, window_bounds = array<i64: 256, 128>}, {pipeline_mode = #tpu.pipeline_mode<synchronous>, transform_indices = @transform_10, window_bounds = array<i64: 1, 128>}, {pipeline_mode = #tpu.pipeline_mode<synchronous>, transform_indices = @transform_11, window_bounds = array<i64: 128, 128>}, {pipeline_mode = #tpu.pipeline_mode<synchronous>, transform_indices = @transform_12, window_bounds = array<i64: 1, 128>}, {pipeline_mode = #tpu.pipeline_mode<synchronous>, transform_indices = @transform_13, window_bounds = array<i64: 2, 128>}]} {
    %c0 = arith.constant 0 : index
    %c0_0 = arith.constant 0 : index
    %0 = vector.load %arg2[%c0, %c0_0] : memref<4x6xf32, #tpu.memory_space<vmem>>, vector<4x6xf32>
    %c0_1 = arith.constant 0 : index
    %c0_2 = arith.constant 0 : index
    %1 = vector.load %arg1[%c0_1, %c0_2] : memref<6x256xf32, #tpu.memory_space<vmem>>, vector<6x256xf32>
    %cst = arith.constant dense<0.000000e+00> : vector<4x256xf32>
    %2 = tpu.matmul %0, %1, %cst {dimension_numbers = #tpu.dot_dimension_numbers<[1], [0], [0], [1], [0, 0, 1, 1], [], []>} : vector<4x6xf32>, vector<6x256xf32>, vector<4x256xf32> -> vector<4x256xf32>
    %c0_3 = arith.constant 0 : index
    %c0_4 = arith.constant 0 : index
    %3 = vector.load %arg3[%c0_3, %c0_4] : memref<4x1xf32, #tpu.memory_space<vmem>>, vector<4x1xf32>
    %4 = vector.broadcast %3 : vector<4x1xf32> to vector<4x256xf32>
    %5 = arith.addf %2, %4 : vector<4x256xf32>
    %cst_5 = arith.constant 0.000000e+00 : f32
    %6 = vector.broadcast %cst_5 : f32 to vector<4x256xf32>
    %7 = arith.maximumf %5, %6 : vector<4x256xf32>
    %8 = vector.extract_strided_slice %7 {offsets = [0, 0], sizes = [4, 128], strides = [1, 1]} : vector<4x256xf32> to vector<4x128xf32>
    %9 = vector.extract_strided_slice %7 {offsets = [0, 128], sizes = [4, 128], strides = [1, 1]} : vector<4x256xf32> to vector<4x128xf32>
    %10 = arith.maximumf %8, %9 : vector<4x128xf32>
    %c0_6 = arith.constant 0 : index
    %c0_7 = arith.constant 0 : index
    %11 = vector.load %arg4[%c0_6, %c0_7] : memref<4x4xf32, #tpu.memory_space<vmem>>, vector<4x4xf32>
    %cst_8 = arith.constant dense<0.000000e+00> : vector<4x128xf32>
    %12 = tpu.matmul %11, %10, %cst_8 {dimension_numbers = #tpu.dot_dimension_numbers<[1], [0], [0], [1], [0, 0, 1, 1], [], []>} : vector<4x4xf32>, vector<4x128xf32>, vector<4x128xf32> -> vector<4x128xf32>
    %c0_9 = arith.constant 0 : index
    %c0_10 = arith.constant 0 : index
    %13 = vector.load %arg5[%c0_9, %c0_10] : memref<4x1xf32, #tpu.memory_space<vmem>>, vector<4x1xf32>
    %14 = vector.broadcast %13 : vector<4x1xf32> to vector<4x128xf32>
    %15 = arith.addf %12, %14 : vector<4x128xf32>
    %cst_11 = arith.constant 0.000000e+00 : f32
    %16 = vector.broadcast %cst_11 : f32 to vector<4x128xf32>
    %17 = arith.maximumf %15, %16 : vector<4x128xf32>
    %18 = tpu.iota {dimensions = array<i32: 0>} : vector<2x64xi32>
    %c0_i32 = arith.constant 0 : i32
    %19 = vector.broadcast %c0_i32 : i32 to vector<2x64xi32>
    %20 = arith.cmpi eq, %18, %19 : vector<2x64xi32>
    %21 = arith.extui %20 : vector<2x64xi1> to vector<2x64xi32>
    %22 = arith.sitofp %21 : vector<2x64xi32> to vector<2x64xf32>
    %c1_i32 = arith.constant 1 : i32
    %23 = vector.broadcast %c1_i32 : i32 to vector<2x64xi32>
    %24 = arith.cmpi eq, %18, %23 : vector<2x64xi32>
    %25 = arith.extui %24 : vector<2x64xi1> to vector<2x64xi32>
    %26 = arith.sitofp %25 : vector<2x64xi32> to vector<2x64xf32>
    %cst_12 = arith.constant 0.000000e+00 : f32
    %27 = vector.broadcast %cst_12 : f32 to vector<2x1024xf32>
    %28 = vector.extract_strided_slice %17 {offsets = [0, 0], sizes = [1, 64], strides = [1, 1]} : vector<4x128xf32> to vector<1x64xf32>
    %29 = vector.broadcast %28 : vector<1x64xf32> to vector<2x64xf32>
    %30 = arith.mulf %22, %29 : vector<2x64xf32>
    %31 = vector.extract_strided_slice %17 {offsets = [0, 64], sizes = [1, 64], strides = [1, 1]} : vector<4x128xf32> to vector<1x64xf32>
    %32 = vector.broadcast %31 : vector<1x64xf32> to vector<2x64xf32>
    %33 = arith.mulf %26, %32 : vector<2x64xf32>
    %34 = arith.addf %30, %33 : vector<2x64xf32>
    %c0_13 = arith.constant 0 : index
    %c0_14 = arith.constant 0 : index
    %c0_15 = arith.constant 0 : index
    %35 = vector.load %arg6[%c0_13, %c0_14, %c0_15] : memref<4x64x1024xf32, #tpu.memory_space<vmem>>, vector<1x64x1024xf32>
    %36 = vector.shape_cast %35 : vector<1x64x1024xf32> to vector<64x1024xf32>
    %cst_16 = arith.constant dense<0.000000e+00> : vector<2x1024xf32>
    %37 = tpu.matmul %34, %36, %cst_16 {dimension_numbers = #tpu.dot_dimension_numbers<[1], [0], [0], [1], [0, 0, 1, 1], [], []>} : vector<2x64xf32>, vector<64x1024xf32>, vector<2x1024xf32> -> vector<2x1024xf32>
    %38 = arith.addf %27, %37 : vector<2x1024xf32>
    %39 = vector.extract_strided_slice %17 {offsets = [1, 0], sizes = [1, 64], strides = [1, 1]} : vector<4x128xf32> to vector<1x64xf32>
    %40 = vector.broadcast %39 : vector<1x64xf32> to vector<2x64xf32>
    %41 = arith.mulf %22, %40 : vector<2x64xf32>
    %42 = vector.extract_strided_slice %17 {offsets = [1, 64], sizes = [1, 64], strides = [1, 1]} : vector<4x128xf32> to vector<1x64xf32>
    %43 = vector.broadcast %42 : vector<1x64xf32> to vector<2x64xf32>
    %44 = arith.mulf %26, %43 : vector<2x64xf32>
    %45 = arith.addf %41, %44 : vector<2x64xf32>
    %c1 = arith.constant 1 : index
    %c0_17 = arith.constant 0 : index
    %c0_18 = arith.constant 0 : index
    %46 = vector.load %arg6[%c1, %c0_17, %c0_18] : memref<4x64x1024xf32, #tpu.memory_space<vmem>>, vector<1x64x1024xf32>
    %47 = vector.shape_cast %46 : vector<1x64x1024xf32> to vector<64x1024xf32>
    %cst_19 = arith.constant dense<0.000000e+00> : vector<2x1024xf32>
    %48 = tpu.matmul %45, %47, %cst_19 {dimension_numbers = #tpu.dot_dimension_numbers<[1], [0], [0], [1], [0, 0, 1, 1], [], []>} : vector<2x64xf32>, vector<64x1024xf32>, vector<2x1024xf32> -> vector<2x1024xf32>
    %49 = arith.addf %38, %48 : vector<2x1024xf32>
    %50 = vector.extract_strided_slice %17 {offsets = [2, 0], sizes = [1, 64], strides = [1, 1]} : vector<4x128xf32> to vector<1x64xf32>
    %51 = vector.broadcast %50 : vector<1x64xf32> to vector<2x64xf32>
    %52 = arith.mulf %22, %51 : vector<2x64xf32>
    %53 = vector.extract_strided_slice %17 {offsets = [2, 64], sizes = [1, 64], strides = [1, 1]} : vector<4x128xf32> to vector<1x64xf32>
    %54 = vector.broadcast %53 : vector<1x64xf32> to vector<2x64xf32>
    %55 = arith.mulf %26, %54 : vector<2x64xf32>
    %56 = arith.addf %52, %55 : vector<2x64xf32>
    %c2 = arith.constant 2 : index
    %c0_20 = arith.constant 0 : index
    %c0_21 = arith.constant 0 : index
    %57 = vector.load %arg6[%c2, %c0_20, %c0_21] : memref<4x64x1024xf32, #tpu.memory_space<vmem>>, vector<1x64x1024xf32>
    %58 = vector.shape_cast %57 : vector<1x64x1024xf32> to vector<64x1024xf32>
    %cst_22 = arith.constant dense<0.000000e+00> : vector<2x1024xf32>
    %59 = tpu.matmul %56, %58, %cst_22 {dimension_numbers = #tpu.dot_dimension_numbers<[1], [0], [0], [1], [0, 0, 1, 1], [], []>} : vector<2x64xf32>, vector<64x1024xf32>, vector<2x1024xf32> -> vector<2x1024xf32>
    %60 = arith.addf %49, %59 : vector<2x1024xf32>
    %61 = vector.extract_strided_slice %17 {offsets = [3, 0], sizes = [1, 64], strides = [1, 1]} : vector<4x128xf32> to vector<1x64xf32>
    %62 = vector.broadcast %61 : vector<1x64xf32> to vector<2x64xf32>
    %63 = arith.mulf %22, %62 : vector<2x64xf32>
    %64 = vector.extract_strided_slice %17 {offsets = [3, 64], sizes = [1, 64], strides = [1, 1]} : vector<4x128xf32> to vector<1x64xf32>
    %65 = vector.broadcast %64 : vector<1x64xf32> to vector<2x64xf32>
    %66 = arith.mulf %26, %65 : vector<2x64xf32>
    %67 = arith.addf %63, %66 : vector<2x64xf32>
    %c3 = arith.constant 3 : index
    %c0_23 = arith.constant 0 : index
    %c0_24 = arith.constant 0 : index
    %68 = vector.load %arg6[%c3, %c0_23, %c0_24] : memref<4x64x1024xf32, #tpu.memory_space<vmem>>, vector<1x64x1024xf32>
    %69 = vector.shape_cast %68 : vector<1x64x1024xf32> to vector<64x1024xf32>
    %cst_25 = arith.constant dense<0.000000e+00> : vector<2x1024xf32>
    %70 = tpu.matmul %67, %69, %cst_25 {dimension_numbers = #tpu.dot_dimension_numbers<[1], [0], [0], [1], [0, 0, 1, 1], [], []>} : vector<2x64xf32>, vector<64x1024xf32>, vector<2x1024xf32> -> vector<2x1024xf32>
    %71 = arith.addf %60, %70 : vector<2x1024xf32>
    %c0_26 = arith.constant 0 : index
    %c0_27 = arith.constant 0 : index
    %72 = vector.load %arg7[%c0_26, %c0_27] : memref<1x1024xf32, #tpu.memory_space<vmem>>, vector<1x1024xf32>
    %73 = vector.broadcast %72 : vector<1x1024xf32> to vector<2x1024xf32>
    %74 = arith.addf %71, %73 : vector<2x1024xf32>
    %cst_28 = arith.constant 0.000000e+00 : f32
    %75 = vector.broadcast %cst_28 : f32 to vector<2x1024xf32>
    %76 = arith.maximumf %74, %75 : vector<2x1024xf32>
    %c0_29 = arith.constant 0 : index
    %c0_30 = arith.constant 0 : index
    %77 = vector.load %arg8[%c0_29, %c0_30] : memref<1024x256xf32, #tpu.memory_space<vmem>>, vector<1024x256xf32>
    %cst_31 = arith.constant dense<0.000000e+00> : vector<2x256xf32>
    %78 = tpu.matmul %76, %77, %cst_31 {dimension_numbers = #tpu.dot_dimension_numbers<[1], [0], [0], [1], [0, 0, 1, 1], [], []>} : vector<2x1024xf32>, vector<1024x256xf32>, vector<2x256xf32> -> vector<2x256xf32>
    %c0_32 = arith.constant 0 : index
    %c0_33 = arith.constant 0 : index
    %79 = vector.load %arg9[%c0_32, %c0_33] : memref<1x256xf32, #tpu.memory_space<vmem>>, vector<1x256xf32>
    %80 = vector.broadcast %79 : vector<1x256xf32> to vector<2x256xf32>
    %81 = arith.addf %78, %80 : vector<2x256xf32>
    %cst_34 = arith.constant 0.000000e+00 : f32
    %82 = vector.broadcast %cst_34 : f32 to vector<2x256xf32>
    %83 = arith.maximumf %81, %82 : vector<2x256xf32>
    %c0_35 = arith.constant 0 : index
    %c0_36 = arith.constant 0 : index
    %84 = vector.load %arg10[%c0_35, %c0_36] : memref<256x128xf32, #tpu.memory_space<vmem>>, vector<256x128xf32>
    %cst_37 = arith.constant dense<0.000000e+00> : vector<2x128xf32>
    %85 = tpu.matmul %83, %84, %cst_37 {dimension_numbers = #tpu.dot_dimension_numbers<[1], [0], [0], [1], [0, 0, 1, 1], [], []>} : vector<2x256xf32>, vector<256x128xf32>, vector<2x128xf32> -> vector<2x128xf32>
    %c0_38 = arith.constant 0 : index
    %c0_39 = arith.constant 0 : index
    %86 = vector.load %arg11[%c0_38, %c0_39] : memref<1x128xf32, #tpu.memory_space<vmem>>, vector<1x128xf32>
    %87 = vector.broadcast %86 : vector<1x128xf32> to vector<2x128xf32>
    %88 = arith.addf %85, %87 : vector<2x128xf32>
    %cst_40 = arith.constant 0.000000e+00 : f32
    %89 = vector.broadcast %cst_40 : f32 to vector<2x128xf32>
    %90 = arith.maximumf %88, %89 : vector<2x128xf32>
    %c0_41 = arith.constant 0 : index
    %c0_42 = arith.constant 0 : index
    %91 = vector.load %arg12[%c0_41, %c0_42] : memref<128x128xf32, #tpu.memory_space<vmem>>, vector<128x128xf32>
    %cst_43 = arith.constant dense<0.000000e+00> : vector<2x128xf32>
    %92 = tpu.matmul %90, %91, %cst_43 {dimension_numbers = #tpu.dot_dimension_numbers<[1], [0], [0], [1], [0, 0, 1, 1], [], []>} : vector<2x128xf32>, vector<128x128xf32>, vector<2x128xf32> -> vector<2x128xf32>
    %c0_44 = arith.constant 0 : index
    %c0_45 = arith.constant 0 : index
    %93 = vector.load %arg13[%c0_44, %c0_45] : memref<1x128xf32, #tpu.memory_space<vmem>>, vector<1x128xf32>
    %94 = vector.broadcast %93 : vector<1x128xf32> to vector<2x128xf32>
    %95 = arith.addf %92, %94 : vector<2x128xf32>
    %c0_46 = arith.constant 0 : index
    %c0_47 = arith.constant 0 : index
    %96 = vector.load %arg14[%c0_46, %c0_47] : memref<2x128xf32, #tpu.memory_space<vmem>>, vector<2x128xf32>
    tpu.vector_store %arg14[%c0_46, %c0_47], %95 {strides = array<i32>} : memref<2x128xf32, #tpu.memory_space<vmem>>, vector<2x128xf32>,
    return
  }
  func.func @transform_0(%arg0: i32) -> (i32, i32) {
    %c0_i32 = arith.constant 0 : i32
    %c0_i32_0 = arith.constant 0 : i32
    %c0_i32_1 = arith.constant 0 : i32
    return %c0_i32, %c0_i32_0 : i32, i32
  }
  func.func @transform_1(%arg0: i32) -> (i32, i32) {
    %c0_i32 = arith.constant 0 : i32
    %c0_i32_0 = arith.constant 0 : i32
    %c0_i32_1 = arith.constant 0 : i32
    return %c0_i32, %c0_i32_0 : i32, i32
  }
  func.func @transform_2(%arg0: i32) -> (i32, i32) {
    %c0_i32 = arith.constant 0 : i32
    %c0_i32_0 = arith.constant 0 : i32
    %c0_i32_1 = arith.constant 0 : i32
    return %c0_i32, %c0_i32_0 : i32, i32
  }
  func.func @transform_3(%arg0: i32) -> (i32, i32) {
    %c0_i32 = arith.constant 0 : i32
    %c0_i32_0 = arith.constant 0 : i32
    %c0_i32_1 = arith.constant 0 : i32
    return %c0_i32, %c0_i32_0 : i32, i32
  }
  func.func @transform_4(%arg0: i32) -> (i32, i32) {
    %c0_i32 = arith.constant 0 : i32
    %c0_i32_0 = arith.constant 0 : i32
    %c0_i32_1 = arith.constant 0 : i32
    return %c0_i32, %c0_i32_0 : i32, i32
  }
  func.func @transform_5(%arg0: i32) -> (i32, i32, i32) {
    %c0_i32 = arith.constant 0 : i32
    %c0_i32_0 = arith.constant 0 : i32
    %c0_i32_1 = arith.constant 0 : i32
    %c0_i32_2 = arith.constant 0 : i32
    return %c0_i32, %c0_i32_0, %c0_i32_1 : i32, i32, i32
  }
  func.func @transform_6(%arg0: i32) -> (i32, i32) {
    %c0_i32 = arith.constant 0 : i32
    %c0_i32_0 = arith.constant 0 : i32
    %c0_i32_1 = arith.constant 0 : i32
    return %c0_i32, %c0_i32_0 : i32, i32
  }
  func.func @transform_7(%arg0: i32) -> (i32, i32) {
    %c0_i32 = arith.constant 0 : i32
    %c0_i32_0 = arith.constant 0 : i32
    %c0_i32_1 = arith.constant 0 : i32
    return %c0_i32, %c0_i32_0 : i32, i32
  }
  func.func @transform_8(%arg0: i32) -> (i32, i32) {
    %c0_i32 = arith.constant 0 : i32
    %c0_i32_0 = arith.constant 0 : i32
    %c0_i32_1 = arith.constant 0 : i32
    return %c0_i32, %c0_i32_0 : i32, i32
  }
  func.func @transform_9(%arg0: i32) -> (i32, i32) {
    %c0_i32 = arith.constant 0 : i32
    %c0_i32_0 = arith.constant 0 : i32
    %c0_i32_1 = arith.constant 0 : i32
    return %c0_i32, %c0_i32_0 : i32, i32
  }
  func.func @transform_10(%arg0: i32) -> (i32, i32) {
    %c0_i32 = arith.constant 0 : i32
    %c0_i32_0 = arith.constant 0 : i32
    %c0_i32_1 = arith.constant 0 : i32
    return %c0_i32, %c0_i32_0 : i32, i32
  }
  func.func @transform_11(%arg0: i32) -> (i32, i32) {
    %c0_i32 = arith.constant 0 : i32
    %c0_i32_0 = arith.constant 0 : i32
    %c0_i32_1 = arith.constant 0 : i32
    return %c0_i32, %c0_i32_0 : i32, i32
  }
  func.func @transform_12(%arg0: i32) -> (i32, i32) {
    %c0_i32 = arith.constant 0 : i32
    %c0_i32_0 = arith.constant 0 : i32
    %c0_i32_1 = arith.constant 0 : i32
    return %c0_i32, %c0_i32_0 : i32, i32
  }
  func.func @transform_13(%arg0: i32) -> (i32, i32) {
    %c0_i32 = arith.constant 0 : i32
    %c0_i32_0 = arith.constant 0 : i32
    %c0_i32_1 = arith.constant 0 : i32
    return %c0_i32, %c0_i32_0 : i32, i32
  }
}

</mosaic_0001>

<llo_original>
// kernel: voxelnet_forward.1
$region0: #{voxelnet_forward.1}
  #allocation0 [shape = 'u32[]', space=smem, size = 0x4, offset = 0x4, fixed_abs, tag = 'smem constant byte address 0x4 - core index']
  #allocation1 [shape = 'u32[144,128]{1,0:T(1,128)}', space=vmem, size = 0x12000, scoped, tag = 'internal scratch']
  %s0 = inlined_call_operand.vmem [shape: f32[6,256], index: 0, kind: input, shape index: {}]
  %s1 = inlined_call_operand.vmem [shape: f32[4,6], index: 1, kind: input, shape index: {}]
  %s2 = inlined_call_operand.vmem [shape: f32[4,1], index: 2, kind: input, shape index: {}]
  %s3 = inlined_call_operand.vmem [shape: f32[4,4], index: 3, kind: input, shape index: {}]
  %s4 = inlined_call_operand.vmem [shape: f32[4,1], index: 4, kind: input, shape index: {}]
  %s5 = inlined_call_operand.hbm [shape: f32[4,64,1024], index: 5, kind: input, shape index: {}]
  %s6 = inlined_call_operand.vmem [shape: f32[1,1024], index: 6, kind: input, shape index: {}]
  %s7 = inlined_call_operand.hbm [shape: f32[1024,256], index: 7, kind: input, shape index: {}]
  %s8 = inlined_call_operand.vmem [shape: f32[1,256], index: 8, kind: input, shape index: {}]
  %s9 = inlined_call_operand.vmem [shape: f32[256,128], index: 9, kind: input, shape index: {}]
  %s10 = inlined_call_operand.vmem [shape: f32[1,128], index: 10, kind: input, shape index: {}]
  %s11 = inlined_call_operand.hbm [shape: f32[128,128], index: 11, kind: input, shape index: {}]
  %s12 = inlined_call_operand.vmem [shape: f32[1,128], index: 12, kind: input, shape index: {}]
  %s13 = inlined_call_operand.hbm [shape: f32[2,128], index: 13, kind: output, shape index: {}]
  %s14 = sld [smem:[#allocation0]]
  $region74: #{voxelnet_forward.1} parent=0
    _
  %s16 = ssub.s32 1, %s14
  %s17 = scalar_select 0, %s16, %s14
  $region1: #{voxelnet_forward.1} parent=0
    #allocation2 [shape = 'u8[1048576]{0}', space=vmem, size = 0x100000, scoped, tag = 'input window, operand 5, single buffered']
    #allocation3 [shape = 's32[1]{0}', space=sflag, size = 0x4, scoped, tag = 'scoped memory for voxelnet_forward.1']
    #allocation4 [shape = 's32[1]{0}', space=sflag, size = 0x4, scoped, tag = 'scoped memory for voxelnet_forward.1']
    #allocation5 [shape = 'u8[1048576]{0}', space=vmem, size = 0x100000, scoped, tag = 'input window, operand 7, single buffered']
    #allocation6 [shape = 's32[1]{0}', space=sflag, size = 0x4, scoped, tag = 'scoped memory for voxelnet_forward.1']
    #allocation7 [shape = 'u8[65536]{0}', space=vmem, size = 0x10000, scoped, tag = 'input window, operand 11, single buffered']
    #allocation8 [shape = 'u8[1024]{0}', space=vmem, size = 0x400, scoped, tag = 'output window, operand 0, single buffered']
    %18 = vsyncpa [#allocation3], 0
    %19 = vsyncpa [#allocation6], 0
    %20 = vsyncpa [#allocation4], 0
    // Predicated region
    $region2: #{voxelnet_forward.1} parent=1 // pred_check
      _
    $region3: #{voxelnet_forward.1} parent=1 // pred_check_branch
      %22 = sbr.rel (0) target = $region5
    $region4: #{voxelnet_forward.1} parent=1 // pred_region
      _
    $region5: #{voxelnet_forward.1} parent=1 // pred_fallthru
      _
    // Predicated region
    $region6: #{voxelnet_forward.1} parent=1 // pred_check
      _
    $region7: #{voxelnet_forward.1} parent=1 // pred_check_branch
      %24 = sbr.rel (0) target = $region9
    $region8: #{voxelnet_forward.1} parent=1 // pred_region
      _
    $region9: #{voxelnet_forward.1} parent=1 // pred_fallthru
      _
    // Predicated region
    $region10: #{voxelnet_forward.1} parent=1 // pred_check
      _
    $region11: #{voxelnet_forward.1} parent=1 // pred_check_branch
      %26 = sbr.rel (0) target = $region13
    $region12: #{voxelnet_forward.1} parent=1 // pred_region
      _
    $region13: #{voxelnet_forward.1} parent=1 // pred_fallthru
      _
    // Predicated region
    $region14: #{voxelnet_forward.1} parent=1 // pred_check
      _
    $region15: #{voxelnet_forward.1} parent=1 // pred_check_branch
      %28 = sbr.rel (0) target = $region17
    $region16: #{voxelnet_forward.1} parent=1 // pred_region
      _
    $region17: #{voxelnet_forward.1} parent=1 // pred_fallthru
      _
    // Predicated region
    $region18: #{voxelnet_forward.1} parent=1 // pred_check
      _
    $region19: #{voxelnet_forward.1} parent=1 // pred_check_branch
      %30 = sbr.rel (0) target = $region21
    $region20: #{voxelnet_forward.1} parent=1 // pred_region
      _
    $region21: #{voxelnet_forward.1} parent=1 // pred_fallthru
      _
    // Predicated region
    $region22: #{voxelnet_forward.1} parent=1 // pred_check
      _
    $region23: #{voxelnet_forward.1} parent=1 // pred_check_branch
      %32 = sbr.rel (0) target = $region25
    $region24: #{voxelnet_forward.1} parent=1 // pred_region
      %s34 = ssub.s32 32768, 32768
      %35 = vsyncadd [#allocation3], %s34
      %s36 = sshll.u32 [#allocation2], 4
      %s37 = int_to_ptr.vmem [resolvable:$true] %s36
      %42 = dma.hbm_to_vmem [thread:$0]  %s5, 32768, %s37, [#allocation3], 1024, 1024, 64
    $region25: #{voxelnet_forward.1} parent=1 // pred_fallthru
      _
    // Predicated region
    $region26: #{voxelnet_forward.1} parent=1 // pred_check
      _
    $region27: #{voxelnet_forward.1} parent=1 // pred_check_branch
      %44 = sbr.rel (0) target = $region29
    $region28: #{voxelnet_forward.1} parent=1 // pred_region
      _
    $region29: #{voxelnet_forward.1} parent=1 // pred_fallthru
      _
    // Predicated region
    $region30: #{voxelnet_forward.1} parent=1 // pred_check
      _
    $region31: #{voxelnet_forward.1} parent=1 // pred_check_branch
      %46 = sbr.rel (0) target = $region33
    $region32: #{voxelnet_forward.1} parent=1 // pred_region
      %s48 = ssub.s32 32768, 32768
      %49 = vsyncadd [#allocation6], %s48
      %s50 = sshll.u32 [#allocation5], 4
      %s51 = int_to_ptr.vmem [resolvable:$true] %s50
      %56 = dma.hbm_to_vmem [thread:$0]  %s7, 32768, %s51, [#allocation6], 256, 256, 16
    $region33: #{voxelnet_forward.1} parent=1 // pred_fallthru
      _
    // Predicated region
    $region34: #{voxelnet_forward.1} parent=1 // pred_check
      _
    $region35: #{voxelnet_forward.1} parent=1 // pred_check_branch
      %58 = sbr.rel (0) target = $region37
    $region36: #{voxelnet_forward.1} parent=1 // pred_region
      _
    $region37: #{voxelnet_forward.1} parent=1 // pred_fallthru
      _
    // Predicated region
    $region38: #{voxelnet_forward.1} parent=1 // pred_check
      _
    $region39: #{voxelnet_forward.1} parent=1 // pred_check_branch
      %60 = sbr.rel (0) target = $region41
    $region40: #{voxelnet_forward.1} parent=1 // pred_region
      _
    $region41: #{voxelnet_forward.1} parent=1 // pred_fallthru
      _
    // Predicated region
    $region42: #{voxelnet_forward.1} parent=1 // pred_check
      _
    $region43: #{voxelnet_forward.1} parent=1 // pred_check_branch
      %62 = sbr.rel (0) target = $region45
    $region44: #{voxelnet_forward.1} parent=1 // pred_region
      _
    $region45: #{voxelnet_forward.1} parent=1 // pred_fallthru
      _
    // Predicated region
    $region46: #{voxelnet_forward.1} parent=1 // pred_check
      _
    $region47: #{voxelnet_forward.1} parent=1 // pred_check_branch
      %64 = sbr.rel (0) target = $region49
    $region48: #{voxelnet_forward.1} parent=1 // pred_region
      %s66 = ssub.s32 2048, 2048
      %67 = vsyncadd [#allocation6], %s66
      %s68 = sshll.u32 [#allocation7], 4
      %s69 = int_to_ptr.vmem [resolvable:$true] %s68
      %74 = dma.hbm_to_vmem [thread:$0]  %s11, 2048, %s69, [#allocation6], 128, 128, 8
    $region49: #{voxelnet_forward.1} parent=1 // pred_fallthru
      _
    // Predicated region
    $region50: #{voxelnet_forward.1} parent=1 // pred_check
      _
    $region51: #{voxelnet_forward.1} parent=1 // pred_check_branch
      %76 = sbr.rel (0) target = $region53
    $region52: #{voxelnet_forward.1} parent=1 // pred_region
      _
    $region53: #{voxelnet_forward.1} parent=1 // pred_fallthru
      _
    // Predicated region
    $region54: #{voxelnet_forward.1} parent=1 // pred_check
      _
    $region55: #{voxelnet_forward.1} parent=1 // pred_check_branch
      %78 = sbr.rel (0) target = $region57
    $region56: #{voxelnet_forward.1} parent=1 // pred_region
      %79 = dma.done [#allocation3], 32768
    $region57: #{voxelnet_forward.1} parent=1 // pred_fallthru
      _
    // Predicated region
    $region58: #{voxelnet_forward.1} parent=1 // pred_check
      _
    $region59: #{voxelnet_forward.1} parent=1 // pred_check_branch
      %81 = sbr.rel (0) target = $region61
    $region60: #{voxelnet_forward.1} parent=1 // pred_region
      %82 = dma.done [#allocation6], 32768
    $region61: #{voxelnet_forward.1} parent=1 // pred_fallthru
      _
    // Predicated region
    $region62: #{voxelnet_forward.1} parent=1 // pred_check
      _
    $region63: #{voxelnet_forward.1} parent=1 // pred_check_branch
      %84 = sbr.rel (0) target = $region65
    $region64: #{voxelnet_forward.1} parent=1 // pred_region
      %85 = dma.done [#allocation6], 2048
    $region65: #{voxelnet_forward.1} parent=1 // pred_fallthru
      _
    %v86 = vld [vmem:[%s1] sm:$0xf]
    %v87 = vld [vmem:[%s0] sm:$0x3f]
    %v88 = vld [vmem:[%s0 + $0x8] sm:$0x3f]
    %v89 = vld [vmem:[%s2] sm:$0xf]
    %91 = vset.pattern.permute.xlu0 0
    %92 = vperm.xlu0 %91, %v89
    %v93 = vpop.permute.xlu0 %92
    %vm95 = vcmask 48128
    %v97 = vsel %vm95, %v86, 0
    %vm99 = vcmask 1045504
    %v101 = vsel %vm99, %v87, 0
    %v104 = vsel %vm99, %v88, 0
    %106 = vmatprep.subr.mxu0 %v104
    %107 = vmatpush1.msra.mxu0 %v101
    %108 = vmatprep.subr.mxu0 0.0
    %109 = vmatpush1.msra.mxu0 0.0
    %110 = vmatprep.subr.mxu0 0.0
    %111 = vmatpush1.msra.mxu0 0.0
    %112 = vmatprep.subr.mxu0 0.0
    %113 = vmatpush1.msra.mxu0 0.0
    %114 = vmatprep.subr.mxu0 0.0
    %115 = vmatpush1.msra.mxu0 0.0
    %116 = vmatprep.subr.mxu0 0.0
    %117 = vmatpush1.msra.mxu0 0.0
    %118 = vmatprep.subr.mxu0 0.0
    %119 = vmatpush1.msra.mxu0 0.0
    %120 = vmatprep.subr.mxu0 0.0
    %121 = vmatpush1.msra.mxu0 0.0
    %122 = vmatprep.subr.mxu0 0.0
    %123 = vmatpush1.msra.mxu0 0.0
    %124 = vmatprep.subr.mxu0 0.0
    %125 = vmatpush1.msra.mxu0 0.0
    %126 = vmatprep.subr.mxu0 0.0
    %127 = vmatpush1.msra.mxu0 0.0
    %128 = vmatprep.subr.mxu0 0.0
    %129 = vmatpush1.msra.mxu0 0.0
    %130 = vmatprep.subr.mxu0 0.0
    %131 = vmatpush1.msra.mxu0 0.0
    %132 = vmatprep.subr.mxu0 0.0
    %133 = vmatpush1.msra.mxu0 0.0
    %134 = vmatprep.subr.mxu0 0.0
    %135 = vmatpush1.msra.mxu0 0.0
    %136 = vmatprep.subr.mxu0 0.0
    %137 = vmatpush1.msra.mxu0 0.0
    %138 = vmatprep.subr.mxu0 0.0
    %139 = vmatpush1.msra.mxu0 0.0
    %140 = vmatprep.subr.mxu0 0.0
    %141 = vmatpush1.msra.mxu0 0.0
    %142 = vmatprep.subr.mxu0 0.0
    %143 = vmatpush1.msra.mxu0 0.0
    %144 = vmatprep.subr.mxu0 0.0
    %145 = vmatpush1.msra.mxu0 0.0
    %146 = vmatprep.subr.mxu0 0.0
    %147 = vmatpush1.msra.mxu0 0.0
    %148 = vmatprep.subr.mxu0 0.0
    %149 = vmatpush1.msra.mxu0 0.0
    %150 = vmatprep.subr.mxu0 0.0
    %151 = vmatpush1.msra.mxu0 0.0
    %152 = vmatprep.subr.mxu0 0.0
    %153 = vmatpush1.msra.mxu0 0.0
    %154 = vmatprep.subr.mxu0 0.0
    %155 = vmatpush1.msra.mxu0 0.0
    %156 = vmatprep.subr.mxu0 0.0
    %157 = vmatpush1.msra.mxu0 0.0
    %158 = vmatprep.subr.mxu0 0.0
    %159 = vmatpush1.msra.mxu0 0.0
    %160 = vmatprep.subr.mxu0 0.0
    %161 = vmatpush1.msra.mxu0 0.0
    %162 = vmatprep.subr.mxu0 0.0
    %163 = vmatpush1.msra.mxu0 0.0
    %164 = vmatprep.subr.mxu0 0.0
    %165 = vmatpush1.msra.mxu0 0.0
    %166 = vmatprep.subr.mxu0 0.0
    %167 = vmatpush1.msra.mxu0 0.0
    %168 = vmatprep.subr.mxu0 0.0
    %169 = vmatpush1.msra.mxu0 0.0
    %170 = vmatprep.mubr.f32.mxu0 0.0
    %171 = vmatmul.mubr.f32.gmra.mrb[0].mxu0 %v97
    %v172 = vpop.f32.mrb[0].mxu0
    %v173 = vadd.f32 %v93, %v172
    %v174 = vpop.f32.mrb[0].mxu0
    %v175 = vadd.f32 %v93, %v174
    %176 = vdwg.mxu0
    %v177 = vmax.f32 %v173, 0.0
    %v178 = vmax.f32 %v175, 0.0
    %v179 = vmax.f32 %v177, %v178
    %v180 = vld [vmem:[%s3] sm:$0xf]
    %v181 = vld [vmem:[%s4] sm:$0xf]
    %183 = vset.pattern.permute.xlu0 0
    %184 = vperm.xlu0 %183, %v181
    %v185 = vpop.permute.xlu0 %184
    %vm187 = vcmask 31744
    %v189 = vsel %vm187, %v180, 0
    %vm191 = vcmask 1043456
    %v193 = vsel %vm191, %v179, 0
    %195 = vmatprep.subr.mxu0 0.0
    %196 = vmatpush1.msra.mxu0 %v193
    %197 = vmatprep.subr.mxu0 0.0
    %198 = vmatpush1.msra.mxu0 0.0
    %199 = vmatprep.subr.mxu0 0.0
    %200 = vmatpush1.msra.mxu0 0.0
    %201 = vmatprep.subr.mxu0 0.0
    %202 = vmatpush1.msra.mxu0 0.0
    %203 = vmatprep.subr.mxu0 0.0
    %204 = vmatpush1.msra.mxu0 0.0
    %205 = vmatprep.subr.mxu0 0.0
    %206 = vmatpush1.msra.mxu0 0.0
    %207 = vmatprep.subr.mxu0 0.0
    %208 = vmatpush1.msra.mxu0 0.0
    %209 = vmatprep.subr.mxu0 0.0
    %210 = vmatpush1.msra.mxu0 0.0
    %211 = vmatprep.subr.mxu0 0.0
    %212 = vmatpush1.msra.mxu0 0.0
    %213 = vmatprep.subr.mxu0 0.0
    %214 = vmatpush1.msra.mxu0 0.0
    %215 = vmatprep.subr.mxu0 0.0
    %216 = vmatpush1.msra.mxu0 0.0
    %217 = vmatprep.subr.mxu0 0.0
    %218 = vmatpush1.msra.mxu0 0.0
    %219 = vmatprep.subr.mxu0 0.0
    %220 = vmatpush1.msra.mxu0 0.0
    %221 = vmatprep.subr.mxu0 0.0
    %222 = vmatpush1.msra.mxu0 0.0
    %223 = vmatprep.subr.mxu0 0.0
    %224 = vmatpush1.msra.mxu0 0.0
    %225 = vmatprep.subr.mxu0 0.0
    %226 = vmatpush1.msra.mxu0 0.0
    %227 = vmatprep.subr.mxu0 0.0
    %228 = vmatpush1.msra.mxu0 0.0
    %229 = vmatprep.subr.mxu0 0.0
    %230 = vmatpush1.msra.mxu0 0.0
    %231 = vmatprep.subr.mxu0 0.0
    %232 = vmatpush1.msra.mxu0 0.0
    %233 = vmatprep.subr.mxu0 0.0
    %234 = vmatpush1.msra.mxu0 0.0
    %235 = vmatprep.subr.mxu0 0.0
    %236 = vmatpush1.msra.mxu0 0.0
    %237 = vmatprep.subr.mxu0 0.0
    %238 = vmatpush1.msra.mxu0 0.0
    %239 = vmatprep.subr.mxu0 0.0
    %240 = vmatpush1.msra.mxu0 0.0
    %241 = vmatprep.subr.mxu0 0.0
    %242 = vmatpush1.msra.mxu0 0.0
    %243 = vmatprep.subr.mxu0 0.0
    %244 = vmatpush1.msra.mxu0 0.0
    %245 = vmatprep.subr.mxu0 0.0
    %246 = vmatpush1.msra.mxu0 0.0
    %247 = vmatprep.subr.mxu0 0.0
    %248 = vmatpush1.msra.mxu0 0.0
    %249 = vmatprep.subr.mxu0 0.0
    %250 = vmatpush1.msra.mxu0 0.0
    %251 = vmatprep.subr.mxu0 0.0
    %252 = vmatpush1.msra.mxu0 0.0
    %253 = vmatprep.subr.mxu0 0.0
    %254 = vmatpush1.msra.mxu0 0.0
    %255 = vmatprep.subr.mxu0 0.0
    %256 = vmatpush1.msra.mxu0 0.0
    %257 = vmatprep.subr.mxu0 0.0
    %258 = vmatpush1.msra.mxu0 0.0
    %259 = vmatprep.mubr.f32.mxu0 0.0
    %260 = vmatmul.mubr.f32.gmra.mrb[0].mxu0 %v189
    %v261 = vpop.f32.mrb[0].mxu0
    %v262 = vadd.f32 %v185, %v261
    %v263 = vpop.f32.mrb[0].mxu0
    %264 = vdwg.mxu0
    %v265 = vmax.f32 %v262, 0.0
    %v266 = vlaneseq
    %v267 = vshrl.u32 %v266, 7
    %vm268 = vcmp.eq.s32.totalorder %v267, 0
    %v269 = vsel %vm268, 1, 0
    %v270 = vcvt.s32.f32 %v269
    %vm271 = vcmp.eq.s32.totalorder %v267, 1
    %v272 = vsel %vm271, 1, 0
    %v273 = vcvt.s32.f32 %v272
    %v274 = vlaneseq
    %v275 = vshrl.u32 %v274, 7
    %v276 = vsub.s32 0, %v275
    %v277 = vrot.slane %v265, %v276
    %v278 = vmul.f32 %v270, %v277
    %v279 = vmul.f32 %v273, %v277
    %281 = vrot.lane.b32.xlu0 %v279, 64
    %v282 = vpop.permute.xlu0 %281
    %v284 = vadd.f32 %v278, %v282
    %v285 = vld [vmem:[#allocation2] sm:$0xff]
    %v286 = vld [vmem:[#allocation2 + $0x8] sm:$0xff]
    %v287 = vld [vmem:[#allocation2 + $0x10] sm:$0xff]
    %v288 = vld [vmem:[#allocation2 + $0x18] sm:$0xff]
    %v289 = vld [vmem:[#allocation2 + $0x20] sm:$0xff]
    %v290 = vld [vmem:[#allocation2 + $0x28] sm:$0xff]
    %v291 = vld [vmem:[#allocation2 + $0x30] sm:$0xff]
    %v292 = vld [vmem:[#allocation2 + $0x38] sm:$0xff]
    %v293 = vld [vmem:[#allocation2 + $0x40] sm:$0xff]
    %v294 = vld [vmem:[#allocation2 + $0x48] sm:$0xff]
    %v295 = vld [vmem:[#allocation2 + $0x50] sm:$0xff]
    %v296 = vld [vmem:[#allocation2 + $0x58] sm:$0xff]
    %v297 = vld [vmem:[#allocation2 + $0x60] sm:$0xff]
    %v298 = vld [vmem:[#allocation2 + $0x68] sm:$0xff]
    %v299 = vld [vmem:[#allocation2 + $0x70] sm:$0xff]
    %v300 = vld [vmem:[#allocation2 + $0x78] sm:$0xff]
    %v301 = vld [vmem:[#allocation2 + $0x80] sm:$0xff]
    %v302 = vld [vmem:[#allocation2 + $0x88] sm:$0xff]
    %v303 = vld [vmem:[#allocation2 + $0x90] sm:$0xff]
    %v304 = vld [vmem:[#allocation2 + $0x98] sm:$0xff]
    %v305 = vld [vmem:[#allocation2 + $0xa0] sm:$0xff]
    %v306 = vld [vmem:[#allocation2 + $0xa8] sm:$0xff]
    %v307 = vld [vmem:[#allocation2 + $0xb0] sm:$0xff]
    %v308 = vld [vmem:[#allocation2 + $0xb8] sm:$0xff]
    %v309 = vld [vmem:[#allocation2 + $0xc0] sm:$0xff]
    %v310 = vld [vmem:[#allocation2 + $0xc8] sm:$0xff]
    %v311 = vld [vmem:[#allocation2 + $0xd0] sm:$0xff]
    %v312 = vld [vmem:[#allocation2 + $0xd8] sm:$0xff]
    %v313 = vld [vmem:[#allocation2 + $0xe0] sm:$0xff]
    %v314 = vld [vmem:[#allocation2 + $0xe8] sm:$0xff]
    %v315 = vld [vmem:[#allocation2 + $0xf0] sm:$0xff]
    %v316 = vld [vmem:[#allocation2 + $0xf8] sm:$0xff]
    %v317 = vld [vmem:[#allocation2 + $0x100] sm:$0xff]
    %v318 = vld [vmem:[#allocation2 + $0x108] sm:$0xff]
    %v319 = vld [vmem:[#allocation2 + $0x110] sm:$0xff]
    %v320 = vld [vmem:[#allocation2 + $0x118] sm:$0xff]
    %v321 = vld [vmem:[#allocation2 + $0x120] sm:$0xff]
    %v322 = vld [vmem:[#allocation2 + $0x128] sm:$0xff]
    %v323 = vld [vmem:[#allocation2 + $0x130] sm:$0xff]
    %v324 = vld [vmem:[#allocation2 + $0x138] sm:$0xff]
    %v325 = vld [vmem:[#allocation2 + $0x140] sm:$0xff]
    %v326 = vld [vmem:[#allocation2 + $0x148] sm:$0xff]
    %v327 = vld [vmem:[#allocation2 + $0x150] sm:$0xff]
    %v328 = vld [vmem:[#allocation2 + $0x158] sm:$0xff]
    %v329 = vld [vmem:[#allocation2 + $0x160] sm:$0xff]
    %v330 = vld [vmem:[#allocation2 + $0x168] sm:$0xff]
    %v331 = vld [vmem:[#allocation2 + $0x170] sm:$0xff]
    %v332 = vld [vmem:[#allocation2 + $0x178] sm:$0xff]
    %v333 = vld [vmem:[#allocation2 + $0x180] sm:$0xff]
    %v334 = vld [vmem:[#allocation2 + $0x188] sm:$0xff]
    %v335 = vld [vmem:[#allocation2 + $0x190] sm:$0xff]
    %v336 = vld [vmem:[#allocation2 + $0x198] sm:$0xff]
    %v337 = vld [vmem:[#allocation2 + $0x1a0] sm:$0xff]
    %v338 = vld [vmem:[#allocation2 + $0x1a8] sm:$0xff]
    %v339 = vld [vmem:[#allocation2 + $0x1b0] sm:$0xff]
    %v340 = vld [vmem:[#allocation2 + $0x1b8] sm:$0xff]
    %v341 = vld [vmem:[#allocation2 + $0x1c0] sm:$0xff]
    %v342 = vld [vmem:[#allocation2 + $0x1c8] sm:$0xff]
    %v343 = vld [vmem:[#allocation2 + $0x1d0] sm:$0xff]
    %v344 = vld [vmem:[#allocation2 + $0x1d8] sm:$0xff]
    %v345 = vld [vmem:[#allocation2 + $0x1e0] sm:$0xff]
    %v346 = vld [vmem:[#allocation2 + $0x1e8] sm:$0xff]
    %v347 = vld [vmem:[#allocation2 + $0x1f0] sm:$0xff]
    %v348 = vld [vmem:[#allocation2 + $0x1f8] sm:$0xff]
    %v349 = vlaneseq
    %v350 = vshrl.u32 %v349, 7
    %v351 = vsub.s32 1, %v350
    %v352 = vrot.slane %v265, %v351
    %v353 = vmul.f32 %v270, %v352
    %v354 = vmul.f32 %v273, %v352
    %356 = vrot.lane.b32.xlu0 %v354, 64
    %v357 = vpop.permute.xlu0 %356
    %v359 = vadd.f32 %v353, %v357
    %s360 = scalar_lea.vmem [#allocation2], 512
    %v361 = vld [vmem:[%s360] sm:$0xff]
    %v362 = vld [vmem:[%s360 + $0x8] sm:$0xff]
    %v363 = vld [vmem:[%s360 + $0x10] sm:$0xff]
    %v364 = vld [vmem:[%s360 + $0x18] sm:$0xff]
    %v365 = vld [vmem:[%s360 + $0x20] sm:$0xff]
    %v366 = vld [vmem:[%s360 + $0x28] sm:$0xff]
    %v367 = vld [vmem:[%s360 + $0x30] sm:$0xff]
    %v368 = vld [vmem:[%s360 + $0x38] sm:$0xff]
    %v369 = vld [vmem:[%s360 + $0x40] sm:$0xff]
    %v370 = vld [vmem:[%s360 + $0x48] sm:$0xff]
    %v371 = vld [vmem:[%s360 + $0x50] sm:$0xff]
    %v372 = vld [vmem:[%s360 + $0x58] sm:$0xff]
    %v373 = vld [vmem:[%s360 + $0x60] sm:$0xff]
    %v374 = vld [vmem:[%s360 + $0x68] sm:$0xff]
    %v375 = vld [vmem:[%s360 + $0x70] sm:$0xff]
    %v376 = vld [vmem:[%s360 + $0x78] sm:$0xff]
    %v377 = vld [vmem:[%s360 + $0x80] sm:$0xff]
    %v378 = vld [vmem:[%s360 + $0x88] sm:$0xff]
    %v379 = vld [vmem:[%s360 + $0x90] sm:$0xff]
    %v380 = vld [vmem:[%s360 + $0x98] sm:$0xff]
    %v381 = vld [vmem:[%s360 + $0xa0] sm:$0xff]
    %v382 = vld [vmem:[%s360 + $0xa8] sm:$0xff]
    %v383 = vld [vmem:[%s360 + $0xb0] sm:$0xff]
    %v384 = vld [vmem:[%s360 + $0xb8] sm:$0xff]
    %v385 = vld [vmem:[%s360 + $0xc0] sm:$0xff]
    %v386 = vld [vmem:[%s360 + $0xc8] sm:$0xff]
    %v387 = vld [vmem:[%s360 + $0xd0] sm:$0xff]
    %v388 = vld [vmem:[%s360 + $0xd8] sm:$0xff]
    %v389 = vld [vmem:[%s360 + $0xe0] sm:$0xff]
    %v390 = vld [vmem:[%s360 + $0xe8] sm:$0xff]
    %v391 = vld [vmem:[%s360 + $0xf0] sm:$0xff]
    %v392 = vld [vmem:[%s360 + $0xf8] sm:$0xff]
    %v393 = vld [vmem:[%s360 + $0x100] sm:$0xff]
    %v394 = vld [vmem:[%s360 + $0x108] sm:$0xff]
    %v395 = vld [vmem:[%s360 + $0x110] sm:$0xff]
    %v396 = vld [vmem:[%s360 + $0x118] sm:$0xff]
    %v397 = vld [vmem:[%s360 + $0x120] sm:$0xff]
    %v398 = vld [vmem:[%s360 + $0x128] sm:$0xff]
    %v399 = vld [vmem:[%s360 + $0x130] sm:$0xff]
    %v400 = vld [vmem:[%s360 + $0x138] sm:$0xff]
    %v401 = vld [vmem:[%s360 + $0x140] sm:$0xff]
    %v402 = vld [vmem:[%s360 + $0x148] sm:$0xff]
    %v403 = vld [vmem:[%s360 + $0x150] sm:$0xff]
    %v404 = vld [vmem:[%s360 + $0x158] sm:$0xff]
    %v405 = vld [vmem:[%s360 + $0x160] sm:$0xff]
    %v406 = vld [vmem:[%s360 + $0x168] sm:$0xff]
    %v407 = vld [vmem:[%s360 + $0x170] sm:$0xff]
    %v408 = vld [vmem:[%s360 + $0x178] sm:$0xff]
    %v409 = vld [vmem:[%s360 + $0x180] sm:$0xff]
    %v410 = vld [vmem:[%s360 + $0x188] sm:$0xff]
    %v411 = vld [vmem:[%s360 + $0x190] sm:$0xff]
    %v412 = vld [vmem:[%s360 + $0x198] sm:$0xff]
    %v413 = vld [vmem:[%s360 + $0x1a0] sm:$0xff]
    %v414 = vld [vmem:[%s360 + $0x1a8] sm:$0xff]
    %v415 = vld [vmem:[%s360 + $0x1b0] sm:$0xff]
    %v416 = vld [vmem:[%s360 + $0x1b8] sm:$0xff]
    %v417 = vld [vmem:[%s360 + $0x1c0] sm:$0xff]
    %v418 = vld [vmem:[%s360 + $0x1c8] sm:$0xff]
    %v419 = vld [vmem:[%s360 + $0x1d0] sm:$0xff]
    %v420 = vld [vmem:[%s360 + $0x1d8] sm:$0xff]
    %v421 = vld [vmem:[%s360 + $0x1e0] sm:$0xff]
    %v422 = vld [vmem:[%s360 + $0x1e8] sm:$0xff]
    %v423 = vld [vmem:[%s360 + $0x1f0] sm:$0xff]
    %v424 = vld [vmem:[%s360 + $0x1f8] sm:$0xff]
    %vm425 = vcmask 523264
    %v427 = vsel %vm425, %v359, 0
    %429 = vmatprep.subr.mxu0 %v362
    %430 = vmatpush1.msra.mxu0 %v361
    %431 = vmatprep.subr.mxu0 %v370
    %432 = vmatpush1.msra.mxu0 %v369
    %433 = vmatprep.subr.mxu0 %v378
    %434 = vmatpush1.msra.mxu0 %v377
    %435 = vmatprep.subr.mxu0 %v386
    %436 = vmatpush1.msra.mxu0 %v385
    %437 = vmatprep.subr.mxu0 %v394
    %438 = vmatpush1.msra.mxu0 %v393
    %439 = vmatprep.subr.mxu0 %v402
    %440 = vmatpush1.msra.mxu0 %v401
    %441 = vmatprep.subr.mxu0 %v410
    %442 = vmatpush1.msra.mxu0 %v409
    %443 = vmatprep.subr.mxu0 %v418
    %444 = vmatpush1.msra.mxu0 %v417
    %445 = vmatprep.subr.mxu0 0.0
    %446 = vmatpush1.msra.mxu0 0.0
    %447 = vmatprep.subr.mxu0 0.0
    %448 = vmatpush1.msra.mxu0 0.0
    %449 = vmatprep.subr.mxu0 0.0
    %450 = vmatpush1.msra.mxu0 0.0
    %451 = vmatprep.subr.mxu0 0.0
    %452 = vmatpush1.msra.mxu0 0.0
    %453 = vmatprep.subr.mxu0 0.0
    %454 = vmatpush1.msra.mxu0 0.0
    %455 = vmatprep.subr.mxu0 0.0
    %456 = vmatpush1.msra.mxu0 0.0
    %457 = vmatprep.subr.mxu0 0.0
    %458 = vmatpush1.msra.mxu0 0.0
    %459 = vmatprep.subr.mxu0 0.0
    %460 = vmatpush1.msra.mxu0 0.0
    %461 = vmatprep.subr.mxu0 0.0
    %462 = vmatpush1.msra.mxu0 0.0
    %463 = vmatprep.subr.mxu0 0.0
    %464 = vmatpush1.msra.mxu0 0.0
    %465 = vmatprep.subr.mxu0 0.0
    %466 = vmatpush1.msra.mxu0 0.0
    %467 = vmatprep.subr.mxu0 0.0
    %468 = vmatpush1.msra.mxu0 0.0
    %469 = vmatprep.subr.mxu0 0.0
    %470 = vmatpush1.msra.mxu0 0.0
    %471 = vmatprep.subr.mxu0 0.0
    %472 = vmatpush1.msra.mxu0 0.0
    %473 = vmatprep.subr.mxu0 0.0
    %474 = vmatpush1.msra.mxu0 0.0
    %475 = vmatprep.subr.mxu0 0.0
    %476 = vmatpush1.msra.mxu0 0.0
    %477 = vmatprep.subr.mxu0 0.0
    %478 = vmatpush1.msra.mxu0 0.0
    %479 = vmatprep.subr.mxu0 0.0
    %480 = vmatpush1.msra.mxu0 0.0
    %481 = vmatprep.subr.mxu0 0.0
    %482 = vmatpush1.msra.mxu0 0.0
    %483 = vmatprep.subr.mxu0 0.0
    %484 = vmatpush1.msra.mxu0 0.0
    %485 = vmatprep.subr.mxu0 0.0
    %486 = vmatpush1.msra.mxu0 0.0
    %487 = vmatprep.subr.mxu0 0.0
    %488 = vmatpush1.msra.mxu0 0.0
    %489 = vmatprep.subr.mxu0 0.0
    %490 = vmatpush1.msra.mxu0 0.0
    %491 = vmatprep.subr.mxu0 0.0
    %492 = vmatpush1.msra.mxu0 0.0
    %493 = vmatprep.mubr.f32.mxu0 0.0
    %494 = vmatmul.mubr.f32.gmra.mrb[0].mxu0 %v427
    %v495 = vpop.f32.mrb[0].mxu0
    %v496 = vadd.f32 0.0, %v495
    %v497 = vpop.f32.mrb[0].mxu0
    %v498 = vadd.f32 0.0, %v497
    %499 = vdwg.mxu0
    %500 = vmatprep.subr.mxu0 %v364
    %501 = vmatpush1.msra.mxu0 %v363
    %502 = vmatprep.subr.mxu0 %v372
    %503 = vmatpush1.msra.mxu0 %v371
    %504 = vmatprep.subr.mxu0 %v380
    %505 = vmatpush1.msra.mxu0 %v379
    %506 = vmatprep.subr.mxu0 %v388
    %507 = vmatpush1.msra.mxu0 %v387
    %508 = vmatprep.subr.mxu0 %v396
    %509 = vmatpush1.msra.mxu0 %v395
    %510 = vmatprep.subr.mxu0 %v404
    %511 = vmatpush1.msra.mxu0 %v403
    %512 = vmatprep.subr.mxu0 %v412
    %513 = vmatpush1.msra.mxu0 %v411
    %514 = vmatprep.subr.mxu0 %v420
    %515 = vmatpush1.msra.mxu0 %v419
    %516 = vmatprep.subr.mxu0 0.0
    %517 = vmatpush1.msra.mxu0 0.0
    %518 = vmatprep.subr.mxu0 0.0
    %519 = vmatpush1.msra.mxu0 0.0
    %520 = vmatprep.subr.mxu0 0.0
    %521 = vmatpush1.msra.mxu0 0.0
    %522 = vmatprep.subr.mxu0 0.0
    %523 = vmatpush1.msra.mxu0 0.0
    %524 = vmatprep.subr.mxu0 0.0
    %525 = vmatpush1.msra.mxu0 0.0
    %526 = vmatprep.subr.mxu0 0.0
    %527 = vmatpush1.msra.mxu0 0.0
    %528 = vmatprep.subr.mxu0 0.0
    %529 = vmatpush1.msra.mxu0 0.0
    %530 = vmatprep.subr.mxu0 0.0
    %531 = vmatpush1.msra.mxu0 0.0
    %532 = vmatprep.subr.mxu0 0.0
    %533 = vmatpush1.msra.mxu0 0.0
    %534 = vmatprep.subr.mxu0 0.0
    %535 = vmatpush1.msra.mxu0 0.0
    %536 = vmatprep.subr.mxu0 0.0
    %537 = vmatpush1.msra.mxu0 0.0
    %538 = vmatprep.subr.mxu0 0.0
    %539 = vmatpush1.msra.mxu0 0.0
    %540 = vmatprep.subr.mxu0 0.0
    %541 = vmatpush1.msra.mxu0 0.0
    %542 = vmatprep.subr.mxu0 0.0
    %543 = vmatpush1.msra.mxu0 0.0
    %544 = vmatprep.subr.mxu0 0.0
    %545 = vmatpush1.msra.mxu0 0.0
    %546 = vmatprep.subr.mxu0 0.0
    %547 = vmatpush1.msra.mxu0 0.0
    %548 = vmatprep.subr.mxu0 0.0
    %549 = vmatpush1.msra.mxu0 0.0
    %550 = vmatprep.subr.mxu0 0.0
    %551 = vmatpush1.msra.mxu0 0.0
    %552 = vmatprep.subr.mxu0 0.0
    %553 = vmatpush1.msra.mxu0 0.0
    %554 = vmatprep.subr.mxu0 0.0
    %555 = vmatpush1.msra.mxu0 0.0
    %556 = vmatprep.subr.mxu0 0.0
    %557 = vmatpush1.msra.mxu0 0.0
    %558 = vmatprep.subr.mxu0 0.0
    %559 = vmatpush1.msra.mxu0 0.0
    %560 = vmatprep.subr.mxu0 0.0
    %561 = vmatpush1.msra.mxu0 0.0
    %562 = vmatprep.subr.mxu0 0.0
    %563 = vmatpush1.msra.mxu0 0.0
    %564 = vmatprep.mubr.f32.mxu0 0.0
    %565 = vmatmul.mubr.f32.gmra.mrb[0].mxu0 %v427
    %v566 = vpop.f32.mrb[0].mxu0
    %v567 = vadd.f32 0.0, %v566
    %v568 = vpop.f32.mrb[0].mxu0
    %v569 = vadd.f32 0.0, %v568
    %570 = vdwg.mxu0
    %571 = vmatprep.subr.mxu0 %v366
    %572 = vmatpush1.msra.mxu0 %v365
    %573 = vmatprep.subr.mxu0 %v374
    %574 = vmatpush1.msra.mxu0 %v373
    %575 = vmatprep.subr.mxu0 %v382
    %576 = vmatpush1.msra.mxu0 %v381
    %577 = vmatprep.subr.mxu0 %v390
    %578 = vmatpush1.msra.mxu0 %v389
    %579 = vmatprep.subr.mxu0 %v398
    %580 = vmatpush1.msra.mxu0 %v397
    %581 = vmatprep.subr.mxu0 %v406
    %582 = vmatpush1.msra.mxu0 %v405
    %583 = vmatprep.subr.mxu0 %v414
    %584 = vmatpush1.msra.mxu0 %v413
    %585 = vmatprep.subr.mxu0 %v422
    %586 = vmatpush1.msra.mxu0 %v421
    %587 = vmatprep.subr.mxu0 0.0
    %588 = vmatpush1.msra.mxu0 0.0
    %589 = vmatprep.subr.mxu0 0.0
    %590 = vmatpush1.msra.mxu0 0.0
    %591 = vmatprep.subr.mxu0 0.0
    %592 = vmatpush1.msra.mxu0 0.0
    %593 = vmatprep.subr.mxu0 0.0
    %594 = vmatpush1.msra.mxu0 0.0
    %595 = vmatprep.subr.mxu0 0.0
    %596 = vmatpush1.msra.mxu0 0.0
    %597 = vmatprep.subr.mxu0 0.0
    %598 = vmatpush1.msra.mxu0 0.0
    %599 = vmatprep.subr.mxu0 0.0
    %600 = vmatpush1.msra.mxu0 0.0
    %601 = vmatprep.subr.mxu0 0.0
    %602 = vmatpush1.msra.mxu0 0.0
    %603 = vmatprep.subr.mxu0 0.0
    %604 = vmatpush1.msra.mxu0 0.0
    %605 = vmatprep.subr.mxu0 0.0
    %606 = vmatpush1.msra.mxu0 0.0
    %607 = vmatprep.subr.mxu0 0.0
    %608 = vmatpush1.msra.mxu0 0.0
    %609 = vmatprep.subr.mxu0 0.0
    %610 = vmatpush1.msra.mxu0 0.0
    %611 = vmatprep.subr.mxu0 0.0
    %612 = vmatpush1.msra.mxu0 0.0
    %613 = vmatprep.subr.mxu0 0.0
    %614 = vmatpush1.msra.mxu0 0.0
    %615 = vmatprep.subr.mxu0 0.0
    %616 = vmatpush1.msra.mxu0 0.0
    %617 = vmatprep.subr.mxu0 0.0
    %618 = vmatpush1.msra.mxu0 0.0
    %619 = vmatprep.subr.mxu0 0.0
    %620 = vmatpush1.msra.mxu0 0.0
    %621 = vmatprep.subr.mxu0 0.0
    %622 = vmatpush1.msra.mxu0 0.0
    %623 = vmatprep.subr.mxu0 0.0
    %624 = vmatpush1.msra.mxu0 0.0
    %625 = vmatprep.subr.mxu0 0.0
    %626 = vmatpush1.msra.mxu0 0.0
    %627 = vmatprep.subr.mxu0 0.0
    %628 = vmatpush1.msra.mxu0 0.0
    %629 = vmatprep.subr.mxu0 0.0
    %630 = vmatpush1.msra.mxu0 0.0
    %631 = vmatprep.subr.mxu0 0.0
    %632 = vmatpush1.msra.mxu0 0.0
    %633 = vmatprep.subr.mxu0 0.0
    %634 = vmatpush1.msra.mxu0 0.0
    %635 = vmatprep.mubr.f32.mxu0 0.0
    %636 = vmatmul.mubr.f32.gmra.mrb[0].mxu0 %v427
    %v637 = vpop.f32.mrb[0].mxu0
    %v638 = vadd.f32 0.0, %v637
    %v639 = vpop.f32.mrb[0].mxu0
    %v640 = vadd.f32 0.0, %v639
    %641 = vdwg.mxu0
    %642 = vmatprep.subr.mxu0 %v368
    %643 = vmatpush1.msra.mxu0 %v367
    %644 = vmatprep.subr.mxu0 %v376
    %645 = vmatpush1.msra.mxu0 %v375
    %646 = vmatprep.subr.mxu0 %v384
    %647 = vmatpush1.msra.mxu0 %v383
    %648 = vmatprep.subr.mxu0 %v392
    %649 = vmatpush1.msra.mxu0 %v391
    %650 = vmatprep.subr.mxu0 %v400
    %651 = vmatpush1.msra.mxu0 %v399
    %652 = vmatprep.subr.mxu0 %v408
    %653 = vmatpush1.msra.mxu0 %v407
    %654 = vmatprep.subr.mxu0 %v416
    %655 = vmatpush1.msra.mxu0 %v415
    %656 = vmatprep.subr.mxu0 %v424
    %657 = vmatpush1.msra.mxu0 %v423
    %658 = vmatprep.subr.mxu0 0.0
    %659 = vmatpush1.msra.mxu0 0.0
    %660 = vmatprep.subr.mxu0 0.0
    %661 = vmatpush1.msra.mxu0 0.0
    %662 = vmatprep.subr.mxu0 0.0
    %663 = vmatpush1.msra.mxu0 0.0
    %664 = vmatprep.subr.mxu0 0.0
    %665 = vmatpush1.msra.mxu0 0.0
    %666 = vmatprep.subr.mxu0 0.0
    %667 = vmatpush1.msra.mxu0 0.0
    %668 = vmatprep.subr.mxu0 0.0
    %669 = vmatpush1.msra.mxu0 0.0
    %670 = vmatprep.subr.mxu0 0.0
    %671 = vmatpush1.msra.mxu0 0.0
    %672 = vmatprep.subr.mxu0 0.0
    %673 = vmatpush1.msra.mxu0 0.0
    %674 = vmatprep.subr.mxu0 0.0
    %675 = vmatpush1.msra.mxu0 0.0
    %676 = vmatprep.subr.mxu0 0.0
    %677 = vmatpush1.msra.mxu0 0.0
    %678 = vmatprep.subr.mxu0 0.0
    %679 = vmatpush1.msra.mxu0 0.0
    %680 = vmatprep.subr.mxu0 0.0
    %681 = vmatpush1.msra.mxu0 0.0
    %682 = vmatprep.subr.mxu0 0.0
    %683 = vmatpush1.msra.mxu0 0.0
    %684 = vmatprep.subr.mxu0 0.0
    %685 = vmatpush1.msra.mxu0 0.0
    %686 = vmatprep.subr.mxu0 0.0
    %687 = vmatpush1.msra.mxu0 0.0
    %688 = vmatprep.subr.mxu0 0.0
    %689 = vmatpush1.msra.mxu0 0.0
    %690 = vmatprep.subr.mxu0 0.0
    %691 = vmatpush1.msra.mxu0 0.0
    %692 = vmatprep.subr.mxu0 0.0
    %693 = vmatpush1.msra.mxu0 0.0
    %694 = vmatprep.subr.mxu0 0.0
    %695 = vmatpush1.msra.mxu0 0.0
    %696 = vmatprep.subr.mxu0 0.0
    %697 = vmatpush1.msra.mxu0 0.0
    %698 = vmatprep.subr.mxu0 0.0
    %699 = vmatpush1.msra.mxu0 0.0
    %700 = vmatprep.subr.mxu0 0.0
    %701 = vmatpush1.msra.mxu0 0.0
    %702 = vmatprep.subr.mxu0 0.0
    %703 = vmatpush1.msra.mxu0 0.0
    %704 = vmatprep.subr.mxu0 0.0
    %705 = vmatpush1.msra.mxu0 0.0
    %706 = vmatprep.mubr.f32.mxu0 0.0
    %707 = vmatmul.mubr.f32.gmra.mrb[0].mxu0 %v427
    %v708 = vpop.f32.mrb[0].mxu0
    %v709 = vadd.f32 0.0, %v708
    %v710 = vpop.f32.mrb[0].mxu0
    %v711 = vadd.f32 0.0, %v710
    %712 = vdwg.mxu0
    %v714 = vsel %vm425, %v284, 0
    %716 = vmatprep.subr.mxu0 %v286
    %717 = vmatpush1.msra.mxu0 %v285
    %718 = vmatprep.subr.mxu0 %v294
    %719 = vmatpush1.msra.mxu0 %v293
    %720 = vmatprep.subr.mxu0 %v302
    %721 = vmatpush1.msra.mxu0 %v301
    %722 = vmatprep.subr.mxu0 %v310
    %723 = vmatpush1.msra.mxu0 %v309
    %724 = vmatprep.subr.mxu0 %v318
    %725 = vmatpush1.msra.mxu0 %v317
    %726 = vmatprep.subr.mxu0 %v326
    %727 = vmatpush1.msra.mxu0 %v325
    %728 = vmatprep.subr.mxu0 %v334
    %729 = vmatpush1.msra.mxu0 %v333
    %730 = vmatprep.subr.mxu0 %v342
    %731 = vmatpush1.msra.mxu0 %v341
    %732 = vmatprep.subr.mxu0 0.0
    %733 = vmatpush1.msra.mxu0 0.0
    %734 = vmatprep.subr.mxu0 0.0
    %735 = vmatpush1.msra.mxu0 0.0
    %736 = vmatprep.subr.mxu0 0.0
    %737 = vmatpush1.msra.mxu0 0.0
    %738 = vmatprep.subr.mxu0 0.0
    %739 = vmatpush1.msra.mxu0 0.0
    %740 = vmatprep.subr.mxu0 0.0
    %741 = vmatpush1.msra.mxu0 0.0
    %742 = vmatprep.subr.mxu0 0.0
    %743 = vmatpush1.msra.mxu0 0.0
    %744 = vmatprep.subr.mxu0 0.0
    %745 = vmatpush1.msra.mxu0 0.0
    %746 = vmatprep.subr.mxu0 0.0
    %747 = vmatpush1.msra.mxu0 0.0
    %748 = vmatprep.subr.mxu0 0.0
    %749 = vmatpush1.msra.mxu0 0.0
    %750 = vmatprep.subr.mxu0 0.0
    %751 = vmatpush1.msra.mxu0 0.0
    %752 = vmatprep.subr.mxu0 0.0
    %753 = vmatpush1.msra.mxu0 0.0
    %754 = vmatprep.subr.mxu0 0.0
    %755 = vmatpush1.msra.mxu0 0.0
    %756 = vmatprep.subr.mxu0 0.0
    %757 = vmatpush1.msra.mxu0 0.0
    %758 = vmatprep.subr.mxu0 0.0
    %759 = vmatpush1.msra.mxu0 0.0
    %760 = vmatprep.subr.mxu0 0.0
    %761 = vmatpush1.msra.mxu0 0.0
    %762 = vmatprep.subr.mxu0 0.0
    %763 = vmatpush1.msra.mxu0 0.0
    %764 = vmatprep.subr.mxu0 0.0
    %765 = vmatpush1.msra.mxu0 0.0
    %766 = vmatprep.subr.mxu0 0.0
    %767 = vmatpush1.msra.mxu0 0.0
    %768 = vmatprep.subr.mxu0 0.0
    %769 = vmatpush1.msra.mxu0 0.0
    %770 = vmatprep.subr.mxu0 0.0
    %771 = vmatpush1.msra.mxu0 0.0
    %772 = vmatprep.subr.mxu0 0.0
    %773 = vmatpush1.msra.mxu0 0.0
    %774 = vmatprep.subr.mxu0 0.0
    %775 = vmatpush1.msra.mxu0 0.0
    %776 = vmatprep.subr.mxu0 0.0
    %777 = vmatpush1.msra.mxu0 0.0
    %778 = vmatprep.subr.mxu0 0.0
    %779 = vmatpush1.msra.mxu0 0.0
    %780 = vmatprep.mubr.f32.mxu0 0.0
    %781 = vmatmul.mubr.f32.gmra.mrb[0].mxu0 %v714
    %v782 = vpop.f32.mrb[0].mxu0
    %v783 = vadd.f32 %v496, %v782
    %v784 = vpop.f32.mrb[0].mxu0
    %v785 = vadd.f32 %v498, %v784
    %786 = vdwg.mxu0
    %787 = vmatprep.subr.mxu0 %v288
    %788 = vmatpush1.msra.mxu0 %v287
    %789 = vmatprep.subr.mxu0 %v296
    %790 = vmatpush1.msra.mxu0 %v295
    %791 = vmatprep.subr.mxu0 %v304
    %792 = vmatpush1.msra.mxu0 %v303
    %793 = vmatprep.subr.mxu0 %v312
    %794 = vmatpush1.msra.mxu0 %v311
    %795 = vmatprep.subr.mxu0 %v320
    %796 = vmatpush1.msra.mxu0 %v319
    %797 = vmatprep.subr.mxu0 %v328
    %798 = vmatpush1.msra.mxu0 %v327
    %799 = vmatprep.subr.mxu0 %v336
    %800 = vmatpush1.msra.mxu0 %v335
    %801 = vmatprep.subr.mxu0 %v344
    %802 = vmatpush1.msra.mxu0 %v343
    %803 = vmatprep.subr.mxu0 0.0
    %804 = vmatpush1.msra.mxu0 0.0
    %805 = vmatprep.subr.mxu0 0.0
    %806 = vmatpush1.msra.mxu0 0.0
    %807 = vmatprep.subr.mxu0 0.0
    %808 = vmatpush1.msra.mxu0 0.0
    %809 = vmatprep.subr.mxu0 0.0
    %810 = vmatpush1.msra.mxu0 0.0
    %811 = vmatprep.subr.mxu0 0.0
    %812 = vmatpush1.msra.mxu0 0.0
    %813 = vmatprep.subr.mxu0 0.0
    %814 = vmatpush1.msra.mxu0 0.0
    %815 = vmatprep.subr.mxu0 0.0
    %816 = vmatpush1.msra.mxu0 0.0
    %817 = vmatprep.subr.mxu0 0.0
    %818 = vmatpush1.msra.mxu0 0.0
    %819 = vmatprep.subr.mxu0 0.0
    %820 = vmatpush1.msra.mxu0 0.0
    %821 = vmatprep.subr.mxu0 0.0
    %822 = vmatpush1.msra.mxu0 0.0
    %823 = vmatprep.subr.mxu0 0.0
    %824 = vmatpush1.msra.mxu0 0.0
    %825 = vmatprep.subr.mxu0 0.0
    %826 = vmatpush1.msra.mxu0 0.0
    %827 = vmatprep.subr.mxu0 0.0
    %828 = vmatpush1.msra.mxu0 0.0
    %829 = vmatprep.subr.mxu0 0.0
    %830 = vmatpush1.msra.mxu0 0.0
    %831 = vmatprep.subr.mxu0 0.0
    %832 = vmatpush1.msra.mxu0 0.0
    %833 = vmatprep.subr.mxu0 0.0
    %834 = vmatpush1.msra.mxu0 0.0
    %835 = vmatprep.subr.mxu0 0.0
    %836 = vmatpush1.msra.mxu0 0.0
    %837 = vmatprep.subr.mxu0 0.0
    %838 = vmatpush1.msra.mxu0 0.0
    %839 = vmatprep.subr.mxu0 0.0
    %840 = vmatpush1.msra.mxu0 0.0
    %841 = vmatprep.subr.mxu0 0.0
    %842 = vmatpush1.msra.mxu0 0.0
    %843 = vmatprep.subr.mxu0 0.0
    %844 = vmatpush1.msra.mxu0 0.0
    %845 = vmatprep.subr.mxu0 0.0
    %846 = vmatpush1.msra.mxu0 0.0
    %847 = vmatprep.subr.mxu0 0.0
    %848 = vmatpush1.msra.mxu0 0.0
    %849 = vmatprep.subr.mxu0 0.0
    %850 = vmatpush1.msra.mxu0 0.0
    %851 = vmatprep.mubr.f32.mxu0 0.0
    %852 = vmatmul.mubr.f32.gmra.mrb[0].mxu0 %v714
    %v853 = vpop.f32.mrb[0].mxu0
    %v854 = vadd.f32 %v567, %v853
    %v855 = vpop.f32.mrb[0].mxu0
    %v856 = vadd.f32 %v569, %v855
    %857 = vdwg.mxu0
    %858 = vmatprep.subr.mxu0 %v290
    %859 = vmatpush1.msra.mxu0 %v289
    %860 = vmatprep.subr.mxu0 %v298
    %861 = vmatpush1.msra.mxu0 %v297
    %862 = vmatprep.subr.mxu0 %v306
    %863 = vmatpush1.msra.mxu0 %v305
    %864 = vmatprep.subr.mxu0 %v314
    %865 = vmatpush1.msra.mxu0 %v313
    %866 = vmatprep.subr.mxu0 %v322
    %867 = vmatpush1.msra.mxu0 %v321
    %868 = vmatprep.subr.mxu0 %v330
    %869 = vmatpush1.msra.mxu0 %v329
    %870 = vmatprep.subr.mxu0 %v338
    %871 = vmatpush1.msra.mxu0 %v337
    %872 = vmatprep.subr.mxu0 %v346
    %873 = vmatpush1.msra.mxu0 %v345
    %874 = vmatprep.subr.mxu0 0.0
    %875 = vmatpush1.msra.mxu0 0.0
    %876 = vmatprep.subr.mxu0 0.0
    %877 = vmatpush1.msra.mxu0 0.0
    %878 = vmatprep.subr.mxu0 0.0
    %879 = vmatpush1.msra.mxu0 0.0
    %880 = vmatprep.subr.mxu0 0.0
    %881 = vmatpush1.msra.mxu0 0.0
    %882 = vmatprep.subr.mxu0 0.0
    %883 = vmatpush1.msra.mxu0 0.0
    %884 = vmatprep.subr.mxu0 0.0
    %885 = vmatpush1.msra.mxu0 0.0
    %886 = vmatprep.subr.mxu0 0.0
    %887 = vmatpush1.msra.mxu0 0.0
    %888 = vmatprep.subr.mxu0 0.0
    %889 = vmatpush1.msra.mxu0 0.0
    %890 = vmatprep.subr.mxu0 0.0
    %891 = vmatpush1.msra.mxu0 0.0
    %892 = vmatprep.subr.mxu0 0.0
    %893 = vmatpush1.msra.mxu0 0.0
    %894 = vmatprep.subr.mxu0 0.0
    %895 = vmatpush1.msra.mxu0 0.0
    %896 = vmatprep.subr.mxu0 0.0
    %897 = vmatpush1.msra.mxu0 0.0
    %898 = vmatprep.subr.mxu0 0.0
    %899 = vmatpush1.msra.mxu0 0.0
    %900 = vmatprep.subr.mxu0 0.0
    %901 = vmatpush1.msra.mxu0 0.0
    %902 = vmatprep.subr.mxu0 0.0
    %903 = vmatpush1.msra.mxu0 0.0
    %904 = vmatprep.subr.mxu0 0.0
    %905 = vmatpush1.msra.mxu0 0.0
    %906 = vmatprep.subr.mxu0 0.0
    %907 = vmatpush1.msra.mxu0 0.0
    %908 = vmatprep.subr.mxu0 0.0
    %909 = vmatpush1.msra.mxu0 0.0
    %910 = vmatprep.subr.mxu0 0.0
    %911 = vmatpush1.msra.mxu0 0.0
    %912 = vmatprep.subr.mxu0 0.0
    %913 = vmatpush1.msra.mxu0 0.0
    %914 = vmatprep.subr.mxu0 0.0
    %915 = vmatpush1.msra.mxu0 0.0
    %916 = vmatprep.subr.mxu0 0.0
    %917 = vmatpush1.msra.mxu0 0.0
    %918 = vmatprep.subr.mxu0 0.0
    %919 = vmatpush1.msra.mxu0 0.0
    %920 = vmatprep.subr.mxu0 0.0
    %921 = vmatpush1.msra.mxu0 0.0
    %922 = vmatprep.mubr.f32.mxu0 0.0
    %923 = vmatmul.mubr.f32.gmra.mrb[0].mxu0 %v714
    %v924 = vpop.f32.mrb[0].mxu0
    %v925 = vadd.f32 %v638, %v924
    %v926 = vpop.f32.mrb[0].mxu0
    %v927 = vadd.f32 %v640, %v926
    %928 = vdwg.mxu0
    %929 = vmatprep.subr.mxu0 %v292
    %930 = vmatpush1.msra.mxu0 %v291
    %931 = vmatprep.subr.mxu0 %v300
    %932 = vmatpush1.msra.mxu0 %v299
    %933 = vmatprep.subr.mxu0 %v308
    %934 = vmatpush1.msra.mxu0 %v307
    %935 = vmatprep.subr.mxu0 %v316
    %936 = vmatpush1.msra.mxu0 %v315
    %937 = vmatprep.subr.mxu0 %v324
    %938 = vmatpush1.msra.mxu0 %v323
    %939 = vmatprep.subr.mxu0 %v332
    %940 = vmatpush1.msra.mxu0 %v331
    %941 = vmatprep.subr.mxu0 %v340
    %942 = vmatpush1.msra.mxu0 %v339
    %943 = vmatprep.subr.mxu0 %v348
    %944 = vmatpush1.msra.mxu0 %v347
    %945 = vmatprep.subr.mxu0 0.0
    %946 = vmatpush1.msra.mxu0 0.0
    %947 = vmatprep.subr.mxu0 0.0
    %948 = vmatpush1.msra.mxu0 0.0
    %949 = vmatprep.subr.mxu0 0.0
    %950 = vmatpush1.msra.mxu0 0.0
    %951 = vmatprep.subr.mxu0 0.0
    %952 = vmatpush1.msra.mxu0 0.0
    %953 = vmatprep.subr.mxu0 0.0
    %954 = vmatpush1.msra.mxu0 0.0
    %955 = vmatprep.subr.mxu0 0.0
    %956 = vmatpush1.msra.mxu0 0.0
    %957 = vmatprep.subr.mxu0 0.0
    %958 = vmatpush1.msra.mxu0 0.0
    %959 = vmatprep.subr.mxu0 0.0
    %960 = vmatpush1.msra.mxu0 0.0
    %961 = vmatprep.subr.mxu0 0.0
    %962 = vmatpush1.msra.mxu0 0.0
    %963 = vmatprep.subr.mxu0 0.0
    %964 = vmatpush1.msra.mxu0 0.0
    %965 = vmatprep.subr.mxu0 0.0
    %966 = vmatpush1.msra.mxu0 0.0
    %967 = vmatprep.subr.mxu0 0.0
    %968 = vmatpush1.msra.mxu0 0.0
    %969 = vmatprep.subr.mxu0 0.0
    %970 = vmatpush1.msra.mxu0 0.0
    %971 = vmatprep.subr.mxu0 0.0
    %972 = vmatpush1.msra.mxu0 0.0
    %973 = vmatprep.subr.mxu0 0.0
    %974 = vmatpush1.msra.mxu0 0.0
    %975 = vmatprep.subr.mxu0 0.0
    %976 = vmatpush1.msra.mxu0 0.0
    %977 = vmatprep.subr.mxu0 0.0
    %978 = vmatpush1.msra.mxu0 0.0
    %979 = vmatprep.subr.mxu0 0.0
    %980 = vmatpush1.msra.mxu0 0.0
    %981 = vmatprep.subr.mxu0 0.0
    %982 = vmatpush1.msra.mxu0 0.0
    %983 = vmatprep.subr.mxu0 0.0
    %984 = vmatpush1.msra.mxu0 0.0
    %985 = vmatprep.subr.mxu0 0.0
    %986 = vmatpush1.msra.mxu0 0.0
    %987 = vmatprep.subr.mxu0 0.0
    %988 = vmatpush1.msra.mxu0 0.0
    %989 = vmatprep.subr.mxu0 0.0
    %990 = vmatpush1.msra.mxu0 0.0
    %991 = vmatprep.subr.mxu0 0.0
    %992 = vmatpush1.msra.mxu0 0.0
    %993 = vmatprep.mubr.f32.mxu0 0.0
    %994 = vmatmul.mubr.f32.gmra.mrb[0].mxu0 %v714
    %v995 = vpop.f32.mrb[0].mxu0
    %v996 = vadd.f32 %v709, %v995
    %v997 = vpop.f32.mrb[0].mxu0
    %v998 = vadd.f32 %v711, %v997
    %999 = vdwg.mxu0
    %v1000 = vlaneseq
    %v1001 = vshrl.u32 %v1000, 7
    %v1002 = vsub.s32 2, %v1001
    %v1003 = vrot.slane %v265, %v1002
    %v1004 = vmul.f32 %v270, %v1003
    %v1005 = vmul.f32 %v273, %v1003
    %1007 = vrot.lane.b32.xlu0 %v1005, 64
    %v1008 = vpop.permute.xlu0 %1007
    %v1010 = vadd.f32 %v1004, %v1008
    %s1011 = scalar_lea.vmem [#allocation2], 1024
    %v1012 = vld [vmem:[%s1011] sm:$0xff]
    %v1013 = vld [vmem:[%s1011 + $0x8] sm:$0xff]
    %v1014 = vld [vmem:[%s1011 + $0x10] sm:$0xff]
    %v1015 = vld [vmem:[%s1011 + $0x18] sm:$0xff]
    %v1016 = vld [vmem:[%s1011 + $0x20] sm:$0xff]
    %v1017 = vld [vmem:[%s1011 + $0x28] sm:$0xff]
    %v1018 = vld [vmem:[%s1011 + $0x30] sm:$0xff]
    %v1019 = vld [vmem:[%s1011 + $0x38] sm:$0xff]
    %v1020 = vld [vmem:[%s1011 + $0x40] sm:$0xff]
    %v1021 = vld [vmem:[%s1011 + $0x48] sm:$0xff]
    %v1022 = vld [vmem:[%s1011 + $0x50] sm:$0xff]
    %v1023 = vld [vmem:[%s1011 + $0x58] sm:$0xff]
    %v1024 = vld [vmem:[%s1011 + $0x60] sm:$0xff]
    %v1025 = vld [vmem:[%s1011 + $0x68] sm:$0xff]
    %v1026 = vld [vmem:[%s1011 + $0x70] sm:$0xff]
    %v1027 = vld [vmem:[%s1011 + $0x78] sm:$0xff]
    %v1028 = vld [vmem:[%s1011 + $0x80] sm:$0xff]
    %v1029 = vld [vmem:[%s1011 + $0x88] sm:$0xff]
    %v1030 = vld [vmem:[%s1011 + $0x90] sm:$0xff]
    %v1031 = vld [vmem:[%s1011 + $0x98] sm:$0xff]
    %v1032 = vld [vmem:[%s1011 + $0xa0] sm:$0xff]
    %v1033 = vld [vmem:[%s1011 + $0xa8] sm:$0xff]
    %v1034 = vld [vmem:[%s1011 + $0xb0] sm:$0xff]
    %v1035 = vld [vmem:[%s1011 + $0xb8] sm:$0xff]
    %v1036 = vld [vmem:[%s1011 + $0xc0] sm:$0xff]
    %v1037 = vld [vmem:[%s1011 + $0xc8] sm:$0xff]
    %v1038 = vld [vmem:[%s1011 + $0xd0] sm:$0xff]
    %v1039 = vld [vmem:[%s1011 + $0xd8] sm:$0xff]
    %v1040 = vld [vmem:[%s1011 + $0xe0] sm:$0xff]
    %v1041 = vld [vmem:[%s1011 + $0xe8] sm:$0xff]
    %v1042 = vld [vmem:[%s1011 + $0xf0] sm:$0xff]
    %v1043 = vld [vmem:[%s1011 + $0xf8] sm:$0xff]
    %v1044 = vld [vmem:[%s1011 + $0x100] sm:$0xff]
    %v1045 = vld [vmem:[%s1011 + $0x108] sm:$0xff]
    %v1046 = vld [vmem:[%s1011 + $0x110] sm:$0xff]
    %v1047 = vld [vmem:[%s1011 + $0x118] sm:$0xff]
    %v1048 = vld [vmem:[%s1011 + $0x120] sm:$0xff]
    %v1049 = vld [vmem:[%s1011 + $0x128] sm:$0xff]
    %v1050 = vld [vmem:[%s1011 + $0x130] sm:$0xff]
    %v1051 = vld [vmem:[%s1011 + $0x138] sm:$0xff]
    %v1052 = vld [vmem:[%s1011 + $0x140] sm:$0xff]
    %v1053 = vld [vmem:[%s1011 + $0x148] sm:$0xff]
    %v1054 = vld [vmem:[%s1011 + $0x150] sm:$0xff]
    %v1055 = vld [vmem:[%s1011 + $0x158] sm:$0xff]
    %v1056 = vld [vmem:[%s1011 + $0x160] sm:$0xff]
    %v1057 = vld [vmem:[%s1011 + $0x168] sm:$0xff]
    %v1058 = vld [vmem:[%s1011 + $0x170] sm:$0xff]
    %v1059 = vld [vmem:[%s1011 + $0x178] sm:$0xff]
    %v1060 = vld [vmem:[%s1011 + $0x180] sm:$0xff]
    %v1061 = vld [vmem:[%s1011 + $0x188] sm:$0xff]
    %v1062 = vld [vmem:[%s1011 + $0x190] sm:$0xff]
    %v1063 = vld [vmem:[%s1011 + $0x198] sm:$0xff]
    %v1064 = vld [vmem:[%s1011 + $0x1a0] sm:$0xff]
    %v1065 = vld [vmem:[%s1011 + $0x1a8] sm:$0xff]
    %v1066 = vld [vmem:[%s1011 + $0x1b0] sm:$0xff]
    %v1067 = vld [vmem:[%s1011 + $0x1b8] sm:$0xff]
    %v1068 = vld [vmem:[%s1011 + $0x1c0] sm:$0xff]
    %v1069 = vld [vmem:[%s1011 + $0x1c8] sm:$0xff]
    %v1070 = vld [vmem:[%s1011 + $0x1d0] sm:$0xff]
    %v1071 = vld [vmem:[%s1011 + $0x1d8] sm:$0xff]
    %v1072 = vld [vmem:[%s1011 + $0x1e0] sm:$0xff]
    %v1073 = vld [vmem:[%s1011 + $0x1e8] sm:$0xff]
    %v1074 = vld [vmem:[%s1011 + $0x1f0] sm:$0xff]
    %v1075 = vld [vmem:[%s1011 + $0x1f8] sm:$0xff]
    %v1077 = vsel %vm425, %v1010, 0
    %1079 = vmatprep.subr.mxu0 %v1013
    %1080 = vmatpush1.msra.mxu0 %v1012
    %1081 = vmatprep.subr.mxu0 %v1021
    %1082 = vmatpush1.msra.mxu0 %v1020
    %1083 = vmatprep.subr.mxu0 %v1029
    %1084 = vmatpush1.msra.mxu0 %v1028
    %1085 = vmatprep.subr.mxu0 %v1037
    %1086 = vmatpush1.msra.mxu0 %v1036
    %1087 = vmatprep.subr.mxu0 %v1045
    %1088 = vmatpush1.msra.mxu0 %v1044
    %1089 = vmatprep.subr.mxu0 %v1053
    %1090 = vmatpush1.msra.mxu0 %v1052
    %1091 = vmatprep.subr.mxu0 %v1061
    %1092 = vmatpush1.msra.mxu0 %v1060
    %1093 = vmatprep.subr.mxu0 %v1069
    %1094 = vmatpush1.msra.mxu0 %v1068
    %1095 = vmatprep.subr.mxu0 0.0
    %1096 = vmatpush1.msra.mxu0 0.0
    %1097 = vmatprep.subr.mxu0 0.0
    %1098 = vmatpush1.msra.mxu0 0.0
    %1099 = vmatprep.subr.mxu0 0.0
    %1100 = vmatpush1.msra.mxu0 0.0
    %1101 = vmatprep.subr.mxu0 0.0
    %1102 = vmatpush1.msra.mxu0 0.0
    %1103 = vmatprep.subr.mxu0 0.0
    %1104 = vmatpush1.msra.mxu0 0.0
    %1105 = vmatprep.subr.mxu0 0.0
    %1106 = vmatpush1.msra.mxu0 0.0
    %1107 = vmatprep.subr.mxu0 0.0
    %1108 = vmatpush1.msra.mxu0 0.0
    %1109 = vmatprep.subr.mxu0 0.0
    %1110 = vmatpush1.msra.mxu0 0.0
    %1111 = vmatprep.subr.mxu0 0.0
    %1112 = vmatpush1.msra.mxu0 0.0
    %1113 = vmatprep.subr.mxu0 0.0
    %1114 = vmatpush1.msra.mxu0 0.0
    %1115 = vmatprep.subr.mxu0 0.0
    %1116 = vmatpush1.msra.mxu0 0.0
    %1117 = vmatprep.subr.mxu0 0.0
    %1118 = vmatpush1.msra.mxu0 0.0
    %1119 = vmatprep.subr.mxu0 0.0
    %1120 = vmatpush1.msra.mxu0 0.0
    %1121 = vmatprep.subr.mxu0 0.0
    %1122 = vmatpush1.msra.mxu0 0.0
    %1123 = vmatprep.subr.mxu0 0.0
    %1124 = vmatpush1.msra.mxu0 0.0
    %1125 = vmatprep.subr.mxu0 0.0
    %1126 = vmatpush1.msra.mxu0 0.0
    %1127 = vmatprep.subr.mxu0 0.0
    %1128 = vmatpush1.msra.mxu0 0.0
    %1129 = vmatprep.subr.mxu0 0.0
    %1130 = vmatpush1.msra.mxu0 0.0
    %1131 = vmatprep.subr.mxu0 0.0
    %1132 = vmatpush1.msra.mxu0 0.0
    %1133 = vmatprep.subr.mxu0 0.0
    %1134 = vmatpush1.msra.mxu0 0.0
    %1135 = vmatprep.subr.mxu0 0.0
    %1136 = vmatpush1.msra.mxu0 0.0
    %1137 = vmatprep.subr.mxu0 0.0
    %1138 = vmatpush1.msra.mxu0 0.0
    %1139 = vmatprep.subr.mxu0 0.0
    %1140 = vmatpush1.msra.mxu0 0.0
    %1141 = vmatprep.subr.mxu0 0.0
    %1142 = vmatpush1.msra.mxu0 0.0
    %1143 = vmatprep.mubr.f32.mxu0 0.0
    %1144 = vmatmul.mubr.f32.gmra.mrb[0].mxu0 %v1077
    %v1145 = vpop.f32.mrb[0].mxu0
    %v1146 = vadd.f32 0.0, %v1145
    %v1147 = vpop.f32.mrb[0].mxu0
    %v1148 = vadd.f32 0.0, %v1147
    %1149 = vdwg.mxu0
    %1150 = vmatprep.subr.mxu0 %v1015
    %1151 = vmatpush1.msra.mxu0 %v1014
    %1152 = vmatprep.subr.mxu0 %v1023
    %1153 = vmatpush1.msra.mxu0 %v1022
    %1154 = vmatprep.subr.mxu0 %v1031
    %1155 = vmatpush1.msra.mxu0 %v1030
    %1156 = vmatprep.subr.mxu0 %v1039
    %1157 = vmatpush1.msra.mxu0 %v1038
    %1158 = vmatprep.subr.mxu0 %v1047
    %1159 = vmatpush1.msra.mxu0 %v1046
    %1160 = vmatprep.subr.mxu0 %v1055
    %1161 = vmatpush1.msra.mxu0 %v1054
    %1162 = vmatprep.subr.mxu0 %v1063
    %1163 = vmatpush1.msra.mxu0 %v1062
    %1164 = vmatprep.subr.mxu0 %v1071
    %1165 = vmatpush1.msra.mxu0 %v1070
    %1166 = vmatprep.subr.mxu0 0.0
    %1167 = vmatpush1.msra.mxu0 0.0
    %1168 = vmatprep.subr.mxu0 0.0
    %1169 = vmatpush1.msra.mxu0 0.0
    %1170 = vmatprep.subr.mxu0 0.0
    %1171 = vmatpush1.msra.mxu0 0.0
    %1172 = vmatprep.subr.mxu0 0.0
    %1173 = vmatpush1.msra.mxu0 0.0
    %1174 = vmatprep.subr.mxu0 0.0
    %1175 = vmatpush1.msra.mxu0 0.0
    %1176 = vmatprep.subr.mxu0 0.0
    %1177 = vmatpush1.msra.mxu0 0.0
    %1178 = vmatprep.subr.mxu0 0.0
    %1179 = vmatpush1.msra.mxu0 0.0
    %1180 = vmatprep.subr.mxu0 0.0
    %1181 = vmatpush1.msra.mxu0 0.0
    %1182 = vmatprep.subr.mxu0 0.0
    %1183 = vmatpush1.msra.mxu0 0.0
    %1184 = vmatprep.subr.mxu0 0.0
    %1185 = vmatpush1.msra.mxu0 0.0
    %1186 = vmatprep.subr.mxu0 0.0
    %1187 = vmatpush1.msra.mxu0 0.0
    %1188 = vmatprep.subr.mxu0 0.0
    %1189 = vmatpush1.msra.mxu0 0.0
    %1190 = vmatprep.subr.mxu0 0.0
    %1191 = vmatpush1.msra.mxu0 0.0
    %1192 = vmatprep.subr.mxu0 0.0
    %1193 = vmatpush1.msra.mxu0 0.0
    %1194 = vmatprep.subr.mxu0 0.0
    %1195 = vmatpush1.msra.mxu0 0.0
    %1196 = vmatprep.subr.mxu0 0.0
    %1197 = vmatpush1.msra.mxu0 0.0
    %1198 = vmatprep.subr.mxu0 0.0
    %1199 = vmatpush1.msra.mxu0 0.0
    %1200 = vmatprep.subr.mxu0 0.0
    %1201 = vmatpush1.msra.mxu0 0.0
    %1202 = vmatprep.subr.mxu0 0.0
    %1203 = vmatpush1.msra.mxu0 0.0
    %1204 = vmatprep.subr.mxu0 0.0
    %1205 = vmatpush1.msra.mxu0 0.0
    %1206 = vmatprep.subr.mxu0 0.0
    %1207 = vmatpush1.msra.mxu0 0.0
    %1208 = vmatprep.subr.mxu0 0.0
    %1209 = vmatpush1.msra.mxu0 0.0
    %1210 = vmatprep.subr.mxu0 0.0
    %1211 = vmatpush1.msra.mxu0 0.0
    %1212 = vmatprep.subr.mxu0 0.0
    %1213 = vmatpush1.msra.mxu0 0.0
    %1214 = vmatprep.mubr.f32.mxu0 0.0
    %1215 = vmatmul.mubr.f32.gmra.mrb[0].mxu0 %v1077
    %v1216 = vpop.f32.mrb[0].mxu0
    %v1217 = vadd.f32 0.0, %v1216
    %v1218 = vpop.f32.mrb[0].mxu0
    %v1219 = vadd.f32 0.0, %v1218
    %1220 = vdwg.mxu0
    %1221 = vmatprep.subr.mxu0 %v1017
    %1222 = vmatpush1.msra.mxu0 %v1016
    %1223 = vmatprep.subr.mxu0 %v1025
    %1224 = vmatpush1.msra.mxu0 %v1024
    %1225 = vmatprep.subr.mxu0 %v1033
    %1226 = vmatpush1.msra.mxu0 %v1032
    %1227 = vmatprep.subr.mxu0 %v1041
    %1228 = vmatpush1.msra.mxu0 %v1040
    %1229 = vmatprep.subr.mxu0 %v1049
    %1230 = vmatpush1.msra.mxu0 %v1048
    %1231 = vmatprep.subr.mxu0 %v1057
    %1232 = vmatpush1.msra.mxu0 %v1056
    %1233 = vmatprep.subr.mxu0 %v1065
    %1234 = vmatpush1.msra.mxu0 %v1064
    %1235 = vmatprep.subr.mxu0 %v1073
    %1236 = vmatpush1.msra.mxu0 %v1072
    %1237 = vmatprep.subr.mxu0 0.0
    %1238 = vmatpush1.msra.mxu0 0.0
    %1239 = vmatprep.subr.mxu0 0.0
    %1240 = vmatpush1.msra.mxu0 0.0
    %1241 = vmatprep.subr.mxu0 0.0
    %1242 = vmatpush1.msra.mxu0 0.0
    %1243 = vmatprep.subr.mxu0 0.0
    %1244 = vmatpush1.msra.mxu0 0.0
    %1245 = vmatprep.subr.mxu0 0.0
    %1246 = vmatpush1.msra.mxu0 0.0
    %1247 = vmatprep.subr.mxu0 0.0
    %1248 = vmatpush1.msra.mxu0 0.0
    %1249 = vmatprep.subr.mxu0 0.0
    %1250 = vmatpush1.msra.mxu0 0.0
    %1251 = vmatprep.subr.mxu0 0.0
    %1252 = vmatpush1.msra.mxu0 0.0
    %1253 = vmatprep.subr.mxu0 0.0
    %1254 = vmatpush1.msra.mxu0 0.0
    %1255 = vmatprep.subr.mxu0 0.0
    %1256 = vmatpush1.msra.mxu0 0.0
    %1257 = vmatprep.subr.mxu0 0.0
    %1258 = vmatpush1.msra.mxu0 0.0
    %1259 = vmatprep.subr.mxu0 0.0
    %1260 = vmatpush1.msra.mxu0 0.0
    %1261 = vmatprep.subr.mxu0 0.0
    %1262 = vmatpush1.msra.mxu0 0.0
    %1263 = vmatprep.subr.mxu0 0.0
    %1264 = vmatpush1.msra.mxu0 0.0
    %1265 = vmatprep.subr.mxu0 0.0
    %1266 = vmatpush1.msra.mxu0 0.0
    %1267 = vmatprep.subr.mxu0 0.0
    %1268 = vmatpush1.msra.mxu0 0.0
    %1269 = vmatprep.subr.mxu0 0.0
    %1270 = vmatpush1.msra.mxu0 0.0
    %1271 = vmatprep.subr.mxu0 0.0
    %1272 = vmatpush1.msra.mxu0 0.0
    %1273 = vmatprep.subr.mxu0 0.0
    %1274 = vmatpush1.msra.mxu0 0.0
    %1275 = vmatprep.subr.mxu0 0.0
    %1276 = vmatpush1.msra.mxu0 0.0
    %1277 = vmatprep.subr.mxu0 0.0
    %1278 = vmatpush1.msra.mxu0 0.0
    %1279 = vmatprep.subr.mxu0 0.0
    %1280 = vmatpush1.msra.mxu0 0.0
    %1281 = vmatprep.subr.mxu0 0.0
    %1282 = vmatpush1.msra.mxu0 0.0
    %1283 = vmatprep.subr.mxu0 0.0
    %1284 = vmatpush1.msra.mxu0 0.0
    %1285 = vmatprep.mubr.f32.mxu0 0.0
    %1286 = vmatmul.mubr.f32.gmra.mrb[0].mxu0 %v1077
    %v1287 = vpop.f32.mrb[0].mxu0
    %v1288 = vadd.f32 0.0, %v1287
    %v1289 = vpop.f32.mrb[0].mxu0
    %v1290 = vadd.f32 0.0, %v1289
    %1291 = vdwg.mxu0
    %1292 = vmatprep.subr.mxu0 %v1019
    %1293 = vmatpush1.msra.mxu0 %v1018
    %1294 = vmatprep.subr.mxu0 %v1027
    %1295 = vmatpush1.msra.mxu0 %v1026
    %1296 = vmatprep.subr.mxu0 %v1035
    %1297 = vmatpush1.msra.mxu0 %v1034
    %1298 = vmatprep.subr.mxu0 %v1043
    %1299 = vmatpush1.msra.mxu0 %v1042
    %1300 = vmatprep.subr.mxu0 %v1051
    %1301 = vmatpush1.msra.mxu0 %v1050
    %1302 = vmatprep.subr.mxu0 %v1059
    %1303 = vmatpush1.msra.mxu0 %v1058
    %1304 = vmatprep.subr.mxu0 %v1067
    %1305 = vmatpush1.msra.mxu0 %v1066
    %1306 = vmatprep.subr.mxu0 %v1075
    %1307 = vmatpush1.msra.mxu0 %v1074
    %1308 = vmatprep.subr.mxu0 0.0
    %1309 = vmatpush1.msra.mxu0 0.0
    %1310 = vmatprep.subr.mxu0 0.0
    %1311 = vmatpush1.msra.mxu0 0.0
    %1312 = vmatprep.subr.mxu0 0.0
    %1313 = vmatpush1.msra.mxu0 0.0
    %1314 = vmatprep.subr.mxu0 0.0
    %1315 = vmatpush1.msra.mxu0 0.0
    %1316 = vmatprep.subr.mxu0 0.0
    %1317 = vmatpush1.msra.mxu0 0.0
    %1318 = vmatprep.subr.mxu0 0.0
    %1319 = vmatpush1.msra.mxu0 0.0
    %1320 = vmatprep.subr.mxu0 0.0
    %1321 = vmatpush1.msra.mxu0 0.0
    %1322 = vmatprep.subr.mxu0 0.0
    %1323 = vmatpush1.msra.mxu0 0.0
    %1324 = vmatprep.subr.mxu0 0.0
    %1325 = vmatpush1.msra.mxu0 0.0
    %1326 = vmatprep.subr.mxu0 0.0
    %1327 = vmatpush1.msra.mxu0 0.0
    %1328 = vmatprep.subr.mxu0 0.0
    %1329 = vmatpush1.msra.mxu0 0.0
    %1330 = vmatprep.subr.mxu0 0.0
    %1331 = vmatpush1.msra.mxu0 0.0
    %1332 = vmatprep.subr.mxu0 0.0
    %1333 = vmatpush1.msra.mxu0 0.0
    %1334 = vmatprep.subr.mxu0 0.0
    %1335 = vmatpush1.msra.mxu0 0.0
    %1336 = vmatprep.subr.mxu0 0.0
    %1337 = vmatpush1.msra.mxu0 0.0
    %1338 = vmatprep.subr.mxu0 0.0
    %1339 = vmatpush1.msra.mxu0 0.0
    %1340 = vmatprep.subr.mxu0 0.0
    %1341 = vmatpush1.msra.mxu0 0.0
    %1342 = vmatprep.subr.mxu0 0.0
    %1343 = vmatpush1.msra.mxu0 0.0
    %1344 = vmatprep.subr.mxu0 0.0
    %1345 = vmatpush1.msra.mxu0 0.0
    %1346 = vmatprep.subr.mxu0 0.0
    %1347 = vmatpush1.msra.mxu0 0.0
    %1348 = vmatprep.subr.mxu0 0.0
    %1349 = vmatpush1.msra.mxu0 0.0
    %1350 = vmatprep.subr.mxu0 0.0
    %1351 = vmatpush1.msra.mxu0 0.0
    %1352 = vmatprep.subr.mxu0 0.0
    %1353 = vmatpush1.msra.mxu0 0.0
    %1354 = vmatprep.subr.mxu0 0.0
    %1355 = vmatpush1.msra.mxu0 0.0
    %1356 = vmatprep.mubr.f32.mxu0 0.0
    %1357 = vmatmul.mubr.f32.gmra.mrb[0].mxu0 %v1077
    %v1358 = vpop.f32.mrb[0].mxu0
    %v1359 = vadd.f32 0.0, %v1358
    %v1360 = vpop.f32.mrb[0].mxu0
    %v1361 = vadd.f32 0.0, %v1360
    %1362 = vdwg.mxu0
    %v1363 = vadd.f32 %v783, %v1146
    %v1364 = vadd.f32 %v785, %v1148
    %v1365 = vadd.f32 %v854, %v1217
    %v1366 = vadd.f32 %v856, %v1219
    %v1367 = vadd.f32 %v925, %v1288
    %v1368 = vadd.f32 %v927, %v1290
    %v1369 = vadd.f32 %v996, %v1359
    %v1370 = vadd.f32 %v998, %v1361
    %v1371 = vlaneseq
    %v1372 = vshrl.u32 %v1371, 7
    %v1373 = vsub.s32 3, %v1372
    %v1374 = vrot.slane %v265, %v1373
    %v1375 = vmul.f32 %v270, %v1374
    %v1376 = vmul.f32 %v273, %v1374
    %1378 = vrot.lane.b32.xlu0 %v1376, 64
    %v1379 = vpop.permute.xlu0 %1378
    %v1381 = vadd.f32 %v1375, %v1379
    %s1382 = scalar_lea.vmem [#allocation2], 1536
    %v1383 = vld [vmem:[%s1382] sm:$0xff]
    %v1384 = vld [vmem:[%s1382 + $0x8] sm:$0xff]
    %v1385 = vld [vmem:[%s1382 + $0x10] sm:$0xff]
    %v1386 = vld [vmem:[%s1382 + $0x18] sm:$0xff]
    %v1387 = vld [vmem:[%s1382 + $0x20] sm:$0xff]
    %v1388 = vld [vmem:[%s1382 + $0x28] sm:$0xff]
    %v1389 = vld [vmem:[%s1382 + $0x30] sm:$0xff]
    %v1390 = vld [vmem:[%s1382 + $0x38] sm:$0xff]
    %v1391 = vld [vmem:[%s1382 + $0x40] sm:$0xff]
    %v1392 = vld [vmem:[%s1382 + $0x48] sm:$0xff]
    %v1393 = vld [vmem:[%s1382 + $0x50] sm:$0xff]
    %v1394 = vld [vmem:[%s1382 + $0x58] sm:$0xff]
    %v1395 = vld [vmem:[%s1382 + $0x60] sm:$0xff]
    %v1396 = vld [vmem:[%s1382 + $0x68] sm:$0xff]
    %v1397 = vld [vmem:[%s1382 + $0x70] sm:$0xff]
    %v1398 = vld [vmem:[%s1382 + $0x78] sm:$0xff]
    %v1399 = vld [vmem:[%s1382 + $0x80] sm:$0xff]
    %v1400 = vld [vmem:[%s1382 + $0x88] sm:$0xff]
    %v1401 = vld [vmem:[%s1382 + $0x90] sm:$0xff]
    %v1402 = vld [vmem:[%s1382 + $0x98] sm:$0xff]
    %v1403 = vld [vmem:[%s1382 + $0xa0] sm:$0xff]
    %v1404 = vld [vmem:[%s1382 + $0xa8] sm:$0xff]
    %v1405 = vld [vmem:[%s1382 + $0xb0] sm:$0xff]
    %v1406 = vld [vmem:[%s1382 + $0xb8] sm:$0xff]
    %v1407 = vld [vmem:[%s1382 + $0xc0] sm:$0xff]
    %v1408 = vld [vmem:[%s1382 + $0xc8] sm:$0xff]
    %v1409 = vld [vmem:[%s1382 + $0xd0] sm:$0xff]
    %v1410 = vld [vmem:[%s1382 + $0xd8] sm:$0xff]
    %v1411 = vld [vmem:[%s1382 + $0xe0] sm:$0xff]
    %v1412 = vld [vmem:[%s1382 + $0xe8] sm:$0xff]
    %v1413 = vld [vmem:[%s1382 + $0xf0] sm:$0xff]
    %v1414 = vld [vmem:[%s1382 + $0xf8] sm:$0xff]
    %v1415 = vld [vmem:[%s1382 + $0x100] sm:$0xff]
    %v1416 = vld [vmem:[%s1382 + $0x108] sm:$0xff]
    %v1417 = vld [vmem:[%s1382 + $0x110] sm:$0xff]
    %v1418 = vld [vmem:[%s1382 + $0x118] sm:$0xff]
    %v1419 = vld [vmem:[%s1382 + $0x120] sm:$0xff]
    %v1420 = vld [vmem:[%s1382 + $0x128] sm:$0xff]
    %v1421 = vld [vmem:[%s1382 + $0x130] sm:$0xff]
    %v1422 = vld [vmem:[%s1382 + $0x138] sm:$0xff]
    %v1423 = vld [vmem:[%s1382 + $0x140] sm:$0xff]
    %v1424 = vld [vmem:[%s1382 + $0x148] sm:$0xff]
    %v1425 = vld [vmem:[%s1382 + $0x150] sm:$0xff]
    %v1426 = vld [vmem:[%s1382 + $0x158] sm:$0xff]
    %v1427 = vld [vmem:[%s1382 + $0x160] sm:$0xff]
    %v1428 = vld [vmem:[%s1382 + $0x168] sm:$0xff]
    %v1429 = vld [vmem:[%s1382 + $0x170] sm:$0xff]
    %v1430 = vld [vmem:[%s1382 + $0x178] sm:$0xff]
    %v1431 = vld [vmem:[%s1382 + $0x180] sm:$0xff]
    %v1432 = vld [vmem:[%s1382 + $0x188] sm:$0xff]
    %v1433 = vld [vmem:[%s1382 + $0x190] sm:$0xff]
    %v1434 = vld [vmem:[%s1382 + $0x198] sm:$0xff]
    %v1435 = vld [vmem:[%s1382 + $0x1a0] sm:$0xff]
    %v1436 = vld [vmem:[%s1382 + $0x1a8] sm:$0xff]
    %v1437 = vld [vmem:[%s1382 + $0x1b0] sm:$0xff]
    %v1438 = vld [vmem:[%s1382 + $0x1b8] sm:$0xff]
    %v1439 = vld [vmem:[%s1382 + $0x1c0] sm:$0xff]
    %v1440 = vld [vmem:[%s1382 + $0x1c8] sm:$0xff]
    %v1441 = vld [vmem:[%s1382 + $0x1d0] sm:$0xff]
    %v1442 = vld [vmem:[%s1382 + $0x1d8] sm:$0xff]
    %v1443 = vld [vmem:[%s1382 + $0x1e0] sm:$0xff]
    %v1444 = vld [vmem:[%s1382 + $0x1e8] sm:$0xff]
    %v1445 = vld [vmem:[%s1382 + $0x1f0] sm:$0xff]
    %v1446 = vld [vmem:[%s1382 + $0x1f8] sm:$0xff]
    %v1448 = vsel %vm425, %v1381, 0
    %1450 = vmatprep.subr.mxu0 %v1384
    %1451 = vmatpush1.msra.mxu0 %v1383
    %1452 = vmatprep.subr.mxu0 %v1392
    %1453 = vmatpush1.msra.mxu0 %v1391
    %1454 = vmatprep.subr.mxu0 %v1400
    %1455 = vmatpush1.msra.mxu0 %v1399
    %1456 = vmatprep.subr.mxu0 %v1408
    %1457 = vmatpush1.msra.mxu0 %v1407
    %1458 = vmatprep.subr.mxu0 %v1416
    %1459 = vmatpush1.msra.mxu0 %v1415
    %1460 = vmatprep.subr.mxu0 %v1424
    %1461 = vmatpush1.msra.mxu0 %v1423
    %1462 = vmatprep.subr.mxu0 %v1432
    %1463 = vmatpush1.msra.mxu0 %v1431
    %1464 = vmatprep.subr.mxu0 %v1440
    %1465 = vmatpush1.msra.mxu0 %v1439
    %1466 = vmatprep.subr.mxu0 0.0
    %1467 = vmatpush1.msra.mxu0 0.0
    %1468 = vmatprep.subr.mxu0 0.0
    %1469 = vmatpush1.msra.mxu0 0.0
    %1470 = vmatprep.subr.mxu0 0.0
    %1471 = vmatpush1.msra.mxu0 0.0
    %1472 = vmatprep.subr.mxu0 0.0
    %1473 = vmatpush1.msra.mxu0 0.0
    %1474 = vmatprep.subr.mxu0 0.0
    %1475 = vmatpush1.msra.mxu0 0.0
    %1476 = vmatprep.subr.mxu0 0.0
    %1477 = vmatpush1.msra.mxu0 0.0
    %1478 = vmatprep.subr.mxu0 0.0
    %1479 = vmatpush1.msra.mxu0 0.0
    %1480 = vmatprep.subr.mxu0 0.0
    %1481 = vmatpush1.msra.mxu0 0.0
    %1482 = vmatprep.subr.mxu0 0.0
    %1483 = vmatpush1.msra.mxu0 0.0
    %1484 = vmatprep.subr.mxu0 0.0
    %1485 = vmatpush1.msra.mxu0 0.0
    %1486 = vmatprep.subr.mxu0 0.0
    %1487 = vmatpush1.msra.mxu0 0.0
    %1488 = vmatprep.subr.mxu0 0.0
    %1489 = vmatpush1.msra.mxu0 0.0
    %1490 = vmatprep.subr.mxu0 0.0
    %1491 = vmatpush1.msra.mxu0 0.0
    %1492 = vmatprep.subr.mxu0 0.0
    %1493 = vmatpush1.msra.mxu0 0.0
    %1494 = vmatprep.subr.mxu0 0.0
    %1495 = vmatpush1.msra.mxu0 0.0
    %1496 = vmatprep.subr.mxu0 0.0
    %1497 = vmatpush1.msra.mxu0 0.0
    %1498 = vmatprep.subr.mxu0 0.0
    %1499 = vmatpush1.msra.mxu0 0.0
    %1500 = vmatprep.subr.mxu0 0.0
    %1501 = vmatpush1.msra.mxu0 0.0
    %1502 = vmatprep.subr.mxu0 0.0
    %1503 = vmatpush1.msra.mxu0 0.0
    %1504 = vmatprep.subr.mxu0 0.0
    %1505 = vmatpush1.msra.mxu0 0.0
    %1506 = vmatprep.subr.mxu0 0.0
    %1507 = vmatpush1.msra.mxu0 0.0
    %1508 = vmatprep.subr.mxu0 0.0
    %1509 = vmatpush1.msra.mxu0 0.0
    %1510 = vmatprep.subr.mxu0 0.0
    %1511 = vmatpush1.msra.mxu0 0.0
    %1512 = vmatprep.subr.mxu0 0.0
    %1513 = vmatpush1.msra.mxu0 0.0
    %1514 = vmatprep.mubr.f32.mxu0 0.0
    %1515 = vmatmul.mubr.f32.gmra.mrb[0].mxu0 %v1448
    %v1516 = vpop.f32.mrb[0].mxu0
    %v1517 = vadd.f32 0.0, %v1516
    %v1518 = vpop.f32.mrb[0].mxu0
    %v1519 = vadd.f32 0.0, %v1518
    %1520 = vdwg.mxu0
    %1521 = vmatprep.subr.mxu0 %v1386
    %1522 = vmatpush1.msra.mxu0 %v1385
    %1523 = vmatprep.subr.mxu0 %v1394
    %1524 = vmatpush1.msra.mxu0 %v1393
    %1525 = vmatprep.subr.mxu0 %v1402
    %1526 = vmatpush1.msra.mxu0 %v1401
    %1527 = vmatprep.subr.mxu0 %v1410
    %1528 = vmatpush1.msra.mxu0 %v1409
    %1529 = vmatprep.subr.mxu0 %v1418
    %1530 = vmatpush1.msra.mxu0 %v1417
    %1531 = vmatprep.subr.mxu0 %v1426
    %1532 = vmatpush1.msra.mxu0 %v1425
    %1533 = vmatprep.subr.mxu0 %v1434
    %1534 = vmatpush1.msra.mxu0 %v1433
    %1535 = vmatprep.subr.mxu0 %v1442
    %1536 = vmatpush1.msra.mxu0 %v1441
    %1537 = vmatprep.subr.mxu0 0.0
    %1538 = vmatpush1.msra.mxu0 0.0
    %1539 = vmatprep.subr.mxu0 0.0
    %1540 = vmatpush1.msra.mxu0 0.0
    %1541 = vmatprep.subr.mxu0 0.0
    %1542 = vmatpush1.msra.mxu0 0.0
    %1543 = vmatprep.subr.mxu0 0.0
    %1544 = vmatpush1.msra.mxu0 0.0
    %1545 = vmatprep.subr.mxu0 0.0
    %1546 = vmatpush1.msra.mxu0 0.0
    %1547 = vmatprep.subr.mxu0 0.0
    %1548 = vmatpush1.msra.mxu0 0.0
    %1549 = vmatprep.subr.mxu0 0.0
    %1550 = vmatpush1.msra.mxu0 0.0
    %1551 = vmatprep.subr.mxu0 0.0
    %1552 = vmatpush1.msra.mxu0 0.0
    %1553 = vmatprep.subr.mxu0 0.0
    %1554 = vmatpush1.msra.mxu0 0.0
    %1555 = vmatprep.subr.mxu0 0.0
    %1556 = vmatpush1.msra.mxu0 0.0
    %1557 = vmatprep.subr.mxu0 0.0
    %1558 = vmatpush1.msra.mxu0 0.0
    %1559 = vmatprep.subr.mxu0 0.0
    %1560 = vmatpush1.msra.mxu0 0.0
    %1561 = vmatprep.subr.mxu0 0.0
    %1562 = vmatpush1.msra.mxu0 0.0
    %1563 = vmatprep.subr.mxu0 0.0
    %1564 = vmatpush1.msra.mxu0 0.0
    %1565 = vmatprep.subr.mxu0 0.0
    %1566 = vmatpush1.msra.mxu0 0.0
    %1567 = vmatprep.subr.mxu0 0.0
    %1568 = vmatpush1.msra.mxu0 0.0
    %1569 = vmatprep.subr.mxu0 0.0
    %1570 = vmatpush1.msra.mxu0 0.0
    %1571 = vmatprep.subr.mxu0 0.0
    %1572 = vmatpush1.msra.mxu0 0.0
    %1573 = vmatprep.subr.mxu0 0.0
    %1574 = vmatpush1.msra.mxu0 0.0
    %1575 = vmatprep.subr.mxu0 0.0
    %1576 = vmatpush1.msra.mxu0 0.0
    %1577 = vmatprep.subr.mxu0 0.0
    %1578 = vmatpush1.msra.mxu0 0.0
    %1579 = vmatprep.subr.mxu0 0.0
    %1580 = vmatpush1.msra.mxu0 0.0
    %1581 = vmatprep.subr.mxu0 0.0
    %1582 = vmatpush1.msra.mxu0 0.0
    %1583 = vmatprep.subr.mxu0 0.0
    %1584 = vmatpush1.msra.mxu0 0.0
    %1585 = vmatprep.mubr.f32.mxu0 0.0
    %1586 = vmatmul.mubr.f32.gmra.mrb[0].mxu0 %v1448
    %v1587 = vpop.f32.mrb[0].mxu0
    %v1588 = vadd.f32 0.0, %v1587
    %v1589 = vpop.f32.mrb[0].mxu0
    %v1590 = vadd.f32 0.0, %v1589
    %1591 = vdwg.mxu0
    %1592 = vmatprep.subr.mxu0 %v1388
    %1593 = vmatpush1.msra.mxu0 %v1387
    %1594 = vmatprep.subr.mxu0 %v1396
    %1595 = vmatpush1.msra.mxu0 %v1395
    %1596 = vmatprep.subr.mxu0 %v1404
    %1597 = vmatpush1.msra.mxu0 %v1403
    %1598 = vmatprep.subr.mxu0 %v1412
    %1599 = vmatpush1.msra.mxu0 %v1411
    %1600 = vmatprep.subr.mxu0 %v1420
    %1601 = vmatpush1.msra.mxu0 %v1419
    %1602 = vmatprep.subr.mxu0 %v1428
    %1603 = vmatpush1.msra.mxu0 %v1427
    %1604 = vmatprep.subr.mxu0 %v1436
    %1605 = vmatpush1.msra.mxu0 %v1435
    %1606 = vmatprep.subr.mxu0 %v1444
    %1607 = vmatpush1.msra.mxu0 %v1443
    %1608 = vmatprep.subr.mxu0 0.0
    %1609 = vmatpush1.msra.mxu0 0.0
    %1610 = vmatprep.subr.mxu0 0.0
    %1611 = vmatpush1.msra.mxu0 0.0
    %1612 = vmatprep.subr.mxu0 0.0
    %1613 = vmatpush1.msra.mxu0 0.0
    %1614 = vmatprep.subr.mxu0 0.0
    %1615 = vmatpush1.msra.mxu0 0.0
    %1616 = vmatprep.subr.mxu0 0.0
    %1617 = vmatpush1.msra.mxu0 0.0
    %1618 = vmatprep.subr.mxu0 0.0
    %1619 = vmatpush1.msra.mxu0 0.0
    %1620 = vmatprep.subr.mxu0 0.0
    %1621 = vmatpush1.msra.mxu0 0.0
    %1622 = vmatprep.subr.mxu0 0.0
    %1623 = vmatpush1.msra.mxu0 0.0
    %1624 = vmatprep.subr.mxu0 0.0
    %1625 = vmatpush1.msra.mxu0 0.0
    %1626 = vmatprep.subr.mxu0 0.0
    %1627 = vmatpush1.msra.mxu0 0.0
    %1628 = vmatprep.subr.mxu0 0.0
    %1629 = vmatpush1.msra.mxu0 0.0
    %1630 = vmatprep.subr.mxu0 0.0
    %1631 = vmatpush1.msra.mxu0 0.0
    %1632 = vmatprep.subr.mxu0 0.0
    %1633 = vmatpush1.msra.mxu0 0.0
    %1634 = vmatprep.subr.mxu0 0.0
    %1635 = vmatpush1.msra.mxu0 0.0
    %1636 = vmatprep.subr.mxu0 0.0
    %1637 = vmatpush1.msra.mxu0 0.0
    %1638 = vmatprep.subr.mxu0 0.0
    %1639 = vmatpush1.msra.mxu0 0.0
    %1640 = vmatprep.subr.mxu0 0.0
    %1641 = vmatpush1.msra.mxu0 0.0
    %1642 = vmatprep.subr.mxu0 0.0
    %1643 = vmatpush1.msra.mxu0 0.0
    %1644 = vmatprep.subr.mxu0 0.0
    %1645 = vmatpush1.msra.mxu0 0.0
    %1646 = vmatprep.subr.mxu0 0.0
    %1647 = vmatpush1.msra.mxu0 0.0
    %1648 = vmatprep.subr.mxu0 0.0
    %1649 = vmatpush1.msra.mxu0 0.0
    %1650 = vmatprep.subr.mxu0 0.0
    %1651 = vmatpush1.msra.mxu0 0.0
    %1652 = vmatprep.subr.mxu0 0.0
    %1653 = vmatpush1.msra.mxu0 0.0
    %1654 = vmatprep.subr.mxu0 0.0
    %1655 = vmatpush1.msra.mxu0 0.0
    %1656 = vmatprep.mubr.f32.mxu0 0.0
    %1657 = vmatmul.mubr.f32.gmra.mrb[0].mxu0 %v1448
    %v1658 = vpop.f32.mrb[0].mxu0
    %v1659 = vadd.f32 0.0, %v1658
    %v1660 = vpop.f32.mrb[0].mxu0
    %v1661 = vadd.f32 0.0, %v1660
    %1662 = vdwg.mxu0
    %1663 = vmatprep.subr.mxu0 %v1390
    %1664 = vmatpush1.msra.mxu0 %v1389
    %1665 = vmatprep.subr.mxu0 %v1398
    %1666 = vmatpush1.msra.mxu0 %v1397
    %1667 = vmatprep.subr.mxu0 %v1406
    %1668 = vmatpush1.msra.mxu0 %v1405
    %1669 = vmatprep.subr.mxu0 %v1414
    %1670 = vmatpush1.msra.mxu0 %v1413
    %1671 = vmatprep.subr.mxu0 %v1422
    %1672 = vmatpush1.msra.mxu0 %v1421
    %1673 = vmatprep.subr.mxu0 %v1430
    %1674 = vmatpush1.msra.mxu0 %v1429
    %1675 = vmatprep.subr.mxu0 %v1438
    %1676 = vmatpush1.msra.mxu0 %v1437
    %1677 = vmatprep.subr.mxu0 %v1446
    %1678 = vmatpush1.msra.mxu0 %v1445
    %1679 = vmatprep.subr.mxu0 0.0
    %1680 = vmatpush1.msra.mxu0 0.0
    %1681 = vmatprep.subr.mxu0 0.0
    %1682 = vmatpush1.msra.mxu0 0.0
    %1683 = vmatprep.subr.mxu0 0.0
    %1684 = vmatpush1.msra.mxu0 0.0
    %1685 = vmatprep.subr.mxu0 0.0
    %1686 = vmatpush1.msra.mxu0 0.0
    %1687 = vmatprep.subr.mxu0 0.0
    %1688 = vmatpush1.msra.mxu0 0.0
    %1689 = vmatprep.subr.mxu0 0.0
    %1690 = vmatpush1.msra.mxu0 0.0
    %1691 = vmatprep.subr.mxu0 0.0
    %1692 = vmatpush1.msra.mxu0 0.0
    %1693 = vmatprep.subr.mxu0 0.0
    %1694 = vmatpush1.msra.mxu0 0.0
    %1695 = vmatprep.subr.mxu0 0.0
    %1696 = vmatpush1.msra.mxu0 0.0
    %1697 = vmatprep.subr.mxu0 0.0
    %1698 = vmatpush1.msra.mxu0 0.0
    %1699 = vmatprep.subr.mxu0 0.0
    %1700 = vmatpush1.msra.mxu0 0.0
    %1701 = vmatprep.subr.mxu0 0.0
    %1702 = vmatpush1.msra.mxu0 0.0
    %1703 = vmatprep.subr.mxu0 0.0
    %1704 = vmatpush1.msra.mxu0 0.0
    %1705 = vmatprep.subr.mxu0 0.0
    %1706 = vmatpush1.msra.mxu0 0.0
    %1707 = vmatprep.subr.mxu0 0.0
    %1708 = vmatpush1.msra.mxu0 0.0
    %1709 = vmatprep.subr.mxu0 0.0
    %1710 = vmatpush1.msra.mxu0 0.0
    %1711 = vmatprep.subr.mxu0 0.0
    %1712 = vmatpush1.msra.mxu0 0.0
    %1713 = vmatprep.subr.mxu0 0.0
    %1714 = vmatpush1.msra.mxu0 0.0
    %1715 = vmatprep.subr.mxu0 0.0
    %1716 = vmatpush1.msra.mxu0 0.0
    %1717 = vmatprep.subr.mxu0 0.0
    %1718 = vmatpush1.msra.mxu0 0.0
    %1719 = vmatprep.subr.mxu0 0.0
    %1720 = vmatpush1.msra.mxu0 0.0
    %1721 = vmatprep.subr.mxu0 0.0
    %1722 = vmatpush1.msra.mxu0 0.0
    %1723 = vmatprep.subr.mxu0 0.0
    %1724 = vmatpush1.msra.mxu0 0.0
    %1725 = vmatprep.subr.mxu0 0.0
    %1726 = vmatpush1.msra.mxu0 0.0
    %1727 = vmatprep.mubr.f32.mxu0 0.0
    %1728 = vmatmul.mubr.f32.gmra.mrb[0].mxu0 %v1448
    %v1729 = vpop.f32.mrb[0].mxu0
    %v1730 = vadd.f32 0.0, %v1729
    %v1731 = vpop.f32.mrb[0].mxu0
    %v1732 = vadd.f32 0.0, %v1731
    %1733 = vdwg.mxu0
    %v1734 = vadd.f32 %v1363, %v1517
    %v1735 = vadd.f32 %v1364, %v1519
    %v1736 = vadd.f32 %v1365, %v1588
    %v1737 = vadd.f32 %v1366, %v1590
    %v1738 = vadd.f32 %v1367, %v1659
    %v1739 = vadd.f32 %v1368, %v1661
    %v1740 = vadd.f32 %v1369, %v1730
    %v1741 = vadd.f32 %v1370, %v1732
    %v1742 = vld [vmem:[%s6] sm:$0xff]
    %v1744 = vlaneseq
    %v1745 = vshrl.u32 %v1744, 7
    %v1746 = vsub.s32 0, %v1745
    %v1747 = vrot.slane %v1742, %v1746
    %v1748 = vlaneseq
    %v1749 = vshrl.u32 %v1748, 7
    %v1750 = vsub.s32 1, %v1749
    %v1751 = vrot.slane %v1742, %v1750
    %v1752 = vlaneseq
    %v1753 = vshrl.u32 %v1752, 7
    %v1754 = vsub.s32 2, %v1753
    %v1755 = vrot.slane %v1742, %v1754
    %v1756 = vlaneseq
    %v1757 = vshrl.u32 %v1756, 7
    %v1758 = vsub.s32 3, %v1757
    %v1759 = vrot.slane %v1742, %v1758
    %v1760 = vlaneseq
    %v1761 = vshrl.u32 %v1760, 7
    %v1762 = vsub.s32 4, %v1761
    %v1763 = vrot.slane %v1742, %v1762
    %v1764 = vlaneseq
    %v1765 = vshrl.u32 %v1764, 7
    %v1766 = vsub.s32 5, %v1765
    %v1767 = vrot.slane %v1742, %v1766
    %v1768 = vlaneseq
    %v1769 = vshrl.u32 %v1768, 7
    %v1770 = vsub.s32 6, %v1769
    %v1771 = vrot.slane %v1742, %v1770
    %v1772 = vlaneseq
    %v1773 = vshrl.u32 %v1772, 7
    %v1774 = vsub.s32 7, %v1773
    %v1775 = vrot.slane %v1742, %v1774
    %v1784 = vadd.f32 %v1734, %v1747
    %v1785 = vadd.f32 %v1735, %v1751
    %v1786 = vadd.f32 %v1736, %v1755
    %v1787 = vadd.f32 %v1737, %v1759
    %v1788 = vadd.f32 %v1738, %v1763
    %v1789 = vadd.f32 %v1739, %v1767
    %v1790 = vadd.f32 %v1740, %v1771
    %v1791 = vadd.f32 %v1741, %v1775
    %v1792 = vmax.f32 %v1784, 0.0
    %v1793 = vmax.f32 %v1785, 0.0
    %v1794 = vmax.f32 %v1786, 0.0
    %v1795 = vmax.f32 %v1787, 0.0
    %v1796 = vmax.f32 %v1788, 0.0
    %v1797 = vmax.f32 %v1789, 0.0
    %v1798 = vmax.f32 %v1790, 0.0
    %v1799 = vmax.f32 %v1791, 0.0
    %v1800 = vld [vmem:[#allocation5] sm:$0xff]
    %v1801 = vld [vmem:[#allocation5 + $0x8] sm:$0xff]
    %v1802 = vld [vmem:[#allocation5 + $0x10] sm:$0xff]
    %v1803 = vld [vmem:[#allocation5 + $0x18] sm:$0xff]
    %v1804 = vld [vmem:[#allocation5 + $0x20] sm:$0xff]
    %v1805 = vld [vmem:[#allocation5 + $0x28] sm:$0xff]
    %v1806 = vld [vmem:[#allocation5 + $0x30] sm:$0xff]
    %v1807 = vld [vmem:[#allocation5 + $0x38] sm:$0xff]
    %v1808 = vld [vmem:[#allocation5 + $0x40] sm:$0xff]
    %v1809 = vld [vmem:[#allocation5 + $0x48] sm:$0xff]
    %v1810 = vld [vmem:[#allocation5 + $0x50] sm:$0xff]
    %v1811 = vld [vmem:[#allocation5 + $0x58] sm:$0xff]
    %v1812 = vld [vmem:[#allocation5 + $0x60] sm:$0xff]
    %v1813 = vld [vmem:[#allocation5 + $0x68] sm:$0xff]
    %v1814 = vld [vmem:[#allocation5 + $0x70] sm:$0xff]
    %v1815 = vld [vmem:[#allocation5 + $0x78] sm:$0xff]
    %v1816 = vld [vmem:[#allocation5 + $0x80] sm:$0xff]
    %v1817 = vld [vmem:[#allocation5 + $0x88] sm:$0xff]
    %v1818 = vld [vmem:[#allocation5 + $0x90] sm:$0xff]
    %v1819 = vld [vmem:[#allocation5 + $0x98] sm:$0xff]
    %v1820 = vld [vmem:[#allocation5 + $0xa0] sm:$0xff]
    %v1821 = vld [vmem:[#allocation5 + $0xa8] sm:$0xff]
    %v1822 = vld [vmem:[#allocation5 + $0xb0] sm:$0xff]
    %v1823 = vld [vmem:[#allocation5 + $0xb8] sm:$0xff]
    %v1824 = vld [vmem:[#allocation5 + $0xc0] sm:$0xff]
    %v1825 = vld [vmem:[#allocation5 + $0xc8] sm:$0xff]
    %v1826 = vld [vmem:[#allocation5 + $0xd0] sm:$0xff]
    %v1827 = vld [vmem:[#allocation5 + $0xd8] sm:$0xff]
    %v1828 = vld [vmem:[#allocation5 + $0xe0] sm:$0xff]
    %v1829 = vld [vmem:[#allocation5 + $0xe8] sm:$0xff]
    %v1830 = vld [vmem:[#allocation5 + $0xf0] sm:$0xff]
    %v1831 = vld [vmem:[#allocation5 + $0xf8] sm:$0xff]
    %v1832 = vld [vmem:[#allocation5 + $0x100] sm:$0xff]
    %v1833 = vld [vmem:[#allocation5 + $0x108] sm:$0xff]
    %v1834 = vld [vmem:[#allocation5 + $0x110] sm:$0xff]
    %v1835 = vld [vmem:[#allocation5 + $0x118] sm:$0xff]
    %v1836 = vld [vmem:[#allocation5 + $0x120] sm:$0xff]
    %v1837 = vld [vmem:[#allocation5 + $0x128] sm:$0xff]
    %v1838 = vld [vmem:[#allocation5 + $0x130] sm:$0xff]
    %v1839 = vld [vmem:[#allocation5 + $0x138] sm:$0xff]
    %v1840 = vld [vmem:[#allocation5 + $0x140] sm:$0xff]
    %v1841 = vld [vmem:[#allocation5 + $0x148] sm:$0xff]
    %v1842 = vld [vmem:[#allocation5 + $0x150] sm:$0xff]
    %v1843 = vld [vmem:[#allocation5 + $0x158] sm:$0xff]
    %v1844 = vld [vmem:[#allocation5 + $0x160] sm:$0xff]
    %v1845 = vld [vmem:[#allocation5 + $0x168] sm:$0xff]
    %v1846 = vld [vmem:[#allocation5 + $0x170] sm:$0xff]
    %v1847 = vld [vmem:[#allocation5 + $0x178] sm:$0xff]
    %v1848 = vld [vmem:[#allocation5 + $0x180] sm:$0xff]
    %v1849 = vld [vmem:[#allocation5 + $0x188] sm:$0xff]
    %v1850 = vld [vmem:[#allocation5 + $0x190] sm:$0xff]
    %v1851 = vld [vmem:[#allocation5 + $0x198] sm:$0xff]
    %v1852 = vld [vmem:[#allocation5 + $0x1a0] sm:$0xff]
    %v1853 = vld [vmem:[#allocation5 + $0x1a8] sm:$0xff]
    %v1854 = vld [vmem:[#allocation5 + $0x1b0] sm:$0xff]
    %v1855 = vld [vmem:[#allocation5 + $0x1b8] sm:$0xff]
    %v1856 = vld [vmem:[#allocation5 + $0x1c0] sm:$0xff]
    %v1857 = vld [vmem:[#allocation5 + $0x1c8] sm:$0xff]
    %v1858 = vld [vmem:[#allocation5 + $0x1d0] sm:$0xff]
    %v1859 = vld [vmem:[#allocation5 + $0x1d8] sm:$0xff]
    %v1860 = vld [vmem:[#allocation5 + $0x1e0] sm:$0xff]
    %v1861 = vld [vmem:[#allocation5 + $0x1e8] sm:$0xff]
    %v1862 = vld [vmem:[#allocation5 + $0x1f0] sm:$0xff]
    %v1863 = vld [vmem:[#allocation5 + $0x1f8] sm:$0xff]
    %v1864 = vld [vmem:[#allocation5 + $0x200] sm:$0xff]
    %v1865 = vld [vmem:[#allocation5 + $0x208] sm:$0xff]
    %v1866 = vld [vmem:[#allocation5 + $0x210] sm:$0xff]
    %v1867 = vld [vmem:[#allocation5 + $0x218] sm:$0xff]
    %v1868 = vld [vmem:[#allocation5 + $0x220] sm:$0xff]
    %v1869 = vld [vmem:[#allocation5 + $0x228] sm:$0xff]
    %v1870 = vld [vmem:[#allocation5 + $0x230] sm:$0xff]
    %v1871 = vld [vmem:[#allocation5 + $0x238] sm:$0xff]
    %v1872 = vld [vmem:[#allocation5 + $0x240] sm:$0xff]
    %v1873 = vld [vmem:[#allocation5 + $0x248] sm:$0xff]
    %v1874 = vld [vmem:[#allocation5 + $0x250] sm:$0xff]
    %v1875 = vld [vmem:[#allocation5 + $0x258] sm:$0xff]
    %v1876 = vld [vmem:[#allocation5 + $0x260] sm:$0xff]
    %v1877 = vld [vmem:[#allocation5 + $0x268] sm:$0xff]
    %v1878 = vld [vmem:[#allocation5 + $0x270] sm:$0xff]
    %v1879 = vld [vmem:[#allocation5 + $0x278] sm:$0xff]
    %v1880 = vld [vmem:[#allocation5 + $0x280] sm:$0xff]
    %v1881 = vld [vmem:[#allocation5 + $0x288] sm:$0xff]
    %v1882 = vld [vmem:[#allocation5 + $0x290] sm:$0xff]
    %v1883 = vld [vmem:[#allocation5 + $0x298] sm:$0xff]
    %v1884 = vld [vmem:[#allocation5 + $0x2a0] sm:$0xff]
    %v1885 = vld [vmem:[#allocation5 + $0x2a8] sm:$0xff]
    %v1886 = vld [vmem:[#allocation5 + $0x2b0] sm:$0xff]
    %v1887 = vld [vmem:[#allocation5 + $0x2b8] sm:$0xff]
    %v1888 = vld [vmem:[#allocation5 + $0x2c0] sm:$0xff]
    %v1889 = vld [vmem:[#allocation5 + $0x2c8] sm:$0xff]
    %v1890 = vld [vmem:[#allocation5 + $0x2d0] sm:$0xff]
    %v1891 = vld [vmem:[#allocation5 + $0x2d8] sm:$0xff]
    %v1892 = vld [vmem:[#allocation5 + $0x2e0] sm:$0xff]
    %v1893 = vld [vmem:[#allocation5 + $0x2e8] sm:$0xff]
    %v1894 = vld [vmem:[#allocation5 + $0x2f0] sm:$0xff]
    %v1895 = vld [vmem:[#allocation5 + $0x2f8] sm:$0xff]
    %v1896 = vld [vmem:[#allocation5 + $0x300] sm:$0xff]
    %v1897 = vld [vmem:[#allocation5 + $0x308] sm:$0xff]
    %v1898 = vld [vmem:[#allocation5 + $0x310] sm:$0xff]
    %v1899 = vld [vmem:[#allocation5 + $0x318] sm:$0xff]
    %v1900 = vld [vmem:[#allocation5 + $0x320] sm:$0xff]
    %v1901 = vld [vmem:[#allocation5 + $0x328] sm:$0xff]
    %v1902 = vld [vmem:[#allocation5 + $0x330] sm:$0xff]
    %v1903 = vld [vmem:[#allocation5 + $0x338] sm:$0xff]
    %v1904 = vld [vmem:[#allocation5 + $0x340] sm:$0xff]
    %v1905 = vld [vmem:[#allocation5 + $0x348] sm:$0xff]
    %v1906 = vld [vmem:[#allocation5 + $0x350] sm:$0xff]
    %v1907 = vld [vmem:[#allocation5 + $0x358] sm:$0xff]
    %v1908 = vld [vmem:[#allocation5 + $0x360] sm:$0xff]
    %v1909 = vld [vmem:[#allocation5 + $0x368] sm:$0xff]
    %v1910 = vld [vmem:[#allocation5 + $0x370] sm:$0xff]
    %v1911 = vld [vmem:[#allocation5 + $0x378] sm:$0xff]
    %v1912 = vld [vmem:[#allocation5 + $0x380] sm:$0xff]
    %v1913 = vld [vmem:[#allocation5 + $0x388] sm:$0xff]
    %v1914 = vld [vmem:[#allocation5 + $0x390] sm:$0xff]
    %v1915 = vld [vmem:[#allocation5 + $0x398] sm:$0xff]
    %v1916 = vld [vmem:[#allocation5 + $0x3a0] sm:$0xff]
    %v1917 = vld [vmem:[#allocation5 + $0x3a8] sm:$0xff]
    %v1918 = vld [vmem:[#allocation5 + $0x3b0] sm:$0xff]
    %v1919 = vld [vmem:[#allocation5 + $0x3b8] sm:$0xff]
    %v1920 = vld [vmem:[#allocation5 + $0x3c0] sm:$0xff]
    %v1921 = vld [vmem:[#allocation5 + $0x3c8] sm:$0xff]
    %v1922 = vld [vmem:[#allocation5 + $0x3d0] sm:$0xff]
    %v1923 = vld [vmem:[#allocation5 + $0x3d8] sm:$0xff]
    %v1924 = vld [vmem:[#allocation5 + $0x3e0] sm:$0xff]
    %v1925 = vld [vmem:[#allocation5 + $0x3e8] sm:$0xff]
    %v1926 = vld [vmem:[#allocation5 + $0x3f0] sm:$0xff]
    %v1927 = vld [vmem:[#allocation5 + $0x3f8] sm:$0xff]
    %v1928 = vld [vmem:[#allocation5 + $0x400] sm:$0xff]
    %v1929 = vld [vmem:[#allocation5 + $0x408] sm:$0xff]
    %v1930 = vld [vmem:[#allocation5 + $0x410] sm:$0xff]
    %v1931 = vld [vmem:[#allocation5 + $0x418] sm:$0xff]
    %v1932 = vld [vmem:[#allocation5 + $0x420] sm:$0xff]
    %v1933 = vld [vmem:[#allocation5 + $0x428] sm:$0xff]
    %v1934 = vld [vmem:[#allocation5 + $0x430] sm:$0xff]
    %v1935 = vld [vmem:[#allocation5 + $0x438] sm:$0xff]
    %v1936 = vld [vmem:[#allocation5 + $0x440] sm:$0xff]
    %v1937 = vld [vmem:[#allocation5 + $0x448] sm:$0xff]
    %v1938 = vld [vmem:[#allocation5 + $0x450] sm:$0xff]
    %v1939 = vld [vmem:[#allocation5 + $0x458] sm:$0xff]
    %v1940 = vld [vmem:[#allocation5 + $0x460] sm:$0xff]
    %v1941 = vld [vmem:[#allocation5 + $0x468] sm:$0xff]
    %v1942 = vld [vmem:[#allocation5 + $0x470] sm:$0xff]
    %v1943 = vld [vmem:[#allocation5 + $0x478] sm:$0xff]
    %v1944 = vld [vmem:[#allocation5 + $0x480] sm:$0xff]
    %v1945 = vld [vmem:[#allocation5 + $0x488] sm:$0xff]
    %v1946 = vld [vmem:[#allocation5 + $0x490] sm:$0xff]
    %v1947 = vld [vmem:[#allocation5 + $0x498] sm:$0xff]
    %v1948 = vld [vmem:[#allocation5 + $0x4a0] sm:$0xff]
    %v1949 = vld [vmem:[#allocation5 + $0x4a8] sm:$0xff]
    %v1950 = vld [vmem:[#allocation5 + $0x4b0] sm:$0xff]
    %v1951 = vld [vmem:[#allocation5 + $0x4b8] sm:$0xff]
    %v1952 = vld [vmem:[#allocation5 + $0x4c0] sm:$0xff]
    %v1953 = vld [vmem:[#allocation5 + $0x4c8] sm:$0xff]
    %v1954 = vld [vmem:[#allocation5 + $0x4d0] sm:$0xff]
    %v1955 = vld [vmem:[#allocation5 + $0x4d8] sm:$0xff]
    %v1956 = vld [vmem:[#allocation5 + $0x4e0] sm:$0xff]
    %v1957 = vld [vmem:[#allocation5 + $0x4e8] sm:$0xff]
    %v1958 = vld [vmem:[#allocation5 + $0x4f0] sm:$0xff]
    %v1959 = vld [vmem:[#allocation5 + $0x4f8] sm:$0xff]
    %v1960 = vld [vmem:[#allocation5 + $0x500] sm:$0xff]
    %v1961 = vld [vmem:[#allocation5 + $0x508] sm:$0xff]
    %v1962 = vld [vmem:[#allocation5 + $0x510] sm:$0xff]
    %v1963 = vld [vmem:[#allocation5 + $0x518] sm:$0xff]
    %v1964 = vld [vmem:[#allocation5 + $0x520] sm:$0xff]
    %v1965 = vld [vmem:[#allocation5 + $0x528] sm:$0xff]
    %v1966 = vld [vmem:[#allocation5 + $0x530] sm:$0xff]
    %v1967 = vld [vmem:[#allocation5 + $0x538] sm:$0xff]
    %v1968 = vld [vmem:[#allocation5 + $0x540] sm:$0xff]
    %v1969 = vld [vmem:[#allocation5 + $0x548] sm:$0xff]
    %v1970 = vld [vmem:[#allocation5 + $0x550] sm:$0xff]
    %v1971 = vld [vmem:[#allocation5 + $0x558] sm:$0xff]
    %v1972 = vld [vmem:[#allocation5 + $0x560] sm:$0xff]
    %v1973 = vld [vmem:[#allocation5 + $0x568] sm:$0xff]
    %v1974 = vld [vmem:[#allocation5 + $0x570] sm:$0xff]
    %v1975 = vld [vmem:[#allocation5 + $0x578] sm:$0xff]
    %v1976 = vld [vmem:[#allocation5 + $0x580] sm:$0xff]
    %v1977 = vld [vmem:[#allocation5 + $0x588] sm:$0xff]
    %v1978 = vld [vmem:[#allocation5 + $0x590] sm:$0xff]
    %v1979 = vld [vmem:[#allocation5 + $0x598] sm:$0xff]
    %v1980 = vld [vmem:[#allocation5 + $0x5a0] sm:$0xff]
    %v1981 = vld [vmem:[#allocation5 + $0x5a8] sm:$0xff]
    %v1982 = vld [vmem:[#allocation5 + $0x5b0] sm:$0xff]
    %v1983 = vld [vmem:[#allocation5 + $0x5b8] sm:$0xff]
    %v1984 = vld [vmem:[#allocation5 + $0x5c0] sm:$0xff]
    %v1985 = vld [vmem:[#allocation5 + $0x5c8] sm:$0xff]
    %v1986 = vld [vmem:[#allocation5 + $0x5d0] sm:$0xff]
    %v1987 = vld [vmem:[#allocation5 + $0x5d8] sm:$0xff]
    %v1988 = vld [vmem:[#allocation5 + $0x5e0] sm:$0xff]
    %v1989 = vld [vmem:[#allocation5 + $0x5e8] sm:$0xff]
    %v1990 = vld [vmem:[#allocation5 + $0x5f0] sm:$0xff]
    %v1991 = vld [vmem:[#allocation5 + $0x5f8] sm:$0xff]
    %v1992 = vld [vmem:[#allocation5 + $0x600] sm:$0xff]
    %v1993 = vld [vmem:[#allocation5 + $0x608] sm:$0xff]
    %v1994 = vld [vmem:[#allocation5 + $0x610] sm:$0xff]
    %v1995 = vld [vmem:[#allocation5 + $0x618] sm:$0xff]
    %v1996 = vld [vmem:[#allocation5 + $0x620] sm:$0xff]
    %v1997 = vld [vmem:[#allocation5 + $0x628] sm:$0xff]
    %v1998 = vld [vmem:[#allocation5 + $0x630] sm:$0xff]
    %v1999 = vld [vmem:[#allocation5 + $0x638] sm:$0xff]
    %v2000 = vld [vmem:[#allocation5 + $0x640] sm:$0xff]
    %v2001 = vld [vmem:[#allocation5 + $0x648] sm:$0xff]
    %v2002 = vld [vmem:[#allocation5 + $0x650] sm:$0xff]
    %v2003 = vld [vmem:[#allocation5 + $0x658] sm:$0xff]
    %v2004 = vld [vmem:[#allocation5 + $0x660] sm:$0xff]
    %v2005 = vld [vmem:[#allocation5 + $0x668] sm:$0xff]
    %v2006 = vld [vmem:[#allocation5 + $0x670] sm:$0xff]
    %v2007 = vld [vmem:[#allocation5 + $0x678] sm:$0xff]
    %v2008 = vld [vmem:[#allocation5 + $0x680] sm:$0xff]
    %v2009 = vld [vmem:[#allocation5 + $0x688] sm:$0xff]
    %v2010 = vld [vmem:[#allocation5 + $0x690] sm:$0xff]
    %v2011 = vld [vmem:[#allocation5 + $0x698] sm:$0xff]
    %v2012 = vld [vmem:[#allocation5 + $0x6a0] sm:$0xff]
    %v2013 = vld [vmem:[#allocation5 + $0x6a8] sm:$0xff]
    %v2014 = vld [vmem:[#allocation5 + $0x6b0] sm:$0xff]
    %v2015 = vld [vmem:[#allocation5 + $0x6b8] sm:$0xff]
    %v2016 = vld [vmem:[#allocation5 + $0x6c0] sm:$0xff]
    %v2017 = vld [vmem:[#allocation5 + $0x6c8] sm:$0xff]
    %v2018 = vld [vmem:[#allocation5 + $0x6d0] sm:$0xff]
    %v2019 = vld [vmem:[#allocation5 + $0x6d8] sm:$0xff]
    %v2020 = vld [vmem:[#allocation5 + $0x6e0] sm:$0xff]
    %v2021 = vld [vmem:[#allocation5 + $0x6e8] sm:$0xff]
    %v2022 = vld [vmem:[#allocation5 + $0x6f0] sm:$0xff]
    %v2023 = vld [vmem:[#allocation5 + $0x6f8] sm:$0xff]
    %v2024 = vld [vmem:[#allocation5 + $0x700] sm:$0xff]
    %v2025 = vld [vmem:[#allocation5 + $0x708] sm:$0xff]
    %v2026 = vld [vmem:[#allocation5 + $0x710] sm:$0xff]
    %v2027 = vld [vmem:[#allocation5 + $0x718] sm:$0xff]
    %v2028 = vld [vmem:[#allocation5 + $0x720] sm:$0xff]
    %v2029 = vld [vmem:[#allocation5 + $0x728] sm:$0xff]
    %v2030 = vld [vmem:[#allocation5 + $0x730] sm:$0xff]
    %v2031 = vld [vmem:[#allocation5 + $0x738] sm:$0xff]
    %v2032 = vld [vmem:[#allocation5 + $0x740] sm:$0xff]
    %v2033 = vld [vmem:[#allocation5 + $0x748] sm:$0xff]
    %v2034 = vld [vmem:[#allocation5 + $0x750] sm:$0xff]
    %v2035 = vld [vmem:[#allocation5 + $0x758] sm:$0xff]
    %v2036 = vld [vmem:[#allocation5 + $0x760] sm:$0xff]
    %v2037 = vld [vmem:[#allocation5 + $0x768] sm:$0xff]
    %v2038 = vld [vmem:[#allocation5 + $0x770] sm:$0xff]
    %v2039 = vld [vmem:[#allocation5 + $0x778] sm:$0xff]
    %v2040 = vld [vmem:[#allocation5 + $0x780] sm:$0xff]
    %v2041 = vld [vmem:[#allocation5 + $0x788] sm:$0xff]
    %v2042 = vld [vmem:[#allocation5 + $0x790] sm:$0xff]
    %v2043 = vld [vmem:[#allocation5 + $0x798] sm:$0xff]
    %v2044 = vld [vmem:[#allocation5 + $0x7a0] sm:$0xff]
    %v2045 = vld [vmem:[#allocation5 + $0x7a8] sm:$0xff]
    %v2046 = vld [vmem:[#allocation5 + $0x7b0] sm:$0xff]
    %v2047 = vld [vmem:[#allocation5 + $0x7b8] sm:$0xff]
    %v2048 = vld [vmem:[#allocation5 + $0x7c0] sm:$0xff]
    %v2049 = vld [vmem:[#allocation5 + $0x7c8] sm:$0xff]
    %v2050 = vld [vmem:[#allocation5 + $0x7d0] sm:$0xff]
    %v2051 = vld [vmem:[#allocation5 + $0x7d8] sm:$0xff]
    %v2052 = vld [vmem:[#allocation5 + $0x7e0] sm:$0xff]
    %v2053 = vld [vmem:[#allocation5 + $0x7e8] sm:$0xff]
    %v2054 = vld [vmem:[#allocation5 + $0x7f0] sm:$0xff]
    %v2055 = vld [vmem:[#allocation5 + $0x7f8] sm:$0xff]
    %v2056 = vld [vmem:[%s8] sm:$0x3]
    %v2058 = vlaneseq
    %v2059 = vshrl.u32 %v2058, 7
    %v2060 = vsub.s32 0, %v2059
    %v2061 = vrot.slane %v2056, %v2060
    %v2062 = vlaneseq
    %v2063 = vshrl.u32 %v2062, 7
    %v2064 = vsub.s32 1, %v2063
    %v2065 = vrot.slane %v2056, %v2064
    %2068 = vmatprep.subr.mxu0 %v1801
    %2069 = vmatpush1.msra.mxu0 %v1800
    %2070 = vmatprep.subr.mxu0 %v1803
    %2071 = vmatpush1.msra.mxu0 %v1802
    %2072 = vmatprep.subr.mxu0 %v1805
    %2073 = vmatpush1.msra.mxu0 %v1804
    %2074 = vmatprep.subr.mxu0 %v1807
    %2075 = vmatpush1.msra.mxu0 %v1806
    %2076 = vmatprep.subr.mxu0 %v1809
    %2077 = vmatpush1.msra.mxu0 %v1808
    %2078 = vmatprep.subr.mxu0 %v1811
    %2079 = vmatpush1.msra.mxu0 %v1810
    %2080 = vmatprep.subr.mxu0 %v1813
    %2081 = vmatpush1.msra.mxu0 %v1812
    %2082 = vmatprep.subr.mxu0 %v1815
    %2083 = vmatpush1.msra.mxu0 %v1814
    %2084 = vmatprep.subr.mxu0 %v1817
    %2085 = vmatpush1.msra.mxu0 %v1816
    %2086 = vmatprep.subr.mxu0 %v1819
    %2087 = vmatpush1.msra.mxu0 %v1818
    %2088 = vmatprep.subr.mxu0 %v1821
    %2089 = vmatpush1.msra.mxu0 %v1820
    %2090 = vmatprep.subr.mxu0 %v1823
    %2091 = vmatpush1.msra.mxu0 %v1822
    %2092 = vmatprep.subr.mxu0 %v1825
    %2093 = vmatpush1.msra.mxu0 %v1824
    %2094 = vmatprep.subr.mxu0 %v1827
    %2095 = vmatpush1.msra.mxu0 %v1826
    %2096 = vmatprep.subr.mxu0 %v1829
    %2097 = vmatpush1.msra.mxu0 %v1828
    %2098 = vmatprep.subr.mxu0 %v1831
    %2099 = vmatpush1.msra.mxu0 %v1830
    %2100 = vmatprep.subr.mxu0 %v1833
    %2101 = vmatpush1.msra.mxu0 %v1832
    %2102 = vmatprep.subr.mxu0 %v1835
    %2103 = vmatpush1.msra.mxu0 %v1834
    %2104 = vmatprep.subr.mxu0 %v1837
    %2105 = vmatpush1.msra.mxu0 %v1836
    %2106 = vmatprep.subr.mxu0 %v1839
    %2107 = vmatpush1.msra.mxu0 %v1838
    %2108 = vmatprep.subr.mxu0 %v1841
    %2109 = vmatpush1.msra.mxu0 %v1840
    %2110 = vmatprep.subr.mxu0 %v1843
    %2111 = vmatpush1.msra.mxu0 %v1842
    %2112 = vmatprep.subr.mxu0 %v1845
    %2113 = vmatpush1.msra.mxu0 %v1844
    %2114 = vmatprep.subr.mxu0 %v1847
    %2115 = vmatpush1.msra.mxu0 %v1846
    %2116 = vmatprep.subr.mxu0 %v1849
    %2117 = vmatpush1.msra.mxu0 %v1848
    %2118 = vmatprep.subr.mxu0 %v1851
    %2119 = vmatpush1.msra.mxu0 %v1850
    %2120 = vmatprep.subr.mxu0 %v1853
    %2121 = vmatpush1.msra.mxu0 %v1852
    %2122 = vmatprep.subr.mxu0 %v1855
    %2123 = vmatpush1.msra.mxu0 %v1854
    %2124 = vmatprep.subr.mxu0 %v1857
    %2125 = vmatpush1.msra.mxu0 %v1856
    %2126 = vmatprep.subr.mxu0 %v1859
    %2127 = vmatpush1.msra.mxu0 %v1858
    %2128 = vmatprep.subr.mxu0 %v1861
    %2129 = vmatpush1.msra.mxu0 %v1860
    %2130 = vmatprep.subr.mxu0 %v1863
    %2131 = vmatpush1.msra.mxu0 %v1862
    %2132 = vmatprep.mubr.f32.mxu0 %v1793
    %2133 = vmatmul.mubr.f32.gmra.mrb[0].mxu0 %v1792
    %v2134 = vpop.f32.mrb[0].mxu0
    %v2135 = vadd.f32 %v2061, %v2134
    %v2136 = vpop.f32.mrb[0].mxu0
    %v2137 = vadd.f32 %v2065, %v2136
    %2138 = vdwg.mxu0
    %2139 = vmatprep.subr.mxu0 %v1865
    %2140 = vmatpush1.msra.mxu0 %v1864
    %2141 = vmatprep.subr.mxu0 %v1867
    %2142 = vmatpush1.msra.mxu0 %v1866
    %2143 = vmatprep.subr.mxu0 %v1869
    %2144 = vmatpush1.msra.mxu0 %v1868
    %2145 = vmatprep.subr.mxu0 %v1871
    %2146 = vmatpush1.msra.mxu0 %v1870
    %2147 = vmatprep.subr.mxu0 %v1873
    %2148 = vmatpush1.msra.mxu0 %v1872
    %2149 = vmatprep.subr.mxu0 %v1875
    %2150 = vmatpush1.msra.mxu0 %v1874
    %2151 = vmatprep.subr.mxu0 %v1877
    %2152 = vmatpush1.msra.mxu0 %v1876
    %2153 = vmatprep.subr.mxu0 %v1879
    %2154 = vmatpush1.msra.mxu0 %v1878
    %2155 = vmatprep.subr.mxu0 %v1881
    %2156 = vmatpush1.msra.mxu0 %v1880
    %2157 = vmatprep.subr.mxu0 %v1883
    %2158 = vmatpush1.msra.mxu0 %v1882
    %2159 = vmatprep.subr.mxu0 %v1885
    %2160 = vmatpush1.msra.mxu0 %v1884
    %2161 = vmatprep.subr.mxu0 %v1887
    %2162 = vmatpush1.msra.mxu0 %v1886
    %2163 = vmatprep.subr.mxu0 %v1889
    %2164 = vmatpush1.msra.mxu0 %v1888
    %2165 = vmatprep.subr.mxu0 %v1891
    %2166 = vmatpush1.msra.mxu0 %v1890
    %2167 = vmatprep.subr.mxu0 %v1893
    %2168 = vmatpush1.msra.mxu0 %v1892
    %2169 = vmatprep.subr.mxu0 %v1895
    %2170 = vmatpush1.msra.mxu0 %v1894
    %2171 = vmatprep.subr.mxu0 %v1897
    %2172 = vmatpush1.msra.mxu0 %v1896
    %2173 = vmatprep.subr.mxu0 %v1899
    %2174 = vmatpush1.msra.mxu0 %v1898
    %2175 = vmatprep.subr.mxu0 %v1901
    %2176 = vmatpush1.msra.mxu0 %v1900
    %2177 = vmatprep.subr.mxu0 %v1903
    %2178 = vmatpush1.msra.mxu0 %v1902
    %2179 = vmatprep.subr.mxu0 %v1905
    %2180 = vmatpush1.msra.mxu0 %v1904
    %2181 = vmatprep.subr.mxu0 %v1907
    %2182 = vmatpush1.msra.mxu0 %v1906
    %2183 = vmatprep.subr.mxu0 %v1909
    %2184 = vmatpush1.msra.mxu0 %v1908
    %2185 = vmatprep.subr.mxu0 %v1911
    %2186 = vmatpush1.msra.mxu0 %v1910
    %2187 = vmatprep.subr.mxu0 %v1913
    %2188 = vmatpush1.msra.mxu0 %v1912
    %2189 = vmatprep.subr.mxu0 %v1915
    %2190 = vmatpush1.msra.mxu0 %v1914
    %2191 = vmatprep.subr.mxu0 %v1917
    %2192 = vmatpush1.msra.mxu0 %v1916
    %2193 = vmatprep.subr.mxu0 %v1919
    %2194 = vmatpush1.msra.mxu0 %v1918
    %2195 = vmatprep.subr.mxu0 %v1921
    %2196 = vmatpush1.msra.mxu0 %v1920
    %2197 = vmatprep.subr.mxu0 %v1923
    %2198 = vmatpush1.msra.mxu0 %v1922
    %2199 = vmatprep.subr.mxu0 %v1925
    %2200 = vmatpush1.msra.mxu0 %v1924
    %2201 = vmatprep.subr.mxu0 %v1927
    %2202 = vmatpush1.msra.mxu0 %v1926
    %2203 = vmatprep.mubr.f32.mxu0 %v1795
    %2204 = vmatmul.mubr.f32.gmra.mrb[0].mxu0 %v1794
    %v2205 = vpop.f32.mrb[0].mxu0
    %v2206 = vadd.f32 %v2135, %v2205
    %v2207 = vpop.f32.mrb[0].mxu0
    %v2208 = vadd.f32 %v2137, %v2207
    %2209 = vdwg.mxu0
    %2210 = vmatprep.subr.mxu0 %v1929
    %2211 = vmatpush1.msra.mxu0 %v1928
    %2212 = vmatprep.subr.mxu0 %v1931
    %2213 = vmatpush1.msra.mxu0 %v1930
    %2214 = vmatprep.subr.mxu0 %v1933
    %2215 = vmatpush1.msra.mxu0 %v1932
    %2216 = vmatprep.subr.mxu0 %v1935
    %2217 = vmatpush1.msra.mxu0 %v1934
    %2218 = vmatprep.subr.mxu0 %v1937
    %2219 = vmatpush1.msra.mxu0 %v1936
    %2220 = vmatprep.subr.mxu0 %v1939
    %2221 = vmatpush1.msra.mxu0 %v1938
    %2222 = vmatprep.subr.mxu0 %v1941
    %2223 = vmatpush1.msra.mxu0 %v1940
    %2224 = vmatprep.subr.mxu0 %v1943
    %2225 = vmatpush1.msra.mxu0 %v1942
    %2226 = vmatprep.subr.mxu0 %v1945
    %2227 = vmatpush1.msra.mxu0 %v1944
    %2228 = vmatprep.subr.mxu0 %v1947
    %2229 = vmatpush1.msra.mxu0 %v1946
    %2230 = vmatprep.subr.mxu0 %v1949
    %2231 = vmatpush1.msra.mxu0 %v1948
    %2232 = vmatprep.subr.mxu0 %v1951
    %2233 = vmatpush1.msra.mxu0 %v1950
    %2234 = vmatprep.subr.mxu0 %v1953
    %2235 = vmatpush1.msra.mxu0 %v1952
    %2236 = vmatprep.subr.mxu0 %v1955
    %2237 = vmatpush1.msra.mxu0 %v1954
    %2238 = vmatprep.subr.mxu0 %v1957
    %2239 = vmatpush1.msra.mxu0 %v1956
    %2240 = vmatprep.subr.mxu0 %v1959
    %2241 = vmatpush1.msra.mxu0 %v1958
    %2242 = vmatprep.subr.mxu0 %v1961
    %2243 = vmatpush1.msra.mxu0 %v1960
    %2244 = vmatprep.subr.mxu0 %v1963
    %2245 = vmatpush1.msra.mxu0 %v1962
    %2246 = vmatprep.subr.mxu0 %v1965
    %2247 = vmatpush1.msra.mxu0 %v1964
    %2248 = vmatprep.subr.mxu0 %v1967
    %2249 = vmatpush1.msra.mxu0 %v1966
    %2250 = vmatprep.subr.mxu0 %v1969
    %2251 = vmatpush1.msra.mxu0 %v1968
    %2252 = vmatprep.subr.mxu0 %v1971
    %2253 = vmatpush1.msra.mxu0 %v1970
    %2254 = vmatprep.subr.mxu0 %v1973
    %2255 = vmatpush1.msra.mxu0 %v1972
    %2256 = vmatprep.subr.mxu0 %v1975
    %2257 = vmatpush1.msra.mxu0 %v1974
    %2258 = vmatprep.subr.mxu0 %v1977
    %2259 = vmatpush1.msra.mxu0 %v1976
    %2260 = vmatprep.subr.mxu0 %v1979
    %2261 = vmatpush1.msra.mxu0 %v1978
    %2262 = vmatprep.subr.mxu0 %v1981
    %2263 = vmatpush1.msra.mxu0 %v1980
    %2264 = vmatprep.subr.mxu0 %v1983
    %2265 = vmatpush1.msra.mxu0 %v1982
    %2266 = vmatprep.subr.mxu0 %v1985
    %2267 = vmatpush1.msra.mxu0 %v1984
    %2268 = vmatprep.subr.mxu0 %v1987
    %2269 = vmatpush1.msra.mxu0 %v1986
    %2270 = vmatprep.subr.mxu0 %v1989
    %2271 = vmatpush1.msra.mxu0 %v1988
    %2272 = vmatprep.subr.mxu0 %v1991
    %2273 = vmatpush1.msra.mxu0 %v1990
    %2274 = vmatprep.mubr.f32.mxu0 %v1797
    %2275 = vmatmul.mubr.f32.gmra.mrb[0].mxu0 %v1796
    %v2276 = vpop.f32.mrb[0].mxu0
    %v2277 = vadd.f32 %v2206, %v2276
    %v2278 = vpop.f32.mrb[0].mxu0
    %v2279 = vadd.f32 %v2208, %v2278
    %2280 = vdwg.mxu0
    %2281 = vmatprep.subr.mxu0 %v1993
    %2282 = vmatpush1.msra.mxu0 %v1992
    %2283 = vmatprep.subr.mxu0 %v1995
    %2284 = vmatpush1.msra.mxu0 %v1994
    %2285 = vmatprep.subr.mxu0 %v1997
    %2286 = vmatpush1.msra.mxu0 %v1996
    %2287 = vmatprep.subr.mxu0 %v1999
    %2288 = vmatpush1.msra.mxu0 %v1998
    %2289 = vmatprep.subr.mxu0 %v2001
    %2290 = vmatpush1.msra.mxu0 %v2000
    %2291 = vmatprep.subr.mxu0 %v2003
    %2292 = vmatpush1.msra.mxu0 %v2002
    %2293 = vmatprep.subr.mxu0 %v2005
    %2294 = vmatpush1.msra.mxu0 %v2004
    %2295 = vmatprep.subr.mxu0 %v2007
    %2296 = vmatpush1.msra.mxu0 %v2006
    %2297 = vmatprep.subr.mxu0 %v2009
    %2298 = vmatpush1.msra.mxu0 %v2008
    %2299 = vmatprep.subr.mxu0 %v2011
    %2300 = vmatpush1.msra.mxu0 %v2010
    %2301 = vmatprep.subr.mxu0 %v2013
    %2302 = vmatpush1.msra.mxu0 %v2012
    %2303 = vmatprep.subr.mxu0 %v2015
    %2304 = vmatpush1.msra.mxu0 %v2014
    %2305 = vmatprep.subr.mxu0 %v2017
    %2306 = vmatpush1.msra.mxu0 %v2016
    %2307 = vmatprep.subr.mxu0 %v2019
    %2308 = vmatpush1.msra.mxu0 %v2018
    %2309 = vmatprep.subr.mxu0 %v2021
    %2310 = vmatpush1.msra.mxu0 %v2020
    %2311 = vmatprep.subr.mxu0 %v2023
    %2312 = vmatpush1.msra.mxu0 %v2022
    %2313 = vmatprep.subr.mxu0 %v2025
    %2314 = vmatpush1.msra.mxu0 %v2024
    %2315 = vmatprep.subr.mxu0 %v2027
    %2316 = vmatpush1.msra.mxu0 %v2026
    %2317 = vmatprep.subr.mxu0 %v2029
    %2318 = vmatpush1.msra.mxu0 %v2028
    %2319 = vmatprep.subr.mxu0 %v2031
    %2320 = vmatpush1.msra.mxu0 %v2030
    %2321 = vmatprep.subr.mxu0 %v2033
    %2322 = vmatpush1.msra.mxu0 %v2032
    %2323 = vmatprep.subr.mxu0 %v2035
    %2324 = vmatpush1.msra.mxu0 %v2034
    %2325 = vmatprep.subr.mxu0 %v2037
    %2326 = vmatpush1.msra.mxu0 %v2036
    %2327 = vmatprep.subr.mxu0 %v2039
    %2328 = vmatpush1.msra.mxu0 %v2038
    %2329 = vmatprep.subr.mxu0 %v2041
    %2330 = vmatpush1.msra.mxu0 %v2040
    %2331 = vmatprep.subr.mxu0 %v2043
    %2332 = vmatpush1.msra.mxu0 %v2042
    %2333 = vmatprep.subr.mxu0 %v2045
    %2334 = vmatpush1.msra.mxu0 %v2044
    %2335 = vmatprep.subr.mxu0 %v2047
    %2336 = vmatpush1.msra.mxu0 %v2046
    %2337 = vmatprep.subr.mxu0 %v2049
    %2338 = vmatpush1.msra.mxu0 %v2048
    %2339 = vmatprep.subr.mxu0 %v2051
    %2340 = vmatpush1.msra.mxu0 %v2050
    %2341 = vmatprep.subr.mxu0 %v2053
    %2342 = vmatpush1.msra.mxu0 %v2052
    %2343 = vmatprep.subr.mxu0 %v2055
    %2344 = vmatpush1.msra.mxu0 %v2054
    %2345 = vmatprep.mubr.f32.mxu0 %v1799
    %2346 = vmatmul.mubr.f32.gmra.mrb[0].mxu0 %v1798
    %v2347 = vpop.f32.mrb[0].mxu0
    %v2348 = vadd.f32 %v2277, %v2347
    %v2349 = vpop.f32.mrb[0].mxu0
    %v2350 = vadd.f32 %v2279, %v2349
    %2351 = vdwg.mxu0
    %v2352 = vmax.f32 %v2348, 0.0
    %v2353 = vmax.f32 %v2350, 0.0
    %v2354 = vld [vmem:[%s9] sm:$0xff]
    %v2355 = vld [vmem:[%s9 + $0x8] sm:$0xff]
    %v2356 = vld [vmem:[%s9 + $0x10] sm:$0xff]
    %v2357 = vld [vmem:[%s9 + $0x18] sm:$0xff]
    %v2358 = vld [vmem:[%s9 + $0x20] sm:$0xff]
    %v2359 = vld [vmem:[%s9 + $0x28] sm:$0xff]
    %v2360 = vld [vmem:[%s9 + $0x30] sm:$0xff]
    %v2361 = vld [vmem:[%s9 + $0x38] sm:$0xff]
    %v2362 = vld [vmem:[%s9 + $0x40] sm:$0xff]
    %v2363 = vld [vmem:[%s9 + $0x48] sm:$0xff]
    %v2364 = vld [vmem:[%s9 + $0x50] sm:$0xff]
    %v2365 = vld [vmem:[%s9 + $0x58] sm:$0xff]
    %v2366 = vld [vmem:[%s9 + $0x60] sm:$0xff]
    %v2367 = vld [vmem:[%s9 + $0x68] sm:$0xff]
    %v2368 = vld [vmem:[%s9 + $0x70] sm:$0xff]
    %v2369 = vld [vmem:[%s9 + $0x78] sm:$0xff]
    %v2370 = vld [vmem:[%s9 + $0x80] sm:$0xff]
    %v2371 = vld [vmem:[%s9 + $0x88] sm:$0xff]
    %v2372 = vld [vmem:[%s9 + $0x90] sm:$0xff]
    %v2373 = vld [vmem:[%s9 + $0x98] sm:$0xff]
    %v2374 = vld [vmem:[%s9 + $0xa0] sm:$0xff]
    %v2375 = vld [vmem:[%s9 + $0xa8] sm:$0xff]
    %v2376 = vld [vmem:[%s9 + $0xb0] sm:$0xff]
    %v2377 = vld [vmem:[%s9 + $0xb8] sm:$0xff]
    %v2378 = vld [vmem:[%s9 + $0xc0] sm:$0xff]
    %v2379 = vld [vmem:[%s9 + $0xc8] sm:$0xff]
    %v2380 = vld [vmem:[%s9 + $0xd0] sm:$0xff]
    %v2381 = vld [vmem:[%s9 + $0xd8] sm:$0xff]
    %v2382 = vld [vmem:[%s9 + $0xe0] sm:$0xff]
    %v2383 = vld [vmem:[%s9 + $0xe8] sm:$0xff]
    %v2384 = vld [vmem:[%s9 + $0xf0] sm:$0xff]
    %v2385 = vld [vmem:[%s9 + $0xf8] sm:$0xff]
    %v2386 = vld [vmem:[%s10] sm:$0x1]
    %v2388 = vlaneseq
    %v2389 = vshrl.u32 %v2388, 7
    %v2390 = vsub.s32 0, %v2389
    %v2391 = vrot.slane %v2386, %v2390
    %2393 = vmatprep.subr.mxu0 0.0
    %2394 = vmatpush1.msra.mxu0 %v2354
    %2395 = vmatprep.subr.mxu0 0.0
    %2396 = vmatpush1.msra.mxu0 %v2355
    %2397 = vmatprep.subr.mxu0 0.0
    %2398 = vmatpush1.msra.mxu0 %v2356
    %2399 = vmatprep.subr.mxu0 0.0
    %2400 = vmatpush1.msra.mxu0 %v2357
    %2401 = vmatprep.subr.mxu0 0.0
    %2402 = vmatpush1.msra.mxu0 %v2358
    %2403 = vmatprep.subr.mxu0 0.0
    %2404 = vmatpush1.msra.mxu0 %v2359
    %2405 = vmatprep.subr.mxu0 0.0
    %2406 = vmatpush1.msra.mxu0 %v2360
    %2407 = vmatprep.subr.mxu0 0.0
    %2408 = vmatpush1.msra.mxu0 %v2361
    %2409 = vmatprep.subr.mxu0 0.0
    %2410 = vmatpush1.msra.mxu0 %v2362
    %2411 = vmatprep.subr.mxu0 0.0
    %2412 = vmatpush1.msra.mxu0 %v2363
    %2413 = vmatprep.subr.mxu0 0.0
    %2414 = vmatpush1.msra.mxu0 %v2364
    %2415 = vmatprep.subr.mxu0 0.0
    %2416 = vmatpush1.msra.mxu0 %v2365
    %2417 = vmatprep.subr.mxu0 0.0
    %2418 = vmatpush1.msra.mxu0 %v2366
    %2419 = vmatprep.subr.mxu0 0.0
    %2420 = vmatpush1.msra.mxu0 %v2367
    %2421 = vmatprep.subr.mxu0 0.0
    %2422 = vmatpush1.msra.mxu0 %v2368
    %2423 = vmatprep.subr.mxu0 0.0
    %2424 = vmatpush1.msra.mxu0 %v2369
    %2425 = vmatprep.subr.mxu0 0.0
    %2426 = vmatpush1.msra.mxu0 %v2370
    %2427 = vmatprep.subr.mxu0 0.0
    %2428 = vmatpush1.msra.mxu0 %v2371
    %2429 = vmatprep.subr.mxu0 0.0
    %2430 = vmatpush1.msra.mxu0 %v2372
    %2431 = vmatprep.subr.mxu0 0.0
    %2432 = vmatpush1.msra.mxu0 %v2373
    %2433 = vmatprep.subr.mxu0 0.0
    %2434 = vmatpush1.msra.mxu0 %v2374
    %2435 = vmatprep.subr.mxu0 0.0
    %2436 = vmatpush1.msra.mxu0 %v2375
    %2437 = vmatprep.subr.mxu0 0.0
    %2438 = vmatpush1.msra.mxu0 %v2376
    %2439 = vmatprep.subr.mxu0 0.0
    %2440 = vmatpush1.msra.mxu0 %v2377
    %2441 = vmatprep.subr.mxu0 0.0
    %2442 = vmatpush1.msra.mxu0 %v2378
    %2443 = vmatprep.subr.mxu0 0.0
    %2444 = vmatpush1.msra.mxu0 %v2379
    %2445 = vmatprep.subr.mxu0 0.0
    %2446 = vmatpush1.msra.mxu0 %v2380
    %2447 = vmatprep.subr.mxu0 0.0
    %2448 = vmatpush1.msra.mxu0 %v2381
    %2449 = vmatprep.subr.mxu0 0.0
    %2450 = vmatpush1.msra.mxu0 %v2382
    %2451 = vmatprep.subr.mxu0 0.0
    %2452 = vmatpush1.msra.mxu0 %v2383
    %2453 = vmatprep.subr.mxu0 0.0
    %2454 = vmatpush1.msra.mxu0 %v2384
    %2455 = vmatprep.subr.mxu0 0.0
    %2456 = vmatpush1.msra.mxu0 %v2385
    %2457 = vmatprep.mubr.f32.mxu0 %v2353
    %2458 = vmatmul.mubr.f32.gmra.mrb[0].mxu0 %v2352
    %v2459 = vpop.f32.mrb[0].mxu0
    %v2460 = vadd.f32 %v2391, %v2459
    %v2461 = vpop.f32.mrb[0].mxu0
    %2462 = vdwg.mxu0
    %v2463 = vmax.f32 %v2460, 0.0
    %v2464 = vld [vmem:[#allocation7] sm:$0xff]
    %v2465 = vld [vmem:[#allocation7 + $0x8] sm:$0xff]
    %v2466 = vld [vmem:[#allocation7 + $0x10] sm:$0xff]
    %v2467 = vld [vmem:[#allocation7 + $0x18] sm:$0xff]
    %v2468 = vld [vmem:[#allocation7 + $0x20] sm:$0xff]
    %v2469 = vld [vmem:[#allocation7 + $0x28] sm:$0xff]
    %v2470 = vld [vmem:[#allocation7 + $0x30] sm:$0xff]
    %v2471 = vld [vmem:[#allocation7 + $0x38] sm:$0xff]
    %v2472 = vld [vmem:[#allocation7 + $0x40] sm:$0xff]
    %v2473 = vld [vmem:[#allocation7 + $0x48] sm:$0xff]
    %v2474 = vld [vmem:[#allocation7 + $0x50] sm:$0xff]
    %v2475 = vld [vmem:[#allocation7 + $0x58] sm:$0xff]
    %v2476 = vld [vmem:[#allocation7 + $0x60] sm:$0xff]
    %v2477 = vld [vmem:[#allocation7 + $0x68] sm:$0xff]
    %v2478 = vld [vmem:[#allocation7 + $0x70] sm:$0xff]
    %v2479 = vld [vmem:[#allocation7 + $0x78] sm:$0xff]
    %v2480 = vld [vmem:[%s12] sm:$0x1]
    %v2482 = vlaneseq
    %v2483 = vshrl.u32 %v2482, 7
    %v2484 = vsub.s32 0, %v2483
    %v2485 = vrot.slane %v2480, %v2484
    %2487 = vmatprep.subr.mxu0 0.0
    %2488 = vmatpush1.msra.mxu0 %v2464
    %2489 = vmatprep.subr.mxu0 0.0
    %2490 = vmatpush1.msra.mxu0 %v2465
    %2491 = vmatprep.subr.mxu0 0.0
    %2492 = vmatpush1.msra.mxu0 %v2466
    %2493 = vmatprep.subr.mxu0 0.0
    %2494 = vmatpush1.msra.mxu0 %v2467
    %2495 = vmatprep.subr.mxu0 0.0
    %2496 = vmatpush1.msra.mxu0 %v2468
    %2497 = vmatprep.subr.mxu0 0.0
    %2498 = vmatpush1.msra.mxu0 %v2469
    %2499 = vmatprep.subr.mxu0 0.0
    %2500 = vmatpush1.msra.mxu0 %v2470
    %2501 = vmatprep.subr.mxu0 0.0
    %2502 = vmatpush1.msra.mxu0 %v2471
    %2503 = vmatprep.subr.mxu0 0.0
    %2504 = vmatpush1.msra.mxu0 %v2472
    %2505 = vmatprep.subr.mxu0 0.0
    %2506 = vmatpush1.msra.mxu0 %v2473
    %2507 = vmatprep.subr.mxu0 0.0
    %2508 = vmatpush1.msra.mxu0 %v2474
    %2509 = vmatprep.subr.mxu0 0.0
    %2510 = vmatpush1.msra.mxu0 %v2475
    %2511 = vmatprep.subr.mxu0 0.0
    %2512 = vmatpush1.msra.mxu0 %v2476
    %2513 = vmatprep.subr.mxu0 0.0
    %2514 = vmatpush1.msra.mxu0 %v2477
    %2515 = vmatprep.subr.mxu0 0.0
    %2516 = vmatpush1.msra.mxu0 %v2478
    %2517 = vmatprep.subr.mxu0 0.0
    %2518 = vmatpush1.msra.mxu0 %v2479
    %2519 = vmatprep.subr.mxu0 0.0
    %2520 = vmatpush1.msra.mxu0 0.0
    %2521 = vmatprep.subr.mxu0 0.0
    %2522 = vmatpush1.msra.mxu0 0.0
    %2523 = vmatprep.subr.mxu0 0.0
    %2524 = vmatpush1.msra.mxu0 0.0
    %2525 = vmatprep.subr.mxu0 0.0
    %2526 = vmatpush1.msra.mxu0 0.0
    %2527 = vmatprep.subr.mxu0 0.0
    %2528 = vmatpush1.msra.mxu0 0.0
    %2529 = vmatprep.subr.mxu0 0.0
    %2530 = vmatpush1.msra.mxu0 0.0
    %2531 = vmatprep.subr.mxu0 0.0
    %2532 = vmatpush1.msra.mxu0 0.0
    %2533 = vmatprep.subr.mxu0 0.0
    %2534 = vmatpush1.msra.mxu0 0.0
    %2535 = vmatprep.subr.mxu0 0.0
    %2536 = vmatpush1.msra.mxu0 0.0
    %2537 = vmatprep.subr.mxu0 0.0
    %2538 = vmatpush1.msra.mxu0 0.0
    %2539 = vmatprep.subr.mxu0 0.0
    %2540 = vmatpush1.msra.mxu0 0.0
    %2541 = vmatprep.subr.mxu0 0.0
    %2542 = vmatpush1.msra.mxu0 0.0
    %2543 = vmatprep.subr.mxu0 0.0
    %2544 = vmatpush1.msra.mxu0 0.0
    %2545 = vmatprep.subr.mxu0 0.0
    %2546 = vmatpush1.msra.mxu0 0.0
    %2547 = vmatprep.subr.mxu0 0.0
    %2548 = vmatpush1.msra.mxu0 0.0
    %2549 = vmatprep.subr.mxu0 0.0
    %2550 = vmatpush1.msra.mxu0 0.0
    %2551 = vmatprep.mubr.f32.mxu0 0.0
    %2552 = vmatmul.mubr.f32.gmra.mrb[0].mxu0 %v2463
    %v2553 = vpop.f32.mrb[0].mxu0
    %v2554 = vadd.f32 %v2485, %v2553
    %v2555 = vpop.f32.mrb[0].mxu0
    %2556 = vdwg.mxu0
    %2557 = vst [vmem:[#allocation8] sm:$0x3] %v2554
    // Predicated region
    $region66: #{voxelnet_forward.1} parent=1 // pred_check
      _
    $region67: #{voxelnet_forward.1} parent=1 // pred_check_branch
      %2559 = sbr.rel (0) target = $region69
    $region68: #{voxelnet_forward.1} parent=1 // pred_region
      %s2561 = ssub.s32 32, 32
      %2562 = vsyncadd [#allocation4], %s2561
      %s2564 = sshll.u32 [#allocation8], 4
      %s2565 = int_to_ptr.vmem [resolvable:$true] %s2564
      %2567 = dma.vmem_to_hbm [thread:$0]  %s2565, 32, %s13, [#allocation4]
    $region69: #{voxelnet_forward.1} parent=1 // pred_fallthru
      _
    // Predicated region
    $region70: #{voxelnet_forward.1} parent=1 // pred_check
      _
    $region71: #{voxelnet_forward.1} parent=1 // pred_check_branch
      %2569 = sbr.rel (0) target = $region73
    $region72: #{voxelnet_forward.1} parent=1 // pred_region
      %2570 = dma.done [#allocation4], 32
    $region73: #{voxelnet_forward.1} parent=1 // pred_fallthru
      _
    %2571 = vsyncpa [#allocation3], 1
    %2572 = vsyncpa [#allocation6], 1
    %2573 = vsyncpa [#allocation4], 1

</llo_original>
